<compile_context>
chip_gen: v6e
topology: v6e:2x2x1
jax: 0.10.0
libtpu: 0.0.40
codegen_flags: <defaults>
</compile_context>

<pallas_src>
import jax
import jax.numpy as jnp
from jax import lax
from jax.experimental import pallas as pl
from jax.experimental.pallas import tpu as pltpu  # noqa: F401  (TPU-specific tuning hooks)

# ---------------- scaled-down dimensions (stand-ins for ResNet-50 sizes) -----
B = 2                    # batch
H_IN, W_IN = 48, 16      # input spatial (stands for 384 x 128)
C_STEM = 32              # backbone stem channels
C_BB = 64                # backbone output channels   (stands for 1024)
C_MID = 64               # branch mid channels
C_FEAT = 256             # branch output channels     (stands for 2048)
C_RED = 128              # reduction output channels  (stands for 256)
NUM_CLASSES = 16
NUM_RED = 8              # reduction_0 .. reduction_7
BN_EPS = 1e-5

# branch feature-map spatial sizes (flattened h*w, channels-last) — match real MGN
# spatial sizes (p1: 12x4 after stride-2 layer4, p2/p3: 24x8 stride-1).
P1_HW = 12 * 4           # MaxPool2d((12, 4)) on p1  == global max over 48 positions
P23_HW = 24 * 8          # MaxPool2d((24, 8)) on p2/p3 == global max over 192 positions
ZP2_PART = 12 * 8        # MaxPool2d((12, 8)) on 24x8 -> 2 vertical parts of 96 positions
ZP3_PART = 8 * 8         # MaxPool2d((8, 8))  on 24x8 -> 3 vertical parts of 64 positions

CLS_IN = 3 * C_FEAT + 5 * C_RED          # 1408 : block-diag classifier K dim
CLS_OUT = NUM_RED * NUM_CLASSES          # 128  : lane-dense packed logits width


# ----------------------------- Pallas kernel ----------------------------------
def mgn_head_kernel(p1_ref, p2_ref, p3_ref,
                    wred_ref, bnb_ref, wcls_ref, bcls_ref,
                    feat_eval_ref, feat_train_ref, logits_ref):
    """Fused MGN head, single invocation (no grid).

    p1_ref   : [B, 48, C_FEAT]   bf16   (p1 branch map, 12x4 flattened)
    p2_ref   : [B, 192, C_FEAT]  bf16   (p2 branch map, 24x8 flattened)
    p3_ref   : [B, 192, C_FEAT]  bf16
    wred_ref : [8, C_FEAT, C_RED] bf16  (1x1-conv weights with eval-BN scale folded in)
    bnb_ref  : [8, 1, C_RED]  f32       (eval-BN shift)
    wcls_ref : [CLS_IN, CLS_OUT] bf16   (block-diag of fc_id_2048_{0..2}, fc_id_256_*)
    bcls_ref : [1, CLS_OUT]      f32    (concatenated classifier biases)
    feat_eval_ref : [B, 8*C_RED]  f32   L2-normalized cat of all 8 reduced feats
    feat_train_ref: [B, 3*C_RED]  f32   L2-normalized cat of the 3 global feats
    logits_ref    : [B, CLS_OUT]  f32   packed [l_p1,l_p2,l_p3,l0_p2,l1_p2,l0_p3,l1_p3,l2_p3]
    """
    f32 = jnp.float32
    bf16 = jnp.bfloat16

    p1 = p1_ref[...]
    p2 = p2_ref[...]
    p3 = p3_ref[...]

    # ----- max pools (parts are sublane-aligned slices of the flattened maps) --
    zg_p1 = jnp.max(p1, axis=1)                                # MaxPool2d((12,4)) == global
    z0_p2 = jnp.max(p2[:, 0:ZP2_PART, :], axis=1)              # MaxPool2d((12,8)) part 0
    z1_p2 = jnp.max(p2[:, ZP2_PART:2 * ZP2_PART, :], axis=1)   # part 1
    zg_p2 = jnp.maximum(z0_p2, z1_p2)                          # MaxPool2d((24,8)) == max of parts
    z0_p3 = jnp.max(p3[:, 0:ZP3_PART, :], axis=1)              # MaxPool2d((8,8)) parts
    z1_p3 = jnp.max(p3[:, ZP3_PART:2 * ZP3_PART, :], axis=1)
    z2_p3 = jnp.max(p3[:, 2 * ZP3_PART:3 * ZP3_PART, :], axis=1)
    zg_p3 = jnp.maximum(jnp.maximum(z0_p3, z1_p3), z2_p3)

    # reduction_0..7 inputs, in PyTorch order
    zs = jnp.stack([zg_p1, zg_p2, zg_p3, z0_p2, z1_p2, z0_p3, z1_p3, z2_p3], axis=0)
    # zs: [8, B, C_FEAT] bf16

    # ----- 8 reductions as ONE batched MXU matmul (bf16 in, f32 acc) -----------
    # eval-BN scale is already folded into wred (host-side, f32), so only shift+ReLU.
    r = jnp.einsum('gbk,gkn->gbn', zs, wred_ref[...], preferred_element_type=f32)
    f_all = jnp.maximum(r + bnb_ref[...], 0.0)                 # [8, B, C_RED] f32

    # ----- 8 classifiers fused into ONE block-diagonal matmul ------------------
    # fc_id_2048_{0,1,2} see the pooled (2048-analogue) features zg_p{1,2,3};
    # fc_id_256_* see the reduced part features f0_p2..f2_p3.
    cls_in = jnp.concatenate(
        [zg_p1, zg_p2, zg_p3] + [f_all[3 + j].astype(bf16) for j in range(5)],
        axis=1)                                                # [B, CLS_IN] bf16
    logits = jnp.dot(cls_in, wcls_ref[...], preferred_element_type=f32) + bcls_ref[...]
    logits_ref[...] = logits.astype(logits_ref.dtype)          # one unmasked 128-wide store

    # ----- fused concat + L2 normalize: torch.div(feat, feat.norm(dim=1)) ------
    feat_cat = jnp.concatenate([f_all[i] for i in range(NUM_RED)], axis=1)  # [B, 8*C_RED]
    feat_tr = feat_cat[:, :3 * C_RED]                                        # [B, 3*C_RED]
    # one wide cross-lane reduce for eval, one sub-slice reduce for train
    ss_eval = jnp.sum(feat_cat * feat_cat, axis=1, keepdims=True)
    ss_train = jnp.sum(feat_tr * feat_tr, axis=1, keepdims=True)
    inv_eval = lax.rsqrt(ss_eval)      # rsqrt on the EUP (no eps: matches torch x/x.norm())
    inv_train = lax.rsqrt(ss_train)
    feat_eval_ref[...] = (feat_cat * inv_eval).astype(feat_eval_ref.dtype)
    feat_train_ref[...] = (feat_tr * inv_train).astype(feat_train_ref.dtype)


# ----------------------------- Pallas wrapper ----------------------------------
def mgn_head(p1f, p2f, p3f, w_red, bn_shift, w_cls, b_cls):
    """Entire MGN head in ONE grid-less pallas_call.  Total working set well under
    1 MiB at toy size, so all inputs/weights are mapped whole into VMEM; every
    output last dim is a multiple of 128 (lane-dense, unmasked stores)."""
    return pl.pallas_call(
        mgn_head_kernel,
        out_shape=(
            jax.ShapeDtypeStruct((B, NUM_RED * C_RED), jnp.float32),  # eval feat
            jax.ShapeDtypeStruct((B, 3 * C_RED), jnp.float32),        # train feat
            jax.ShapeDtypeStruct((B, CLS_OUT), jnp.float32),          # packed logits
        ),
    )(p1f, p2f, p3f, w_red, bn_shift, w_cls, b_cls)


# ------------------------ plain-JAX glue (backbone stand-in) -------------------
def conv2d_nhwc(x, w, stride, padding):
    return lax.conv_general_dilated(
        x, w, window_strides=(stride, stride), padding=padding,
        dimension_numbers=("NHWC", "HWIO", "NHWC"))


def forward(x_nchw, p, training=False):
    """OriginMGN forward (loss_type in the 'xent_triplet' family).

    training=True : returns (feat_clfy = 8 x [B, NUM_CLASSES], feat [B, 3*C_RED])
    training=False: returns feat [B, 8*C_RED]
    Both feats are row-wise L2-normalized, matching torch.div(feat, feat.norm(dim=1)).
    NOTE: training path uses eval-mode (folded) BatchNorm statistics for the
    reduction BN layers (a torch model in train() would use batch stats).
    """
    x = jnp.transpose(x_nchw, (0, 2, 3, 1))                        # NCHW -> NHWC

    # stand-in backbone (resnet.conv1 .. layer3[0]) -> [B, 24, 8, C_BB]
    h = jax.nn.relu(conv2d_nhwc(x, p["w_bb1"], 2, "SAME"))         # [B, 24, 8, C_STEM]
    h = jax.nn.relu(conv2d_nhwc(h, p["w_bb2"], 1, "SAME"))         # [B, 24, 8, C_BB]

    # stand-in branches: p1 = res_conv4 + layer4 (stride 2) -> 12x4,
    #                    p2/p3 = res_conv4 + res_p_conv5 (stride 1) -> 24x8
    # bf16 cast is emitted inside the relu fusion so the branch maps are written
    # to HBM once, already in bf16 (halves the head kernel's dominant DMA).
    def branch(wa, wb, stride_b):
        b = jax.nn.relu(conv2d_nhwc(h, wa, 1, "SAME"))
        return jax.nn.relu(conv2d_nhwc(b, wb, stride_b, "SAME")).astype(jnp.bfloat16)

    p1 = branch(p["w_p1a"], p["w_p1b"], 2)                         # [B, 12, 4, C_FEAT] bf16
    p2 = branch(p["w_p2a"], p["w_p2b"], 1)                         # [B, 24, 8, C_FEAT] bf16
    p3 = branch(p["w_p3a"], p["w_p3b"], 1)                         # [B, 24, 8, C_FEAT] bf16

    p1f = p1.reshape(B, P1_HW, C_FEAT)
    p2f = p2.reshape(B, P23_HW, C_FEAT)
    p3f = p3.reshape(B, P23_HW, C_FEAT)

    feat_eval, feat_train, logits = mgn_head(
        p1f, p2f, p3f, p["w_red"], p["bn_shift"], p["w_cls"], p["b_cls"])

    if training:
        # unpack [l_p1, l_p2, l_p3, l0_p2, l1_p2, l0_p3, l1_p3, l2_p3]
        feat_clfy = [logits[:, i * NUM_CLASSES:(i + 1) * NUM_CLASSES]
                     for i in range(NUM_RED)]
        return feat_clfy, feat_train
    return feat_eval


# ------------------------------ deterministic init -----------------------------
def init_params(key):
    ks = jax.random.split(key, 18)
    s = 0.05
    n = jax.random.normal
    p = {}
    p["w_bb1"] = s * n(ks[0], (3, 3, 3, C_STEM), jnp.float32)
    p["w_bb2"] = s * n(ks[1], (3, 3, C_STEM, C_BB), jnp.float32)
    p["w_p1a"] = s * n(ks[2], (3, 3, C_BB, C_MID), jnp.float32)
    p["w_p1b"] = s * n(ks[3], (3, 3, C_MID, C_FEAT), jnp.float32)
    p["w_p2a"] = s * n(ks[4], (3, 3, C_BB, C_MID), jnp.float32)
    p["w_p2b"] = s * n(ks[5], (3, 3, C_MID, C_FEAT), jnp.float32)
    p["w_p3a"] = s * n(ks[6], (3, 3, C_BB, C_MID), jnp.float32)
    p["w_p3b"] = s * n(ks[7], (3, 3, C_MID, C_FEAT), jnp.float32)

    # reduction_i: Conv2d(C_FEAT, C_RED, 1, bias=False), weight stored [C_in, C_out]
    w_red_f32 = s * n(ks[8], (NUM_RED, C_FEAT, C_RED), jnp.float32)
    # BatchNorm2d(C_RED) eval-mode parameters folded into scale/shift (f32)
    gamma = 1.0 + 0.1 * n(ks[9], (NUM_RED, 1, C_RED), jnp.float32)
    beta = 0.1 * n(ks[10], (NUM_RED, 1, C_RED), jnp.float32)
    mean = 0.1 * n(ks[11], (NUM_RED, 1, C_RED), jnp.float32)
    var = 0.5 + 0.1 * jnp.abs(n(ks[12], (NUM_RED, 1, C_RED), jnp.float32))
    scale = gamma / jnp.sqrt(var + BN_EPS)
    # fold BN scale into the 1x1-conv weight IN F32, then cast once to bf16
    p["w_red"] = (w_red_f32 * scale).astype(jnp.bfloat16)          # [8, C_FEAT, C_RED] bf16
    p["bn_shift"] = beta - mean * scale                            # [8, 1, C_RED] f32

    # classifiers: fc_id_2048_{0,1,2} (C_FEAT->NUM_CLASSES) and fc_id_256_* (C_RED->..)
    w_fc_g = s * n(ks[13], (3, C_FEAT, NUM_CLASSES), jnp.float32)
    b_fc_g = 0.01 * n(ks[14], (3, 1, NUM_CLASSES), jnp.float32)
    w_fc_p = s * n(ks[15], (5, C_RED, NUM_CLASSES), jnp.float32)
    b_fc_p = 0.01 * n(ks[16], (5, 1, NUM_CLASSES), jnp.float32)
    # host-side block-diagonal fusion of the 8 classifiers -> one [CLS_IN, 128] bf16 matmul
    w_cls = jnp.zeros((CLS_IN, CLS_OUT), jnp.float32)
    for i in range(3):
        w_cls = w_cls.at[i * C_FEAT:(i + 1) * C_FEAT,
                         i * NUM_CLASSES:(i + 1) * NUM_CLASSES].set(w_fc_g[i])
    off = 3 * C_FEAT
    for j in range(5):
        w_cls = w_cls.at[off + j * C_RED: off + (j + 1) * C_RED,
                         (3 + j) * NUM_CLASSES:(4 + j) * NUM_CLASSES].set(w_fc_p[j])
    p["w_cls"] = w_cls.astype(jnp.bfloat16)                        # [CLS_IN, CLS_OUT] bf16
    p["b_cls"] = jnp.concatenate(
        [b_fc_g.reshape(3, NUM_CLASSES), b_fc_p.reshape(5, NUM_CLASSES)],
        axis=0).reshape(1, CLS_OUT)                                # [1, CLS_OUT] f32
    return p, ks[17]


if __name__ == "__main__":
    params, kx = init_params(jax.random.PRNGKey(0))
    x = jax.random.normal(kx, (B, 3, H_IN, W_IN), jnp.float32)     # NCHW input

    fwd = jax.jit(forward, static_argnames="training")

    # eval path: feat = normalized cat of all 8 reduced features -> [B, 8*C_RED]
    feat = fwd(x, params, training=False)
    jax.block_until_ready(feat)
    assert feat.shape == (B, NUM_RED * C_RED)
    assert bool(jnp.all(jnp.isfinite(feat)))
    norms = jnp.linalg.norm(feat, axis=1)
    assert bool(jnp.all(jnp.abs(norms - 1.0) < 1e-3))

    # training path: (8 logit tensors, normalized cat of the 3 global features)
    feat_clfy, feat_tr = fwd(x, params, training=True)
    jax.block_until_ready(feat_tr)
    assert feat_tr.shape == (B, 3 * C_RED)
    assert len(feat_clfy) == NUM_RED
    assert all(l.shape == (B, NUM_CLASSES) for l in feat_clfy)
    assert bool(jnp.all(jnp.abs(jnp.linalg.norm(feat_tr, axis=1) - 1.0) < 1e-3))
    assert all(bool(jnp.all(jnp.isfinite(l))) for l in feat_clfy)

    print("KERNEL_OK")
</pallas_src>

<mosaic_0001>
module attributes {stable_mosaic.version = 11 : i64} {
  func.func @mgn_head_kernel(%arg0: memref<2x48x256xbf16, #tpu.memory_space<vmem>>, %arg1: memref<2x192x256xbf16, #tpu.memory_space<vmem>>, %arg2: memref<2x192x256xbf16, #tpu.memory_space<vmem>>, %arg3: memref<8x256x128xbf16, #tpu.memory_space<vmem>>, %arg4: memref<8x1x128xf32, #tpu.memory_space<vmem>>, %arg5: memref<1408x128xbf16, #tpu.memory_space<vmem>>, %arg6: memref<1x128xf32, #tpu.memory_space<vmem>>, %arg7: memref<2x1024xf32, #tpu.memory_space<vmem>>, %arg8: memref<2x384xf32, #tpu.memory_space<vmem>>, %arg9: memref<2x128xf32, #tpu.memory_space<vmem>>) attributes {dimension_semantics = [], scalar_prefetch = 0 : i64, scratch_operands = 0 : i64, tpu.core_type = #tpu.core_type<tc>} {
    %c0 = arith.constant 0 : index
    %c0_0 = arith.constant 0 : index
    %c0_1 = arith.constant 0 : index
    %0 = vector.load %arg0[%c0, %c0_0, %c0_1] : memref<2x48x256xbf16, #tpu.memory_space<vmem>>, vector<2x48x256xbf16>
    %c0_2 = arith.constant 0 : index
    %c0_3 = arith.constant 0 : index
    %c0_4 = arith.constant 0 : index
    %1 = vector.load %arg1[%c0_2, %c0_3, %c0_4] : memref<2x192x256xbf16, #tpu.memory_space<vmem>>, vector<2x192x256xbf16>
    %c0_5 = arith.constant 0 : index
    %c0_6 = arith.constant 0 : index
    %c0_7 = arith.constant 0 : index
    %2 = vector.load %arg2[%c0_5, %c0_6, %c0_7] : memref<2x192x256xbf16, #tpu.memory_space<vmem>>, vector<2x192x256xbf16>
    %cst = arith.constant dense<0xFF80> : vector<2x256xbf16>
    %3 = vector.multi_reduction <maximumf>, %0, %cst [1] : vector<2x48x256xbf16> to vector<2x256xbf16>
    %4 = vector.extract_strided_slice %1 {offsets = [0, 0, 0], sizes = [2, 96, 256], strides = [1, 1, 1]} : vector<2x192x256xbf16> to vector<2x96x256xbf16>
    %cst_8 = arith.constant dense<0xFF80> : vector<2x256xbf16>
    %5 = vector.multi_reduction <maximumf>, %4, %cst_8 [1] : vector<2x96x256xbf16> to vector<2x256xbf16>
    %6 = vector.extract_strided_slice %1 {offsets = [0, 96, 0], sizes = [2, 96, 256], strides = [1, 1, 1]} : vector<2x192x256xbf16> to vector<2x96x256xbf16>
    %cst_9 = arith.constant dense<0xFF80> : vector<2x256xbf16>
    %7 = vector.multi_reduction <maximumf>, %6, %cst_9 [1] : vector<2x96x256xbf16> to vector<2x256xbf16>
    %8 = arith.maximumf %5, %7 : vector<2x256xbf16>
    %9 = vector.extract_strided_slice %2 {offsets = [0, 0, 0], sizes = [2, 64, 256], strides = [1, 1, 1]} : vector<2x192x256xbf16> to vector<2x64x256xbf16>
    %cst_10 = arith.constant dense<0xFF80> : vector<2x256xbf16>
    %10 = vector.multi_reduction <maximumf>, %9, %cst_10 [1] : vector<2x64x256xbf16> to vector<2x256xbf16>
    %11 = vector.extract_strided_slice %2 {offsets = [0, 64, 0], sizes = [2, 64, 256], strides = [1, 1, 1]} : vector<2x192x256xbf16> to vector<2x64x256xbf16>
    %cst_11 = arith.constant dense<0xFF80> : vector<2x256xbf16>
    %12 = vector.multi_reduction <maximumf>, %11, %cst_11 [1] : vector<2x64x256xbf16> to vector<2x256xbf16>
    %13 = vector.extract_strided_slice %2 {offsets = [0, 128, 0], sizes = [2, 64, 256], strides = [1, 1, 1]} : vector<2x192x256xbf16> to vector<2x64x256xbf16>
    %cst_12 = arith.constant dense<0xFF80> : vector<2x256xbf16>
    %14 = vector.multi_reduction <maximumf>, %13, %cst_12 [1] : vector<2x64x256xbf16> to vector<2x256xbf16>
    %15 = arith.maximumf %10, %12 : vector<2x256xbf16>
    %16 = arith.maximumf %15, %14 : vector<2x256xbf16>
    %17 = vector.shape_cast %3 : vector<2x256xbf16> to vector<1x2x256xbf16>
    %18 = vector.shape_cast %8 : vector<2x256xbf16> to vector<1x2x256xbf16>
    %19 = vector.shape_cast %16 : vector<2x256xbf16> to vector<1x2x256xbf16>
    %20 = vector.shape_cast %5 : vector<2x256xbf16> to vector<1x2x256xbf16>
    %21 = vector.shape_cast %7 : vector<2x256xbf16> to vector<1x2x256xbf16>
    %22 = vector.shape_cast %10 : vector<2x256xbf16> to vector<1x2x256xbf16>
    %23 = vector.shape_cast %12 : vector<2x256xbf16> to vector<1x2x256xbf16>
    %24 = vector.shape_cast %14 : vector<2x256xbf16> to vector<1x2x256xbf16>
    %25 = tpu.concatenate %17, %18, %19, %20, %21, %22, %23, %24 in 0 : vector<1x2x256xbf16>, vector<1x2x256xbf16>, vector<1x2x256xbf16>, vector<1x2x256xbf16>, vector<1x2x256xbf16>, vector<1x2x256xbf16>, vector<1x2x256xbf16>, vector<1x2x256xbf16> -> vector<8x2x256xbf16>
    %c0_13 = arith.constant 0 : index
    %c0_14 = arith.constant 0 : index
    %c0_15 = arith.constant 0 : index
    %26 = vector.load %arg3[%c0_13, %c0_14, %c0_15] : memref<8x256x128xbf16, #tpu.memory_space<vmem>>, vector<8x256x128xbf16>
    "tpu.trace_start"() <{level = 10 : i32, message = "gbk,gkn->gbn"}> : () -> ()
    %cst_16 = arith.constant dense<0.000000e+00> : vector<8x2x128xf32>
    %27 = tpu.matmul %25, %26, %cst_16 {dimension_numbers = #tpu.dot_dimension_numbers<[2], [1], [1], [2], [0, 0, 0, 1, 1, 2], [0], [0]>} : vector<8x2x256xbf16>, vector<8x256x128xbf16>, vector<8x2x128xf32> -> vector<8x2x128xf32>
    "tpu.trace_stop"() : () -> ()
    %c0_17 = arith.constant 0 : index
    %c0_18 = arith.constant 0 : index
    %c0_19 = arith.constant 0 : index
    %28 = vector.load %arg4[%c0_17, %c0_18, %c0_19] : memref<8x1x128xf32, #tpu.memory_space<vmem>>, vector<8x1x128xf32>
    %29 = vector.broadcast %28 : vector<8x1x128xf32> to vector<8x2x128xf32>
    %30 = arith.addf %27, %29 : vector<8x2x128xf32>
    %cst_20 = arith.constant 0.000000e+00 : f32
    %31 = vector.broadcast %cst_20 : f32 to vector<8x2x128xf32>
    %32 = arith.maximumf %30, %31 : vector<8x2x128xf32>
    %33 = vector.extract_strided_slice %32 {offsets = [3, 0, 0], sizes = [1, 2, 128], strides = [1, 1, 1]} : vector<8x2x128xf32> to vector<1x2x128xf32>
    %34 = vector.shape_cast %33 : vector<1x2x128xf32> to vector<2x128xf32>
    %35 = arith.truncf %34 : vector<2x128xf32> to vector<2x128xbf16>
    %36 = vector.extract_strided_slice %32 {offsets = [4, 0, 0], sizes = [1, 2, 128], strides = [1, 1, 1]} : vector<8x2x128xf32> to vector<1x2x128xf32>
    %37 = vector.shape_cast %36 : vector<1x2x128xf32> to vector<2x128xf32>
    %38 = arith.truncf %37 : vector<2x128xf32> to vector<2x128xbf16>
    %39 = vector.extract_strided_slice %32 {offsets = [5, 0, 0], sizes = [1, 2, 128], strides = [1, 1, 1]} : vector<8x2x128xf32> to vector<1x2x128xf32>
    %40 = vector.shape_cast %39 : vector<1x2x128xf32> to vector<2x128xf32>
    %41 = arith.truncf %40 : vector<2x128xf32> to vector<2x128xbf16>
    %42 = vector.extract_strided_slice %32 {offsets = [6, 0, 0], sizes = [1, 2, 128], strides = [1, 1, 1]} : vector<8x2x128xf32> to vector<1x2x128xf32>
    %43 = vector.shape_cast %42 : vector<1x2x128xf32> to vector<2x128xf32>
    %44 = arith.truncf %43 : vector<2x128xf32> to vector<2x128xbf16>
    %45 = vector.extract_strided_slice %32 {offsets = [7, 0, 0], sizes = [1, 2, 128], strides = [1, 1, 1]} : vector<8x2x128xf32> to vector<1x2x128xf32>
    %46 = vector.shape_cast %45 : vector<1x2x128xf32> to vector<2x128xf32>
    %47 = arith.truncf %46 : vector<2x128xf32> to vector<2x128xbf16>
    %48 = tpu.concatenate %3, %8, %16, %35, %38, %41, %44, %47 in 1 : vector<2x256xbf16>, vector<2x256xbf16>, vector<2x256xbf16>, vector<2x128xbf16>, vector<2x128xbf16>, vector<2x128xbf16>, vector<2x128xbf16>, vector<2x128xbf16> -> vector<2x1408xbf16>
    %c0_21 = arith.constant 0 : index
    %c0_22 = arith.constant 0 : index
    %49 = vector.load %arg5[%c0_21, %c0_22] : memref<1408x128xbf16, #tpu.memory_space<vmem>>, vector<1408x128xbf16>
    %cst_23 = arith.constant dense<0.000000e+00> : vector<2x128xf32>
    %50 = tpu.matmul %48, %49, %cst_23 {dimension_numbers = #tpu.dot_dimension_numbers<[1], [0], [0], [1], [0, 0, 1, 1], [], []>} : vector<2x1408xbf16>, vector<1408x128xbf16>, vector<2x128xf32> -> vector<2x128xf32>
    %c0_24 = arith.constant 0 : index
    %c0_25 = arith.constant 0 : index
    %51 = vector.load %arg6[%c0_24, %c0_25] : memref<1x128xf32, #tpu.memory_space<vmem>>, vector<1x128xf32>
    %52 = vector.broadcast %51 : vector<1x128xf32> to vector<2x128xf32>
    %53 = arith.addf %50, %52 : vector<2x128xf32>
    %c0_26 = arith.constant 0 : index
    %c0_27 = arith.constant 0 : index
    %54 = vector.load %arg9[%c0_26, %c0_27] : memref<2x128xf32, #tpu.memory_space<vmem>>, vector<2x128xf32>
    tpu.vector_store %arg9[%c0_26, %c0_27], %53 {strides = array<i32>} : memref<2x128xf32, #tpu.memory_space<vmem>>, vector<2x128xf32>,
    %55 = vector.extract_strided_slice %32 {offsets = [0, 0, 0], sizes = [1, 2, 128], strides = [1, 1, 1]} : vector<8x2x128xf32> to vector<1x2x128xf32>
    %56 = vector.shape_cast %55 : vector<1x2x128xf32> to vector<2x128xf32>
    %57 = vector.extract_strided_slice %32 {offsets = [1, 0, 0], sizes = [1, 2, 128], strides = [1, 1, 1]} : vector<8x2x128xf32> to vector<1x2x128xf32>
    %58 = vector.shape_cast %57 : vector<1x2x128xf32> to vector<2x128xf32>
    %59 = vector.extract_strided_slice %32 {offsets = [2, 0, 0], sizes = [1, 2, 128], strides = [1, 1, 1]} : vector<8x2x128xf32> to vector<1x2x128xf32>
    %60 = vector.shape_cast %59 : vector<1x2x128xf32> to vector<2x128xf32>
    %61 = vector.extract_strided_slice %32 {offsets = [3, 0, 0], sizes = [1, 2, 128], strides = [1, 1, 1]} : vector<8x2x128xf32> to vector<1x2x128xf32>
    %62 = vector.shape_cast %61 : vector<1x2x128xf32> to vector<2x128xf32>
    %63 = vector.extract_strided_slice %32 {offsets = [4, 0, 0], sizes = [1, 2, 128], strides = [1, 1, 1]} : vector<8x2x128xf32> to vector<1x2x128xf32>
    %64 = vector.shape_cast %63 : vector<1x2x128xf32> to vector<2x128xf32>
    %65 = vector.extract_strided_slice %32 {offsets = [5, 0, 0], sizes = [1, 2, 128], strides = [1, 1, 1]} : vector<8x2x128xf32> to vector<1x2x128xf32>
    %66 = vector.shape_cast %65 : vector<1x2x128xf32> to vector<2x128xf32>
    %67 = vector.extract_strided_slice %32 {offsets = [6, 0, 0], sizes = [1, 2, 128], strides = [1, 1, 1]} : vector<8x2x128xf32> to vector<1x2x128xf32>
    %68 = vector.shape_cast %67 : vector<1x2x128xf32> to vector<2x128xf32>
    %69 = vector.extract_strided_slice %32 {offsets = [7, 0, 0], sizes = [1, 2, 128], strides = [1, 1, 1]} : vector<8x2x128xf32> to vector<1x2x128xf32>
    %70 = vector.shape_cast %69 : vector<1x2x128xf32> to vector<2x128xf32>
    %71 = tpu.concatenate %56, %58, %60, %62, %64, %66, %68, %70 in 1 : vector<2x128xf32>, vector<2x128xf32>, vector<2x128xf32>, vector<2x128xf32>, vector<2x128xf32>, vector<2x128xf32>, vector<2x128xf32>, vector<2x128xf32> -> vector<2x1024xf32>
    %72 = vector.extract_strided_slice %71 {offsets = [0, 0], sizes = [2, 384], strides = [1, 1]} : vector<2x1024xf32> to vector<2x384xf32>
    %73 = arith.mulf %71, %71 : vector<2x1024xf32>
    %cst_28 = arith.constant dense<0.000000e+00> : vector<2xf32>
    %74 = vector.multi_reduction <add>, %73, %cst_28 [1] : vector<2x1024xf32> to vector<2xf32>
    %75 = vector.shape_cast %74 : vector<2xf32> to vector<2x1xf32>
    %76 = arith.mulf %72, %72 : vector<2x384xf32>
    %cst_29 = arith.constant dense<0.000000e+00> : vector<2xf32>
    %77 = vector.multi_reduction <add>, %76, %cst_29 [1] : vector<2x384xf32> to vector<2xf32>
    %78 = vector.shape_cast %77 : vector<2xf32> to vector<2x1xf32>
    %79 = math.rsqrt %75 : vector<2x1xf32>
    %80 = math.rsqrt %78 : vector<2x1xf32>
    %81 = vector.broadcast %79 : vector<2x1xf32> to vector<2x1024xf32>
    %82 = arith.mulf %71, %81 : vector<2x1024xf32>
    %c0_30 = arith.constant 0 : index
    %c0_31 = arith.constant 0 : index
    %83 = vector.load %arg7[%c0_30, %c0_31] : memref<2x1024xf32, #tpu.memory_space<vmem>>, vector<2x1024xf32>
    tpu.vector_store %arg7[%c0_30, %c0_31], %82 {strides = array<i32>} : memref<2x1024xf32, #tpu.memory_space<vmem>>, vector<2x1024xf32>,
    %84 = vector.broadcast %80 : vector<2x1xf32> to vector<2x384xf32>
    %85 = arith.mulf %72, %84 : vector<2x384xf32>
    %c0_32 = arith.constant 0 : index
    %c0_33 = arith.constant 0 : index
    %86 = vector.load %arg8[%c0_32, %c0_33] : memref<2x384xf32, #tpu.memory_space<vmem>>, vector<2x384xf32>
    tpu.vector_store %arg8[%c0_32, %c0_33], %85 {strides = array<i32>} : memref<2x384xf32, #tpu.memory_space<vmem>>, vector<2x384xf32>,
    return
  }
}

</mosaic_0001>

<llo_original>
// kernel: forward.1
$region0: #{forward.1}
  #allocation0 [shape = 'u32[]', space=smem, size = 0x4, offset = 0x4, fixed_abs, tag = 'smem constant byte address 0x4 - core index']
  #allocation1 [shape = 'u32[144,128]{1,0:T(1,128)}', space=vmem, size = 0x12000, scoped, tag = 'internal scratch']
  %s0 = inlined_call_operand.vmem [shape: bf16[2,48,256], index: 0, kind: input, shape index: {}]
  %s1 = inlined_call_operand.vmem [shape: bf16[2,192,256], index: 1, kind: input, shape index: {}]
  %s2 = inlined_call_operand.vmem [shape: bf16[2,192,256], index: 2, kind: input, shape index: {}]
  %s3 = inlined_call_operand.vmem [shape: bf16[8,256,128], index: 3, kind: input, shape index: {}]
  %s4 = inlined_call_operand.vmem [shape: f32[8,1,128], index: 4, kind: input, shape index: {}]
  %s5 = inlined_call_operand.vmem [shape: bf16[1408,128], index: 5, kind: input, shape index: {}]
  %s6 = inlined_call_operand.vmem [shape: f32[1,128], index: 6, kind: input, shape index: {}]
  %s7 = inlined_call_operand.hbm [shape: f32[2,1024], index: 7, kind: output, shape index: {0}]
  %s8 = inlined_call_operand.hbm [shape: f32[2,384], index: 8, kind: output, shape index: {1}]
  %s9 = inlined_call_operand.hbm [shape: f32[2,128], index: 9, kind: output, shape index: {2}]
  %10 = xla_tuple %s7, %s8, %s9
  %s11 = sld [smem:[#allocation0]]
  $region54: #{forward.1} parent=0
    _
  %s13 = ssub.s32 1, %s11
  %s14 = scalar_select 0, %s13, %s11
  $region1: #{forward.1} parent=0
    #allocation2 [shape = 'u8[8192]{0}', space=vmem, size = 0x2000, scoped, tag = 'output window, operand 0, single buffered']
    #allocation3 [shape = 's32[1]{0}', space=sflag, size = 0x4, scoped, tag = 'scoped memory for forward.1']
    #allocation4 [shape = 'u8[3072]{0}', space=vmem, size = 0xc00, scoped, tag = 'output window, operand 1, single buffered']
    #allocation5 [shape = 's32[1]{0}', space=sflag, size = 0x4, scoped, tag = 'scoped memory for forward.1']
    #allocation6 [shape = 'u8[1024]{0}', space=vmem, size = 0x400, scoped, tag = 'output window, operand 2, single buffered']
    %15 = vsyncpa [#allocation3], 0
    %16 = vsyncpa [#allocation5], 0
    // Predicated region
    $region2: #{forward.1} parent=1 // pred_check
      _
    $region3: #{forward.1} parent=1 // pred_check_branch
      %18 = sbr.rel (0) target = $region5
    $region4: #{forward.1} parent=1 // pred_region
      _
    $region5: #{forward.1} parent=1 // pred_fallthru
      _
    // Predicated region
    $region6: #{forward.1} parent=1 // pred_check
      _
    $region7: #{forward.1} parent=1 // pred_check_branch
      %20 = sbr.rel (0) target = $region9
    $region8: #{forward.1} parent=1 // pred_region
      _
    $region9: #{forward.1} parent=1 // pred_fallthru
      _
    // Predicated region
    $region10: #{forward.1} parent=1 // pred_check
      _
    $region11: #{forward.1} parent=1 // pred_check_branch
      %22 = sbr.rel (0) target = $region13
    $region12: #{forward.1} parent=1 // pred_region
      _
    $region13: #{forward.1} parent=1 // pred_fallthru
      _
    // Predicated region
    $region14: #{forward.1} parent=1 // pred_check
      _
    $region15: #{forward.1} parent=1 // pred_check_branch
      %24 = sbr.rel (0) target = $region17
    $region16: #{forward.1} parent=1 // pred_region
      _
    $region17: #{forward.1} parent=1 // pred_fallthru
      _
    // Predicated region
    $region18: #{forward.1} parent=1 // pred_check
      _
    $region19: #{forward.1} parent=1 // pred_check_branch
      %26 = sbr.rel (0) target = $region21
    $region20: #{forward.1} parent=1 // pred_region
      _
    $region21: #{forward.1} parent=1 // pred_fallthru
      _
    // Predicated region
    $region22: #{forward.1} parent=1 // pred_check
      _
    $region23: #{forward.1} parent=1 // pred_check_branch
      %28 = sbr.rel (0) target = $region25
    $region24: #{forward.1} parent=1 // pred_region
      _
    $region25: #{forward.1} parent=1 // pred_fallthru
      _
    // Predicated region
    $region26: #{forward.1} parent=1 // pred_check
      _
    $region27: #{forward.1} parent=1 // pred_check_branch
      %30 = sbr.rel (0) target = $region29
    $region28: #{forward.1} parent=1 // pred_region
      _
    $region29: #{forward.1} parent=1 // pred_fallthru
      _
    %v32 = vld [vmem:[%s0] sm:$0xff]
    %v33 = vld [vmem:[%s0 + $0x8] sm:$0xff]
    %v34 = vld [vmem:[%s0 + $0x10] sm:$0xff]
    %v35 = vld [vmem:[%s0 + $0x18] sm:$0xff]
    %v36 = vld [vmem:[%s0 + $0x20] sm:$0xff]
    %v37 = vld [vmem:[%s0 + $0x28] sm:$0xff]
    %v38 = vld [vmem:[%s0 + $0x30] sm:$0xff]
    %v39 = vld [vmem:[%s0 + $0x38] sm:$0xff]
    %v40 = vld [vmem:[%s0 + $0x40] sm:$0xff]
    %v41 = vld [vmem:[%s0 + $0x48] sm:$0xff]
    %v42 = vld [vmem:[%s0 + $0x50] sm:$0xff]
    %v43 = vld [vmem:[%s0 + $0x58] sm:$0xff]
    %v44 = vld [vmem:[%s1] sm:$0xff]
    %v45 = vld [vmem:[%s1 + $0x8] sm:$0xff]
    %v46 = vld [vmem:[%s1 + $0x10] sm:$0xff]
    %v47 = vld [vmem:[%s1 + $0x18] sm:$0xff]
    %v48 = vld [vmem:[%s1 + $0x20] sm:$0xff]
    %v49 = vld [vmem:[%s1 + $0x28] sm:$0xff]
    %v50 = vld [vmem:[%s1 + $0x30] sm:$0xff]
    %v51 = vld [vmem:[%s1 + $0x38] sm:$0xff]
    %v52 = vld [vmem:[%s1 + $0x40] sm:$0xff]
    %v53 = vld [vmem:[%s1 + $0x48] sm:$0xff]
    %v54 = vld [vmem:[%s1 + $0x50] sm:$0xff]
    %v55 = vld [vmem:[%s1 + $0x58] sm:$0xff]
    %v56 = vld [vmem:[%s1 + $0x60] sm:$0xff]
    %v57 = vld [vmem:[%s1 + $0x68] sm:$0xff]
    %v58 = vld [vmem:[%s1 + $0x70] sm:$0xff]
    %v59 = vld [vmem:[%s1 + $0x78] sm:$0xff]
    %v60 = vld [vmem:[%s1 + $0x80] sm:$0xff]
    %v61 = vld [vmem:[%s1 + $0x88] sm:$0xff]
    %v62 = vld [vmem:[%s1 + $0x90] sm:$0xff]
    %v63 = vld [vmem:[%s1 + $0x98] sm:$0xff]
    %v64 = vld [vmem:[%s1 + $0xa0] sm:$0xff]
    %v65 = vld [vmem:[%s1 + $0xa8] sm:$0xff]
    %v66 = vld [vmem:[%s1 + $0xb0] sm:$0xff]
    %v67 = vld [vmem:[%s1 + $0xb8] sm:$0xff]
    %v68 = vld [vmem:[%s1 + $0xc0] sm:$0xff]
    %v69 = vld [vmem:[%s1 + $0xc8] sm:$0xff]
    %v70 = vld [vmem:[%s1 + $0xd0] sm:$0xff]
    %v71 = vld [vmem:[%s1 + $0xd8] sm:$0xff]
    %v72 = vld [vmem:[%s1 + $0xe0] sm:$0xff]
    %v73 = vld [vmem:[%s1 + $0xe8] sm:$0xff]
    %v74 = vld [vmem:[%s1 + $0xf0] sm:$0xff]
    %v75 = vld [vmem:[%s1 + $0xf8] sm:$0xff]
    %v76 = vld [vmem:[%s1 + $0x100] sm:$0xff]
    %v77 = vld [vmem:[%s1 + $0x108] sm:$0xff]
    %v78 = vld [vmem:[%s1 + $0x110] sm:$0xff]
    %v79 = vld [vmem:[%s1 + $0x118] sm:$0xff]
    %v80 = vld [vmem:[%s1 + $0x120] sm:$0xff]
    %v81 = vld [vmem:[%s1 + $0x128] sm:$0xff]
    %v82 = vld [vmem:[%s1 + $0x130] sm:$0xff]
    %v83 = vld [vmem:[%s1 + $0x138] sm:$0xff]
    %v84 = vld [vmem:[%s1 + $0x140] sm:$0xff]
    %v85 = vld [vmem:[%s1 + $0x148] sm:$0xff]
    %v86 = vld [vmem:[%s1 + $0x150] sm:$0xff]
    %v87 = vld [vmem:[%s1 + $0x158] sm:$0xff]
    %v88 = vld [vmem:[%s1 + $0x160] sm:$0xff]
    %v89 = vld [vmem:[%s1 + $0x168] sm:$0xff]
    %v90 = vld [vmem:[%s1 + $0x170] sm:$0xff]
    %v91 = vld [vmem:[%s1 + $0x178] sm:$0xff]
    %v92 = vld [vmem:[%s2] sm:$0xff]
    %v93 = vld [vmem:[%s2 + $0x8] sm:$0xff]
    %v94 = vld [vmem:[%s2 + $0x10] sm:$0xff]
    %v95 = vld [vmem:[%s2 + $0x18] sm:$0xff]
    %v96 = vld [vmem:[%s2 + $0x20] sm:$0xff]
    %v97 = vld [vmem:[%s2 + $0x28] sm:$0xff]
    %v98 = vld [vmem:[%s2 + $0x30] sm:$0xff]
    %v99 = vld [vmem:[%s2 + $0x38] sm:$0xff]
    %v100 = vld [vmem:[%s2 + $0x40] sm:$0xff]
    %v101 = vld [vmem:[%s2 + $0x48] sm:$0xff]
    %v102 = vld [vmem:[%s2 + $0x50] sm:$0xff]
    %v103 = vld [vmem:[%s2 + $0x58] sm:$0xff]
    %v104 = vld [vmem:[%s2 + $0x60] sm:$0xff]
    %v105 = vld [vmem:[%s2 + $0x68] sm:$0xff]
    %v106 = vld [vmem:[%s2 + $0x70] sm:$0xff]
    %v107 = vld [vmem:[%s2 + $0x78] sm:$0xff]
    %v108 = vld [vmem:[%s2 + $0x80] sm:$0xff]
    %v109 = vld [vmem:[%s2 + $0x88] sm:$0xff]
    %v110 = vld [vmem:[%s2 + $0x90] sm:$0xff]
    %v111 = vld [vmem:[%s2 + $0x98] sm:$0xff]
    %v112 = vld [vmem:[%s2 + $0xa0] sm:$0xff]
    %v113 = vld [vmem:[%s2 + $0xa8] sm:$0xff]
    %v114 = vld [vmem:[%s2 + $0xb0] sm:$0xff]
    %v115 = vld [vmem:[%s2 + $0xb8] sm:$0xff]
    %v116 = vld [vmem:[%s2 + $0xc0] sm:$0xff]
    %v117 = vld [vmem:[%s2 + $0xc8] sm:$0xff]
    %v118 = vld [vmem:[%s2 + $0xd0] sm:$0xff]
    %v119 = vld [vmem:[%s2 + $0xd8] sm:$0xff]
    %v120 = vld [vmem:[%s2 + $0xe0] sm:$0xff]
    %v121 = vld [vmem:[%s2 + $0xe8] sm:$0xff]
    %v122 = vld [vmem:[%s2 + $0xf0] sm:$0xff]
    %v123 = vld [vmem:[%s2 + $0xf8] sm:$0xff]
    %v124 = vld [vmem:[%s2 + $0x100] sm:$0xff]
    %v125 = vld [vmem:[%s2 + $0x108] sm:$0xff]
    %v126 = vld [vmem:[%s2 + $0x110] sm:$0xff]
    %v127 = vld [vmem:[%s2 + $0x118] sm:$0xff]
    %v128 = vld [vmem:[%s2 + $0x120] sm:$0xff]
    %v129 = vld [vmem:[%s2 + $0x128] sm:$0xff]
    %v130 = vld [vmem:[%s2 + $0x130] sm:$0xff]
    %v131 = vld [vmem:[%s2 + $0x138] sm:$0xff]
    %v132 = vld [vmem:[%s2 + $0x140] sm:$0xff]
    %v133 = vld [vmem:[%s2 + $0x148] sm:$0xff]
    %v134 = vld [vmem:[%s2 + $0x150] sm:$0xff]
    %v135 = vld [vmem:[%s2 + $0x158] sm:$0xff]
    %v136 = vld [vmem:[%s2 + $0x160] sm:$0xff]
    %v137 = vld [vmem:[%s2 + $0x168] sm:$0xff]
    %v138 = vld [vmem:[%s2 + $0x170] sm:$0xff]
    %v139 = vld [vmem:[%s2 + $0x178] sm:$0xff]
    %v152 = vunpack.c.l.b16 %v32
    %v153 = vunpack.c.h.b16 %v32
    %v154 = vunpack.c.l.b16 %v33
    %v155 = vunpack.c.h.b16 %v33
    %v156 = vunpack.c.l.b16 %v34
    %v157 = vunpack.c.h.b16 %v34
    %v158 = vunpack.c.l.b16 %v35
    %v159 = vunpack.c.h.b16 %v35
    %v160 = vunpack.c.l.b16 %v36
    %v161 = vunpack.c.h.b16 %v36
    %v162 = vunpack.c.l.b16 %v37
    %v163 = vunpack.c.h.b16 %v37
    %v164 = vunpack.c.l.b16 %v38
    %v165 = vunpack.c.h.b16 %v38
    %v166 = vunpack.c.l.b16 %v39
    %v167 = vunpack.c.h.b16 %v39
    %v168 = vunpack.c.l.b16 %v40
    %v169 = vunpack.c.h.b16 %v40
    %v170 = vunpack.c.l.b16 %v41
    %v171 = vunpack.c.h.b16 %v41
    %v172 = vunpack.c.l.b16 %v42
    %v173 = vunpack.c.h.b16 %v42
    %v174 = vunpack.c.l.b16 %v43
    %v175 = vunpack.c.h.b16 %v43
    %v176 = vpack.c.b16 %v154, %v152
    %v177 = vpack.c.b16 %v155, %v153
    %v178 = vpack.c.b16 %v158, %v156
    %v179 = vpack.c.b16 %v159, %v157
    %v180 = vpack.c.b16 %v162, %v160
    %v181 = vpack.c.b16 %v163, %v161
    %v182 = vpack.c.b16 %v166, %v164
    %v183 = vpack.c.b16 %v167, %v165
    %v184 = vpack.c.b16 %v170, %v168
    %v185 = vpack.c.b16 %v171, %v169
    %v186 = vpack.c.b16 %v174, %v172
    %v187 = vpack.c.b16 %v175, %v173
    %v200 = vmax.bf16 %v176, %v178
    %v201 = vmax.bf16 %v200, %v180
    %v202 = vunpack.i.l.bf16 %v201
    %v203 = vunpack.i.h.bf16 %v201
    %v204 = vmax.f32 %v202, %v203
    %v205 = vrot.slane %v204, 4
    %v206 = vmax.f32 %v204, %v205
    %v207 = vrot.slane %v206, 2
    %v208 = vmax.f32 %v206, %v207
    %v209 = vrot.slane %v208, 1
    %v210 = vmax.f32 %v208, %v209
    %v211 = vpack.i.bf16 %v210, %v210
    %v212 = vmax.bf16 %v177, %v179
    %v213 = vmax.bf16 %v212, %v181
    %v214 = vunpack.i.l.bf16 %v213
    %v215 = vunpack.i.h.bf16 %v213
    %v216 = vmax.f32 %v214, %v215
    %v217 = vrot.slane %v216, 4
    %v218 = vmax.f32 %v216, %v217
    %v219 = vrot.slane %v218, 2
    %v220 = vmax.f32 %v218, %v219
    %v221 = vrot.slane %v220, 1
    %v222 = vmax.f32 %v220, %v221
    %v223 = vpack.i.bf16 %v222, %v222
    %v224 = vmax.bf16 %v182, %v184
    %v225 = vmax.bf16 %v224, %v186
    %v226 = vunpack.i.l.bf16 %v225
    %v227 = vunpack.i.h.bf16 %v225
    %v228 = vmax.f32 %v226, %v227
    %v229 = vrot.slane %v228, 4
    %v230 = vmax.f32 %v228, %v229
    %v231 = vrot.slane %v230, 2
    %v232 = vmax.f32 %v230, %v231
    %v233 = vrot.slane %v232, 1
    %v234 = vmax.f32 %v232, %v233
    %v235 = vpack.i.bf16 %v234, %v234
    %v236 = vmax.bf16 %v183, %v185
    %v237 = vmax.bf16 %v236, %v187
    %v238 = vunpack.i.l.bf16 %v237
    %v239 = vunpack.i.h.bf16 %v237
    %v240 = vmax.f32 %v238, %v239
    %v241 = vrot.slane %v240, 4
    %v242 = vmax.f32 %v240, %v241
    %v243 = vrot.slane %v242, 2
    %v244 = vmax.f32 %v242, %v243
    %v245 = vrot.slane %v244, 1
    %v246 = vmax.f32 %v244, %v245
    %v247 = vpack.i.bf16 %v246, %v246
    %v272 = vunpack.c.l.b16 %v44
    %v273 = vunpack.c.h.b16 %v44
    %v274 = vunpack.c.l.b16 %v45
    %v275 = vunpack.c.h.b16 %v45
    %v276 = vunpack.c.l.b16 %v46
    %v277 = vunpack.c.h.b16 %v46
    %v278 = vunpack.c.l.b16 %v47
    %v279 = vunpack.c.h.b16 %v47
    %v280 = vunpack.c.l.b16 %v48
    %v281 = vunpack.c.h.b16 %v48
    %v282 = vunpack.c.l.b16 %v49
    %v283 = vunpack.c.h.b16 %v49
    %v284 = vunpack.c.l.b16 %v50
    %v285 = vunpack.c.h.b16 %v50
    %v286 = vunpack.c.l.b16 %v51
    %v287 = vunpack.c.h.b16 %v51
    %v288 = vunpack.c.l.b16 %v52
    %v289 = vunpack.c.h.b16 %v52
    %v290 = vunpack.c.l.b16 %v53
    %v291 = vunpack.c.h.b16 %v53
    %v292 = vunpack.c.l.b16 %v54
    %v293 = vunpack.c.h.b16 %v54
    %v294 = vunpack.c.l.b16 %v55
    %v295 = vunpack.c.h.b16 %v55
    %v296 = vunpack.c.l.b16 %v68
    %v297 = vunpack.c.h.b16 %v68
    %v298 = vunpack.c.l.b16 %v69
    %v299 = vunpack.c.h.b16 %v69
    %v300 = vunpack.c.l.b16 %v70
    %v301 = vunpack.c.h.b16 %v70
    %v302 = vunpack.c.l.b16 %v71
    %v303 = vunpack.c.h.b16 %v71
    %v304 = vunpack.c.l.b16 %v72
    %v305 = vunpack.c.h.b16 %v72
    %v306 = vunpack.c.l.b16 %v73
    %v307 = vunpack.c.h.b16 %v73
    %v308 = vunpack.c.l.b16 %v74
    %v309 = vunpack.c.h.b16 %v74
    %v310 = vunpack.c.l.b16 %v75
    %v311 = vunpack.c.h.b16 %v75
    %v312 = vunpack.c.l.b16 %v76
    %v313 = vunpack.c.h.b16 %v76
    %v314 = vunpack.c.l.b16 %v77
    %v315 = vunpack.c.h.b16 %v77
    %v316 = vunpack.c.l.b16 %v78
    %v317 = vunpack.c.h.b16 %v78
    %v318 = vunpack.c.l.b16 %v79
    %v319 = vunpack.c.h.b16 %v79
    %v320 = vpack.c.b16 %v274, %v272
    %v321 = vpack.c.b16 %v275, %v273
    %v322 = vpack.c.b16 %v278, %v276
    %v323 = vpack.c.b16 %v279, %v277
    %v324 = vpack.c.b16 %v282, %v280
    %v325 = vpack.c.b16 %v283, %v281
    %v326 = vpack.c.b16 %v286, %v284
    %v327 = vpack.c.b16 %v287, %v285
    %v328 = vpack.c.b16 %v290, %v288
    %v329 = vpack.c.b16 %v291, %v289
    %v330 = vpack.c.b16 %v294, %v292
    %v331 = vpack.c.b16 %v295, %v293
    %v332 = vpack.c.b16 %v298, %v296
    %v333 = vpack.c.b16 %v299, %v297
    %v334 = vpack.c.b16 %v302, %v300
    %v335 = vpack.c.b16 %v303, %v301
    %v336 = vpack.c.b16 %v306, %v304
    %v337 = vpack.c.b16 %v307, %v305
    %v338 = vpack.c.b16 %v310, %v308
    %v339 = vpack.c.b16 %v311, %v309
    %v340 = vpack.c.b16 %v314, %v312
    %v341 = vpack.c.b16 %v315, %v313
    %v342 = vpack.c.b16 %v318, %v316
    %v343 = vpack.c.b16 %v319, %v317
    %v368 = vmax.bf16 %v320, %v322
    %v369 = vmax.bf16 %v368, %v324
    %v370 = vmax.bf16 %v369, %v326
    %v371 = vmax.bf16 %v370, %v328
    %v372 = vmax.bf16 %v371, %v330
    %v373 = vunpack.i.l.bf16 %v372
    %v374 = vunpack.i.h.bf16 %v372
    %v375 = vmax.f32 %v373, %v374
    %v376 = vrot.slane %v375, 4
    %v377 = vmax.f32 %v375, %v376
    %v378 = vrot.slane %v377, 2
    %v379 = vmax.f32 %v377, %v378
    %v380 = vrot.slane %v379, 1
    %v381 = vmax.f32 %v379, %v380
    %v382 = vpack.i.bf16 %v381, %v381
    %v383 = vmax.bf16 %v321, %v323
    %v384 = vmax.bf16 %v383, %v325
    %v385 = vmax.bf16 %v384, %v327
    %v386 = vmax.bf16 %v385, %v329
    %v387 = vmax.bf16 %v386, %v331
    %v388 = vunpack.i.l.bf16 %v387
    %v389 = vunpack.i.h.bf16 %v387
    %v390 = vmax.f32 %v388, %v389
    %v391 = vrot.slane %v390, 4
    %v392 = vmax.f32 %v390, %v391
    %v393 = vrot.slane %v392, 2
    %v394 = vmax.f32 %v392, %v393
    %v395 = vrot.slane %v394, 1
    %v396 = vmax.f32 %v394, %v395
    %v397 = vpack.i.bf16 %v396, %v396
    %v398 = vmax.bf16 %v332, %v334
    %v399 = vmax.bf16 %v398, %v336
    %v400 = vmax.bf16 %v399, %v338
    %v401 = vmax.bf16 %v400, %v340
    %v402 = vmax.bf16 %v401, %v342
    %v403 = vunpack.i.l.bf16 %v402
    %v404 = vunpack.i.h.bf16 %v402
    %v405 = vmax.f32 %v403, %v404
    %v406 = vrot.slane %v405, 4
    %v407 = vmax.f32 %v405, %v406
    %v408 = vrot.slane %v407, 2
    %v409 = vmax.f32 %v407, %v408
    %v410 = vrot.slane %v409, 1
    %v411 = vmax.f32 %v409, %v410
    %v412 = vpack.i.bf16 %v411, %v411
    %v413 = vmax.bf16 %v333, %v335
    %v414 = vmax.bf16 %v413, %v337
    %v415 = vmax.bf16 %v414, %v339
    %v416 = vmax.bf16 %v415, %v341
    %v417 = vmax.bf16 %v416, %v343
    %v418 = vunpack.i.l.bf16 %v417
    %v419 = vunpack.i.h.bf16 %v417
    %v420 = vmax.f32 %v418, %v419
    %v421 = vrot.slane %v420, 4
    %v422 = vmax.f32 %v420, %v421
    %v423 = vrot.slane %v422, 2
    %v424 = vmax.f32 %v422, %v423
    %v425 = vrot.slane %v424, 1
    %v426 = vmax.f32 %v424, %v425
    %v427 = vpack.i.bf16 %v426, %v426
    %v452 = vunpack.c.l.b16 %v56
    %v453 = vunpack.c.h.b16 %v56
    %v454 = vunpack.c.l.b16 %v57
    %v455 = vunpack.c.h.b16 %v57
    %v456 = vunpack.c.l.b16 %v58
    %v457 = vunpack.c.h.b16 %v58
    %v458 = vunpack.c.l.b16 %v59
    %v459 = vunpack.c.h.b16 %v59
    %v460 = vunpack.c.l.b16 %v60
    %v461 = vunpack.c.h.b16 %v60
    %v462 = vunpack.c.l.b16 %v61
    %v463 = vunpack.c.h.b16 %v61
    %v464 = vunpack.c.l.b16 %v62
    %v465 = vunpack.c.h.b16 %v62
    %v466 = vunpack.c.l.b16 %v63
    %v467 = vunpack.c.h.b16 %v63
    %v468 = vunpack.c.l.b16 %v64
    %v469 = vunpack.c.h.b16 %v64
    %v470 = vunpack.c.l.b16 %v65
    %v471 = vunpack.c.h.b16 %v65
    %v472 = vunpack.c.l.b16 %v66
    %v473 = vunpack.c.h.b16 %v66
    %v474 = vunpack.c.l.b16 %v67
    %v475 = vunpack.c.h.b16 %v67
    %v476 = vunpack.c.l.b16 %v80
    %v477 = vunpack.c.h.b16 %v80
    %v478 = vunpack.c.l.b16 %v81
    %v479 = vunpack.c.h.b16 %v81
    %v480 = vunpack.c.l.b16 %v82
    %v481 = vunpack.c.h.b16 %v82
    %v482 = vunpack.c.l.b16 %v83
    %v483 = vunpack.c.h.b16 %v83
    %v484 = vunpack.c.l.b16 %v84
    %v485 = vunpack.c.h.b16 %v84
    %v486 = vunpack.c.l.b16 %v85
    %v487 = vunpack.c.h.b16 %v85
    %v488 = vunpack.c.l.b16 %v86
    %v489 = vunpack.c.h.b16 %v86
    %v490 = vunpack.c.l.b16 %v87
    %v491 = vunpack.c.h.b16 %v87
    %v492 = vunpack.c.l.b16 %v88
    %v493 = vunpack.c.h.b16 %v88
    %v494 = vunpack.c.l.b16 %v89
    %v495 = vunpack.c.h.b16 %v89
    %v496 = vunpack.c.l.b16 %v90
    %v497 = vunpack.c.h.b16 %v90
    %v498 = vunpack.c.l.b16 %v91
    %v499 = vunpack.c.h.b16 %v91
    %v500 = vpack.c.b16 %v454, %v452
    %v501 = vpack.c.b16 %v455, %v453
    %v502 = vpack.c.b16 %v458, %v456
    %v503 = vpack.c.b16 %v459, %v457
    %v504 = vpack.c.b16 %v462, %v460
    %v505 = vpack.c.b16 %v463, %v461
    %v506 = vpack.c.b16 %v466, %v464
    %v507 = vpack.c.b16 %v467, %v465
    %v508 = vpack.c.b16 %v470, %v468
    %v509 = vpack.c.b16 %v471, %v469
    %v510 = vpack.c.b16 %v474, %v472
    %v511 = vpack.c.b16 %v475, %v473
    %v512 = vpack.c.b16 %v478, %v476
    %v513 = vpack.c.b16 %v479, %v477
    %v514 = vpack.c.b16 %v482, %v480
    %v515 = vpack.c.b16 %v483, %v481
    %v516 = vpack.c.b16 %v486, %v484
    %v517 = vpack.c.b16 %v487, %v485
    %v518 = vpack.c.b16 %v490, %v488
    %v519 = vpack.c.b16 %v491, %v489
    %v520 = vpack.c.b16 %v494, %v492
    %v521 = vpack.c.b16 %v495, %v493
    %v522 = vpack.c.b16 %v498, %v496
    %v523 = vpack.c.b16 %v499, %v497
    %v548 = vmax.bf16 %v500, %v502
    %v549 = vmax.bf16 %v548, %v504
    %v550 = vmax.bf16 %v549, %v506
    %v551 = vmax.bf16 %v550, %v508
    %v552 = vmax.bf16 %v551, %v510
    %v553 = vunpack.i.l.bf16 %v552
    %v554 = vunpack.i.h.bf16 %v552
    %v555 = vmax.f32 %v553, %v554
    %v556 = vrot.slane %v555, 4
    %v557 = vmax.f32 %v555, %v556
    %v558 = vrot.slane %v557, 2
    %v559 = vmax.f32 %v557, %v558
    %v560 = vrot.slane %v559, 1
    %v561 = vmax.f32 %v559, %v560
    %v562 = vpack.i.bf16 %v561, %v561
    %v563 = vmax.bf16 %v501, %v503
    %v564 = vmax.bf16 %v563, %v505
    %v565 = vmax.bf16 %v564, %v507
    %v566 = vmax.bf16 %v565, %v509
    %v567 = vmax.bf16 %v566, %v511
    %v568 = vunpack.i.l.bf16 %v567
    %v569 = vunpack.i.h.bf16 %v567
    %v570 = vmax.f32 %v568, %v569
    %v571 = vrot.slane %v570, 4
    %v572 = vmax.f32 %v570, %v571
    %v573 = vrot.slane %v572, 2
    %v574 = vmax.f32 %v572, %v573
    %v575 = vrot.slane %v574, 1
    %v576 = vmax.f32 %v574, %v575
    %v577 = vpack.i.bf16 %v576, %v576
    %v578 = vmax.bf16 %v512, %v514
    %v579 = vmax.bf16 %v578, %v516
    %v580 = vmax.bf16 %v579, %v518
    %v581 = vmax.bf16 %v580, %v520
    %v582 = vmax.bf16 %v581, %v522
    %v583 = vunpack.i.l.bf16 %v582
    %v584 = vunpack.i.h.bf16 %v582
    %v585 = vmax.f32 %v583, %v584
    %v586 = vrot.slane %v585, 4
    %v587 = vmax.f32 %v585, %v586
    %v588 = vrot.slane %v587, 2
    %v589 = vmax.f32 %v587, %v588
    %v590 = vrot.slane %v589, 1
    %v591 = vmax.f32 %v589, %v590
    %v592 = vpack.i.bf16 %v591, %v591
    %v593 = vmax.bf16 %v513, %v515
    %v594 = vmax.bf16 %v593, %v517
    %v595 = vmax.bf16 %v594, %v519
    %v596 = vmax.bf16 %v595, %v521
    %v597 = vmax.bf16 %v596, %v523
    %v598 = vunpack.i.l.bf16 %v597
    %v599 = vunpack.i.h.bf16 %v597
    %v600 = vmax.f32 %v598, %v599
    %v601 = vrot.slane %v600, 4
    %v602 = vmax.f32 %v600, %v601
    %v603 = vrot.slane %v602, 2
    %v604 = vmax.f32 %v602, %v603
    %v605 = vrot.slane %v604, 1
    %v606 = vmax.f32 %v604, %v605
    %v607 = vpack.i.bf16 %v606, %v606
    %v608 = vmax.bf16 %v382, %v562
    %v609 = vmax.bf16 %v397, %v577
    %v610 = vmax.bf16 %v412, %v592
    %v611 = vmax.bf16 %v427, %v607
    %v628 = vunpack.c.l.b16 %v92
    %v629 = vunpack.c.h.b16 %v92
    %v630 = vunpack.c.l.b16 %v93
    %v631 = vunpack.c.h.b16 %v93
    %v632 = vunpack.c.l.b16 %v94
    %v633 = vunpack.c.h.b16 %v94
    %v634 = vunpack.c.l.b16 %v95
    %v635 = vunpack.c.h.b16 %v95
    %v636 = vunpack.c.l.b16 %v96
    %v637 = vunpack.c.h.b16 %v96
    %v638 = vunpack.c.l.b16 %v97
    %v639 = vunpack.c.h.b16 %v97
    %v640 = vunpack.c.l.b16 %v98
    %v641 = vunpack.c.h.b16 %v98
    %v642 = vunpack.c.l.b16 %v99
    %v643 = vunpack.c.h.b16 %v99
    %v644 = vunpack.c.l.b16 %v116
    %v645 = vunpack.c.h.b16 %v116
    %v646 = vunpack.c.l.b16 %v117
    %v647 = vunpack.c.h.b16 %v117
    %v648 = vunpack.c.l.b16 %v118
    %v649 = vunpack.c.h.b16 %v118
    %v650 = vunpack.c.l.b16 %v119
    %v651 = vunpack.c.h.b16 %v119
    %v652 = vunpack.c.l.b16 %v120
    %v653 = vunpack.c.h.b16 %v120
    %v654 = vunpack.c.l.b16 %v121
    %v655 = vunpack.c.h.b16 %v121
    %v656 = vunpack.c.l.b16 %v122
    %v657 = vunpack.c.h.b16 %v122
    %v658 = vunpack.c.l.b16 %v123
    %v659 = vunpack.c.h.b16 %v123
    %v660 = vpack.c.b16 %v630, %v628
    %v661 = vpack.c.b16 %v631, %v629
    %v662 = vpack.c.b16 %v634, %v632
    %v663 = vpack.c.b16 %v635, %v633
    %v664 = vpack.c.b16 %v638, %v636
    %v665 = vpack.c.b16 %v639, %v637
    %v666 = vpack.c.b16 %v642, %v640
    %v667 = vpack.c.b16 %v643, %v641
    %v668 = vpack.c.b16 %v646, %v644
    %v669 = vpack.c.b16 %v647, %v645
    %v670 = vpack.c.b16 %v650, %v648
    %v671 = vpack.c.b16 %v651, %v649
    %v672 = vpack.c.b16 %v654, %v652
    %v673 = vpack.c.b16 %v655, %v653
    %v674 = vpack.c.b16 %v658, %v656
    %v675 = vpack.c.b16 %v659, %v657
    %v692 = vmax.bf16 %v660, %v662
    %v693 = vmax.bf16 %v692, %v664
    %v694 = vmax.bf16 %v693, %v666
    %v695 = vunpack.i.l.bf16 %v694
    %v696 = vunpack.i.h.bf16 %v694
    %v697 = vmax.f32 %v695, %v696
    %v698 = vrot.slane %v697, 4
    %v699 = vmax.f32 %v697, %v698
    %v700 = vrot.slane %v699, 2
    %v701 = vmax.f32 %v699, %v700
    %v702 = vrot.slane %v701, 1
    %v703 = vmax.f32 %v701, %v702
    %v704 = vpack.i.bf16 %v703, %v703
    %v705 = vmax.bf16 %v661, %v663
    %v706 = vmax.bf16 %v705, %v665
    %v707 = vmax.bf16 %v706, %v667
    %v708 = vunpack.i.l.bf16 %v707
    %v709 = vunpack.i.h.bf16 %v707
    %v710 = vmax.f32 %v708, %v709
    %v711 = vrot.slane %v710, 4
    %v712 = vmax.f32 %v710, %v711
    %v713 = vrot.slane %v712, 2
    %v714 = vmax.f32 %v712, %v713
    %v715 = vrot.slane %v714, 1
    %v716 = vmax.f32 %v714, %v715
    %v717 = vpack.i.bf16 %v716, %v716
    %v718 = vmax.bf16 %v668, %v670
    %v719 = vmax.bf16 %v718, %v672
    %v720 = vmax.bf16 %v719, %v674
    %v721 = vunpack.i.l.bf16 %v720
    %v722 = vunpack.i.h.bf16 %v720
    %v723 = vmax.f32 %v721, %v722
    %v724 = vrot.slane %v723, 4
    %v725 = vmax.f32 %v723, %v724
    %v726 = vrot.slane %v725, 2
    %v727 = vmax.f32 %v725, %v726
    %v728 = vrot.slane %v727, 1
    %v729 = vmax.f32 %v727, %v728
    %v730 = vpack.i.bf16 %v729, %v729
    %v731 = vmax.bf16 %v669, %v671
    %v732 = vmax.bf16 %v731, %v673
    %v733 = vmax.bf16 %v732, %v675
    %v734 = vunpack.i.l.bf16 %v733
    %v735 = vunpack.i.h.bf16 %v733
    %v736 = vmax.f32 %v734, %v735
    %v737 = vrot.slane %v736, 4
    %v738 = vmax.f32 %v736, %v737
    %v739 = vrot.slane %v738, 2
    %v740 = vmax.f32 %v738, %v739
    %v741 = vrot.slane %v740, 1
    %v742 = vmax.f32 %v740, %v741
    %v743 = vpack.i.bf16 %v742, %v742
    %v760 = vunpack.c.l.b16 %v100
    %v761 = vunpack.c.h.b16 %v100
    %v762 = vunpack.c.l.b16 %v101
    %v763 = vunpack.c.h.b16 %v101
    %v764 = vunpack.c.l.b16 %v102
    %v765 = vunpack.c.h.b16 %v102
    %v766 = vunpack.c.l.b16 %v103
    %v767 = vunpack.c.h.b16 %v103
    %v768 = vunpack.c.l.b16 %v104
    %v769 = vunpack.c.h.b16 %v104
    %v770 = vunpack.c.l.b16 %v105
    %v771 = vunpack.c.h.b16 %v105
    %v772 = vunpack.c.l.b16 %v106
    %v773 = vunpack.c.h.b16 %v106
    %v774 = vunpack.c.l.b16 %v107
    %v775 = vunpack.c.h.b16 %v107
    %v776 = vunpack.c.l.b16 %v124
    %v777 = vunpack.c.h.b16 %v124
    %v778 = vunpack.c.l.b16 %v125
    %v779 = vunpack.c.h.b16 %v125
    %v780 = vunpack.c.l.b16 %v126
    %v781 = vunpack.c.h.b16 %v126
    %v782 = vunpack.c.l.b16 %v127
    %v783 = vunpack.c.h.b16 %v127
    %v784 = vunpack.c.l.b16 %v128
    %v785 = vunpack.c.h.b16 %v128
    %v786 = vunpack.c.l.b16 %v129
    %v787 = vunpack.c.h.b16 %v129
    %v788 = vunpack.c.l.b16 %v130
    %v789 = vunpack.c.h.b16 %v130
    %v790 = vunpack.c.l.b16 %v131
    %v791 = vunpack.c.h.b16 %v131
    %v792 = vpack.c.b16 %v762, %v760
    %v793 = vpack.c.b16 %v763, %v761
    %v794 = vpack.c.b16 %v766, %v764
    %v795 = vpack.c.b16 %v767, %v765
    %v796 = vpack.c.b16 %v770, %v768
    %v797 = vpack.c.b16 %v771, %v769
    %v798 = vpack.c.b16 %v774, %v772
    %v799 = vpack.c.b16 %v775, %v773
    %v800 = vpack.c.b16 %v778, %v776
    %v801 = vpack.c.b16 %v779, %v777
    %v802 = vpack.c.b16 %v782, %v780
    %v803 = vpack.c.b16 %v783, %v781
    %v804 = vpack.c.b16 %v786, %v784
    %v805 = vpack.c.b16 %v787, %v785
    %v806 = vpack.c.b16 %v790, %v788
    %v807 = vpack.c.b16 %v791, %v789
    %v824 = vmax.bf16 %v792, %v794
    %v825 = vmax.bf16 %v824, %v796
    %v826 = vmax.bf16 %v825, %v798
    %v827 = vunpack.i.l.bf16 %v826
    %v828 = vunpack.i.h.bf16 %v826
    %v829 = vmax.f32 %v827, %v828
    %v830 = vrot.slane %v829, 4
    %v831 = vmax.f32 %v829, %v830
    %v832 = vrot.slane %v831, 2
    %v833 = vmax.f32 %v831, %v832
    %v834 = vrot.slane %v833, 1
    %v835 = vmax.f32 %v833, %v834
    %v836 = vpack.i.bf16 %v835, %v835
    %v837 = vmax.bf16 %v793, %v795
    %v838 = vmax.bf16 %v837, %v797
    %v839 = vmax.bf16 %v838, %v799
    %v840 = vunpack.i.l.bf16 %v839
    %v841 = vunpack.i.h.bf16 %v839
    %v842 = vmax.f32 %v840, %v841
    %v843 = vrot.slane %v842, 4
    %v844 = vmax.f32 %v842, %v843
    %v845 = vrot.slane %v844, 2
    %v846 = vmax.f32 %v844, %v845
    %v847 = vrot.slane %v846, 1
    %v848 = vmax.f32 %v846, %v847
    %v849 = vpack.i.bf16 %v848, %v848
    %v850 = vmax.bf16 %v800, %v802
    %v851 = vmax.bf16 %v850, %v804
    %v852 = vmax.bf16 %v851, %v806
    %v853 = vunpack.i.l.bf16 %v852
    %v854 = vunpack.i.h.bf16 %v852
    %v855 = vmax.f32 %v853, %v854
    %v856 = vrot.slane %v855, 4
    %v857 = vmax.f32 %v855, %v856
    %v858 = vrot.slane %v857, 2
    %v859 = vmax.f32 %v857, %v858
    %v860 = vrot.slane %v859, 1
    %v861 = vmax.f32 %v859, %v860
    %v862 = vpack.i.bf16 %v861, %v861
    %v863 = vmax.bf16 %v801, %v803
    %v864 = vmax.bf16 %v863, %v805
    %v865 = vmax.bf16 %v864, %v807
    %v866 = vunpack.i.l.bf16 %v865
    %v867 = vunpack.i.h.bf16 %v865
    %v868 = vmax.f32 %v866, %v867
    %v869 = vrot.slane %v868, 4
    %v870 = vmax.f32 %v868, %v869
    %v871 = vrot.slane %v870, 2
    %v872 = vmax.f32 %v870, %v871
    %v873 = vrot.slane %v872, 1
    %v874 = vmax.f32 %v872, %v873
    %v875 = vpack.i.bf16 %v874, %v874
    %v892 = vunpack.c.l.b16 %v108
    %v893 = vunpack.c.h.b16 %v108
    %v894 = vunpack.c.l.b16 %v109
    %v895 = vunpack.c.h.b16 %v109
    %v896 = vunpack.c.l.b16 %v110
    %v897 = vunpack.c.h.b16 %v110
    %v898 = vunpack.c.l.b16 %v111
    %v899 = vunpack.c.h.b16 %v111
    %v900 = vunpack.c.l.b16 %v112
    %v901 = vunpack.c.h.b16 %v112
    %v902 = vunpack.c.l.b16 %v113
    %v903 = vunpack.c.h.b16 %v113
    %v904 = vunpack.c.l.b16 %v114
    %v905 = vunpack.c.h.b16 %v114
    %v906 = vunpack.c.l.b16 %v115
    %v907 = vunpack.c.h.b16 %v115
    %v908 = vunpack.c.l.b16 %v132
    %v909 = vunpack.c.h.b16 %v132
    %v910 = vunpack.c.l.b16 %v133
    %v911 = vunpack.c.h.b16 %v133
    %v912 = vunpack.c.l.b16 %v134
    %v913 = vunpack.c.h.b16 %v134
    %v914 = vunpack.c.l.b16 %v135
    %v915 = vunpack.c.h.b16 %v135
    %v916 = vunpack.c.l.b16 %v136
    %v917 = vunpack.c.h.b16 %v136
    %v918 = vunpack.c.l.b16 %v137
    %v919 = vunpack.c.h.b16 %v137
    %v920 = vunpack.c.l.b16 %v138
    %v921 = vunpack.c.h.b16 %v138
    %v922 = vunpack.c.l.b16 %v139
    %v923 = vunpack.c.h.b16 %v139
    %v924 = vpack.c.b16 %v894, %v892
    %v925 = vpack.c.b16 %v895, %v893
    %v926 = vpack.c.b16 %v898, %v896
    %v927 = vpack.c.b16 %v899, %v897
    %v928 = vpack.c.b16 %v902, %v900
    %v929 = vpack.c.b16 %v903, %v901
    %v930 = vpack.c.b16 %v906, %v904
    %v931 = vpack.c.b16 %v907, %v905
    %v932 = vpack.c.b16 %v910, %v908
    %v933 = vpack.c.b16 %v911, %v909
    %v934 = vpack.c.b16 %v914, %v912
    %v935 = vpack.c.b16 %v915, %v913
    %v936 = vpack.c.b16 %v918, %v916
    %v937 = vpack.c.b16 %v919, %v917
    %v938 = vpack.c.b16 %v922, %v920
    %v939 = vpack.c.b16 %v923, %v921
    %v956 = vmax.bf16 %v924, %v926
    %v957 = vmax.bf16 %v956, %v928
    %v958 = vmax.bf16 %v957, %v930
    %v959 = vunpack.i.l.bf16 %v958
    %v960 = vunpack.i.h.bf16 %v958
    %v961 = vmax.f32 %v959, %v960
    %v962 = vrot.slane %v961, 4
    %v963 = vmax.f32 %v961, %v962
    %v964 = vrot.slane %v963, 2
    %v965 = vmax.f32 %v963, %v964
    %v966 = vrot.slane %v965, 1
    %v967 = vmax.f32 %v965, %v966
    %v968 = vpack.i.bf16 %v967, %v967
    %v969 = vmax.bf16 %v925, %v927
    %v970 = vmax.bf16 %v969, %v929
    %v971 = vmax.bf16 %v970, %v931
    %v972 = vunpack.i.l.bf16 %v971
    %v973 = vunpack.i.h.bf16 %v971
    %v974 = vmax.f32 %v972, %v973
    %v975 = vrot.slane %v974, 4
    %v976 = vmax.f32 %v974, %v975
    %v977 = vrot.slane %v976, 2
    %v978 = vmax.f32 %v976, %v977
    %v979 = vrot.slane %v978, 1
    %v980 = vmax.f32 %v978, %v979
    %v981 = vpack.i.bf16 %v980, %v980
    %v982 = vmax.bf16 %v932, %v934
    %v983 = vmax.bf16 %v982, %v936
    %v984 = vmax.bf16 %v983, %v938
    %v985 = vunpack.i.l.bf16 %v984
    %v986 = vunpack.i.h.bf16 %v984
    %v987 = vmax.f32 %v985, %v986
    %v988 = vrot.slane %v987, 4
    %v989 = vmax.f32 %v987, %v988
    %v990 = vrot.slane %v989, 2
    %v991 = vmax.f32 %v989, %v990
    %v992 = vrot.slane %v991, 1
    %v993 = vmax.f32 %v991, %v992
    %v994 = vpack.i.bf16 %v993, %v993
    %v995 = vmax.bf16 %v933, %v935
    %v996 = vmax.bf16 %v995, %v937
    %v997 = vmax.bf16 %v996, %v939
    %v998 = vunpack.i.l.bf16 %v997
    %v999 = vunpack.i.h.bf16 %v997
    %v1000 = vmax.f32 %v998, %v999
    %v1001 = vrot.slane %v1000, 4
    %v1002 = vmax.f32 %v1000, %v1001
    %v1003 = vrot.slane %v1002, 2
    %v1004 = vmax.f32 %v1002, %v1003
    %v1005 = vrot.slane %v1004, 1
    %v1006 = vmax.f32 %v1004, %v1005
    %v1007 = vpack.i.bf16 %v1006, %v1006
    %v1008 = vmax.bf16 %v704, %v836
    %v1009 = vmax.bf16 %v717, %v849
    %v1010 = vmax.bf16 %v730, %v862
    %v1011 = vmax.bf16 %v743, %v875
    %v1012 = vmax.bf16 %v1008, %v968
    %v1013 = vmax.bf16 %v1009, %v981
    %v1014 = vmax.bf16 %v1010, %v994
    %v1015 = vmax.bf16 %v1011, %v1007
    %v1016 = vld [vmem:[%s3] sm:$0xf]
    %v1017 = vld [vmem:[%s3 + $0x4] sm:$0xf]
    %v1018 = vld [vmem:[%s3 + $0x8] sm:$0xf]
    %v1019 = vld [vmem:[%s3 + $0xc] sm:$0xf]
    %v1020 = vld [vmem:[%s3 + $0x10] sm:$0xf]
    %v1021 = vld [vmem:[%s3 + $0x14] sm:$0xf]
    %v1022 = vld [vmem:[%s3 + $0x18] sm:$0xf]
    %v1023 = vld [vmem:[%s3 + $0x1c] sm:$0xf]
    %v1024 = vld [vmem:[%s3 + $0x20] sm:$0xf]
    %v1025 = vld [vmem:[%s3 + $0x24] sm:$0xf]
    %v1026 = vld [vmem:[%s3 + $0x28] sm:$0xf]
    %v1027 = vld [vmem:[%s3 + $0x2c] sm:$0xf]
    %v1028 = vld [vmem:[%s3 + $0x30] sm:$0xf]
    %v1029 = vld [vmem:[%s3 + $0x34] sm:$0xf]
    %v1030 = vld [vmem:[%s3 + $0x38] sm:$0xf]
    %v1031 = vld [vmem:[%s3 + $0x3c] sm:$0xf]
    %v1032 = vld [vmem:[%s3 + $0x40] sm:$0xf]
    %v1033 = vld [vmem:[%s3 + $0x44] sm:$0xf]
    %v1034 = vld [vmem:[%s3 + $0x48] sm:$0xf]
    %v1035 = vld [vmem:[%s3 + $0x4c] sm:$0xf]
    %v1036 = vld [vmem:[%s3 + $0x50] sm:$0xf]
    %v1037 = vld [vmem:[%s3 + $0x54] sm:$0xf]
    %v1038 = vld [vmem:[%s3 + $0x58] sm:$0xf]
    %v1039 = vld [vmem:[%s3 + $0x5c] sm:$0xf]
    %v1040 = vld [vmem:[%s3 + $0x60] sm:$0xf]
    %v1041 = vld [vmem:[%s3 + $0x64] sm:$0xf]
    %v1042 = vld [vmem:[%s3 + $0x68] sm:$0xf]
    %v1043 = vld [vmem:[%s3 + $0x6c] sm:$0xf]
    %v1044 = vld [vmem:[%s3 + $0x70] sm:$0xf]
    %v1045 = vld [vmem:[%s3 + $0x74] sm:$0xf]
    %v1046 = vld [vmem:[%s3 + $0x78] sm:$0xf]
    %v1047 = vld [vmem:[%s3 + $0x7c] sm:$0xf]
    %v1048 = vld [vmem:[%s3 + $0x80] sm:$0xf]
    %v1049 = vld [vmem:[%s3 + $0x84] sm:$0xf]
    %v1050 = vld [vmem:[%s3 + $0x88] sm:$0xf]
    %v1051 = vld [vmem:[%s3 + $0x8c] sm:$0xf]
    %v1052 = vld [vmem:[%s3 + $0x90] sm:$0xf]
    %v1053 = vld [vmem:[%s3 + $0x94] sm:$0xf]
    %v1054 = vld [vmem:[%s3 + $0x98] sm:$0xf]
    %v1055 = vld [vmem:[%s3 + $0x9c] sm:$0xf]
    %v1056 = vld [vmem:[%s3 + $0xa0] sm:$0xf]
    %v1057 = vld [vmem:[%s3 + $0xa4] sm:$0xf]
    %v1058 = vld [vmem:[%s3 + $0xa8] sm:$0xf]
    %v1059 = vld [vmem:[%s3 + $0xac] sm:$0xf]
    %v1060 = vld [vmem:[%s3 + $0xb0] sm:$0xf]
    %v1061 = vld [vmem:[%s3 + $0xb4] sm:$0xf]
    %v1062 = vld [vmem:[%s3 + $0xb8] sm:$0xf]
    %v1063 = vld [vmem:[%s3 + $0xbc] sm:$0xf]
    %v1064 = vld [vmem:[%s3 + $0xc0] sm:$0xf]
    %v1065 = vld [vmem:[%s3 + $0xc4] sm:$0xf]
    %v1066 = vld [vmem:[%s3 + $0xc8] sm:$0xf]
    %v1067 = vld [vmem:[%s3 + $0xcc] sm:$0xf]
    %v1068 = vld [vmem:[%s3 + $0xd0] sm:$0xf]
    %v1069 = vld [vmem:[%s3 + $0xd4] sm:$0xf]
    %v1070 = vld [vmem:[%s3 + $0xd8] sm:$0xf]
    %v1071 = vld [vmem:[%s3 + $0xdc] sm:$0xf]
    %v1072 = vld [vmem:[%s3 + $0xe0] sm:$0xf]
    %v1073 = vld [vmem:[%s3 + $0xe4] sm:$0xf]
    %v1074 = vld [vmem:[%s3 + $0xe8] sm:$0xf]
    %v1075 = vld [vmem:[%s3 + $0xec] sm:$0xf]
    %v1076 = vld [vmem:[%s3 + $0xf0] sm:$0xf]
    %v1077 = vld [vmem:[%s3 + $0xf4] sm:$0xf]
    %v1078 = vld [vmem:[%s3 + $0xf8] sm:$0xf]
    %v1079 = vld [vmem:[%s3 + $0xfc] sm:$0xf]
    %v1080 = vld [vmem:[%s3 + $0x100] sm:$0xf]
    %v1081 = vld [vmem:[%s3 + $0x104] sm:$0xf]
    %v1082 = vld [vmem:[%s3 + $0x108] sm:$0xf]
    %v1083 = vld [vmem:[%s3 + $0x10c] sm:$0xf]
    %v1084 = vld [vmem:[%s3 + $0x110] sm:$0xf]
    %v1085 = vld [vmem:[%s3 + $0x114] sm:$0xf]
    %v1086 = vld [vmem:[%s3 + $0x118] sm:$0xf]
    %v1087 = vld [vmem:[%s3 + $0x11c] sm:$0xf]
    %v1088 = vld [vmem:[%s3 + $0x120] sm:$0xf]
    %v1089 = vld [vmem:[%s3 + $0x124] sm:$0xf]
    %v1090 = vld [vmem:[%s3 + $0x128] sm:$0xf]
    %v1091 = vld [vmem:[%s3 + $0x12c] sm:$0xf]
    %v1092 = vld [vmem:[%s3 + $0x130] sm:$0xf]
    %v1093 = vld [vmem:[%s3 + $0x134] sm:$0xf]
    %v1094 = vld [vmem:[%s3 + $0x138] sm:$0xf]
    %v1095 = vld [vmem:[%s3 + $0x13c] sm:$0xf]
    %v1096 = vld [vmem:[%s3 + $0x140] sm:$0xf]
    %v1097 = vld [vmem:[%s3 + $0x144] sm:$0xf]
    %v1098 = vld [vmem:[%s3 + $0x148] sm:$0xf]
    %v1099 = vld [vmem:[%s3 + $0x14c] sm:$0xf]
    %v1100 = vld [vmem:[%s3 + $0x150] sm:$0xf]
    %v1101 = vld [vmem:[%s3 + $0x154] sm:$0xf]
    %v1102 = vld [vmem:[%s3 + $0x158] sm:$0xf]
    %v1103 = vld [vmem:[%s3 + $0x15c] sm:$0xf]
    %v1104 = vld [vmem:[%s3 + $0x160] sm:$0xf]
    %v1105 = vld [vmem:[%s3 + $0x164] sm:$0xf]
    %v1106 = vld [vmem:[%s3 + $0x168] sm:$0xf]
    %v1107 = vld [vmem:[%s3 + $0x16c] sm:$0xf]
    %v1108 = vld [vmem:[%s3 + $0x170] sm:$0xf]
    %v1109 = vld [vmem:[%s3 + $0x174] sm:$0xf]
    %v1110 = vld [vmem:[%s3 + $0x178] sm:$0xf]
    %v1111 = vld [vmem:[%s3 + $0x17c] sm:$0xf]
    %v1112 = vld [vmem:[%s3 + $0x180] sm:$0xf]
    %v1113 = vld [vmem:[%s3 + $0x184] sm:$0xf]
    %v1114 = vld [vmem:[%s3 + $0x188] sm:$0xf]
    %v1115 = vld [vmem:[%s3 + $0x18c] sm:$0xf]
    %v1116 = vld [vmem:[%s3 + $0x190] sm:$0xf]
    %v1117 = vld [vmem:[%s3 + $0x194] sm:$0xf]
    %v1118 = vld [vmem:[%s3 + $0x198] sm:$0xf]
    %v1119 = vld [vmem:[%s3 + $0x19c] sm:$0xf]
    %v1120 = vld [vmem:[%s3 + $0x1a0] sm:$0xf]
    %v1121 = vld [vmem:[%s3 + $0x1a4] sm:$0xf]
    %v1122 = vld [vmem:[%s3 + $0x1a8] sm:$0xf]
    %v1123 = vld [vmem:[%s3 + $0x1ac] sm:$0xf]
    %v1124 = vld [vmem:[%s3 + $0x1b0] sm:$0xf]
    %v1125 = vld [vmem:[%s3 + $0x1b4] sm:$0xf]
    %v1126 = vld [vmem:[%s3 + $0x1b8] sm:$0xf]
    %v1127 = vld [vmem:[%s3 + $0x1bc] sm:$0xf]
    %v1128 = vld [vmem:[%s3 + $0x1c0] sm:$0xf]
    %v1129 = vld [vmem:[%s3 + $0x1c4] sm:$0xf]
    %v1130 = vld [vmem:[%s3 + $0x1c8] sm:$0xf]
    %v1131 = vld [vmem:[%s3 + $0x1cc] sm:$0xf]
    %v1132 = vld [vmem:[%s3 + $0x1d0] sm:$0xf]
    %v1133 = vld [vmem:[%s3 + $0x1d4] sm:$0xf]
    %v1134 = vld [vmem:[%s3 + $0x1d8] sm:$0xf]
    %v1135 = vld [vmem:[%s3 + $0x1dc] sm:$0xf]
    %v1136 = vld [vmem:[%s3 + $0x1e0] sm:$0xf]
    %v1137 = vld [vmem:[%s3 + $0x1e4] sm:$0xf]
    %v1138 = vld [vmem:[%s3 + $0x1e8] sm:$0xf]
    %v1139 = vld [vmem:[%s3 + $0x1ec] sm:$0xf]
    %v1140 = vld [vmem:[%s3 + $0x1f0] sm:$0xf]
    %v1141 = vld [vmem:[%s3 + $0x1f4] sm:$0xf]
    %v1142 = vld [vmem:[%s3 + $0x1f8] sm:$0xf]
    %v1143 = vld [vmem:[%s3 + $0x1fc] sm:$0xf]
    %v1144 = vld [vmem:[%s3 + $0x200] sm:$0xf]
    %v1145 = vld [vmem:[%s3 + $0x204] sm:$0xf]
    %v1146 = vld [vmem:[%s3 + $0x208] sm:$0xf]
    %v1147 = vld [vmem:[%s3 + $0x20c] sm:$0xf]
    %v1148 = vld [vmem:[%s3 + $0x210] sm:$0xf]
    %v1149 = vld [vmem:[%s3 + $0x214] sm:$0xf]
    %v1150 = vld [vmem:[%s3 + $0x218] sm:$0xf]
    %v1151 = vld [vmem:[%s3 + $0x21c] sm:$0xf]
    %v1152 = vld [vmem:[%s3 + $0x220] sm:$0xf]
    %v1153 = vld [vmem:[%s3 + $0x224] sm:$0xf]
    %v1154 = vld [vmem:[%s3 + $0x228] sm:$0xf]
    %v1155 = vld [vmem:[%s3 + $0x22c] sm:$0xf]
    %v1156 = vld [vmem:[%s3 + $0x230] sm:$0xf]
    %v1157 = vld [vmem:[%s3 + $0x234] sm:$0xf]
    %v1158 = vld [vmem:[%s3 + $0x238] sm:$0xf]
    %v1159 = vld [vmem:[%s3 + $0x23c] sm:$0xf]
    %v1160 = vld [vmem:[%s3 + $0x240] sm:$0xf]
    %v1161 = vld [vmem:[%s3 + $0x244] sm:$0xf]
    %v1162 = vld [vmem:[%s3 + $0x248] sm:$0xf]
    %v1163 = vld [vmem:[%s3 + $0x24c] sm:$0xf]
    %v1164 = vld [vmem:[%s3 + $0x250] sm:$0xf]
    %v1165 = vld [vmem:[%s3 + $0x254] sm:$0xf]
    %v1166 = vld [vmem:[%s3 + $0x258] sm:$0xf]
    %v1167 = vld [vmem:[%s3 + $0x25c] sm:$0xf]
    %v1168 = vld [vmem:[%s3 + $0x260] sm:$0xf]
    %v1169 = vld [vmem:[%s3 + $0x264] sm:$0xf]
    %v1170 = vld [vmem:[%s3 + $0x268] sm:$0xf]
    %v1171 = vld [vmem:[%s3 + $0x26c] sm:$0xf]
    %v1172 = vld [vmem:[%s3 + $0x270] sm:$0xf]
    %v1173 = vld [vmem:[%s3 + $0x274] sm:$0xf]
    %v1174 = vld [vmem:[%s3 + $0x278] sm:$0xf]
    %v1175 = vld [vmem:[%s3 + $0x27c] sm:$0xf]
    %v1176 = vld [vmem:[%s3 + $0x280] sm:$0xf]
    %v1177 = vld [vmem:[%s3 + $0x284] sm:$0xf]
    %v1178 = vld [vmem:[%s3 + $0x288] sm:$0xf]
    %v1179 = vld [vmem:[%s3 + $0x28c] sm:$0xf]
    %v1180 = vld [vmem:[%s3 + $0x290] sm:$0xf]
    %v1181 = vld [vmem:[%s3 + $0x294] sm:$0xf]
    %v1182 = vld [vmem:[%s3 + $0x298] sm:$0xf]
    %v1183 = vld [vmem:[%s3 + $0x29c] sm:$0xf]
    %v1184 = vld [vmem:[%s3 + $0x2a0] sm:$0xf]
    %v1185 = vld [vmem:[%s3 + $0x2a4] sm:$0xf]
    %v1186 = vld [vmem:[%s3 + $0x2a8] sm:$0xf]
    %v1187 = vld [vmem:[%s3 + $0x2ac] sm:$0xf]
    %v1188 = vld [vmem:[%s3 + $0x2b0] sm:$0xf]
    %v1189 = vld [vmem:[%s3 + $0x2b4] sm:$0xf]
    %v1190 = vld [vmem:[%s3 + $0x2b8] sm:$0xf]
    %v1191 = vld [vmem:[%s3 + $0x2bc] sm:$0xf]
    %v1192 = vld [vmem:[%s3 + $0x2c0] sm:$0xf]
    %v1193 = vld [vmem:[%s3 + $0x2c4] sm:$0xf]
    %v1194 = vld [vmem:[%s3 + $0x2c8] sm:$0xf]
    %v1195 = vld [vmem:[%s3 + $0x2cc] sm:$0xf]
    %v1196 = vld [vmem:[%s3 + $0x2d0] sm:$0xf]
    %v1197 = vld [vmem:[%s3 + $0x2d4] sm:$0xf]
    %v1198 = vld [vmem:[%s3 + $0x2d8] sm:$0xf]
    %v1199 = vld [vmem:[%s3 + $0x2dc] sm:$0xf]
    %v1200 = vld [vmem:[%s3 + $0x2e0] sm:$0xf]
    %v1201 = vld [vmem:[%s3 + $0x2e4] sm:$0xf]
    %v1202 = vld [vmem:[%s3 + $0x2e8] sm:$0xf]
    %v1203 = vld [vmem:[%s3 + $0x2ec] sm:$0xf]
    %v1204 = vld [vmem:[%s3 + $0x2f0] sm:$0xf]
    %v1205 = vld [vmem:[%s3 + $0x2f4] sm:$0xf]
    %v1206 = vld [vmem:[%s3 + $0x2f8] sm:$0xf]
    %v1207 = vld [vmem:[%s3 + $0x2fc] sm:$0xf]
    %v1208 = vld [vmem:[%s3 + $0x300] sm:$0xf]
    %v1209 = vld [vmem:[%s3 + $0x304] sm:$0xf]
    %v1210 = vld [vmem:[%s3 + $0x308] sm:$0xf]
    %v1211 = vld [vmem:[%s3 + $0x30c] sm:$0xf]
    %v1212 = vld [vmem:[%s3 + $0x310] sm:$0xf]
    %v1213 = vld [vmem:[%s3 + $0x314] sm:$0xf]
    %v1214 = vld [vmem:[%s3 + $0x318] sm:$0xf]
    %v1215 = vld [vmem:[%s3 + $0x31c] sm:$0xf]
    %v1216 = vld [vmem:[%s3 + $0x320] sm:$0xf]
    %v1217 = vld [vmem:[%s3 + $0x324] sm:$0xf]
    %v1218 = vld [vmem:[%s3 + $0x328] sm:$0xf]
    %v1219 = vld [vmem:[%s3 + $0x32c] sm:$0xf]
    %v1220 = vld [vmem:[%s3 + $0x330] sm:$0xf]
    %v1221 = vld [vmem:[%s3 + $0x334] sm:$0xf]
    %v1222 = vld [vmem:[%s3 + $0x338] sm:$0xf]
    %v1223 = vld [vmem:[%s3 + $0x33c] sm:$0xf]
    %v1224 = vld [vmem:[%s3 + $0x340] sm:$0xf]
    %v1225 = vld [vmem:[%s3 + $0x344] sm:$0xf]
    %v1226 = vld [vmem:[%s3 + $0x348] sm:$0xf]
    %v1227 = vld [vmem:[%s3 + $0x34c] sm:$0xf]
    %v1228 = vld [vmem:[%s3 + $0x350] sm:$0xf]
    %v1229 = vld [vmem:[%s3 + $0x354] sm:$0xf]
    %v1230 = vld [vmem:[%s3 + $0x358] sm:$0xf]
    %v1231 = vld [vmem:[%s3 + $0x35c] sm:$0xf]
    %v1232 = vld [vmem:[%s3 + $0x360] sm:$0xf]
    %v1233 = vld [vmem:[%s3 + $0x364] sm:$0xf]
    %v1234 = vld [vmem:[%s3 + $0x368] sm:$0xf]
    %v1235 = vld [vmem:[%s3 + $0x36c] sm:$0xf]
    %v1236 = vld [vmem:[%s3 + $0x370] sm:$0xf]
    %v1237 = vld [vmem:[%s3 + $0x374] sm:$0xf]
    %v1238 = vld [vmem:[%s3 + $0x378] sm:$0xf]
    %v1239 = vld [vmem:[%s3 + $0x37c] sm:$0xf]
    %v1240 = vld [vmem:[%s3 + $0x380] sm:$0xf]
    %v1241 = vld [vmem:[%s3 + $0x384] sm:$0xf]
    %v1242 = vld [vmem:[%s3 + $0x388] sm:$0xf]
    %v1243 = vld [vmem:[%s3 + $0x38c] sm:$0xf]
    %v1244 = vld [vmem:[%s3 + $0x390] sm:$0xf]
    %v1245 = vld [vmem:[%s3 + $0x394] sm:$0xf]
    %v1246 = vld [vmem:[%s3 + $0x398] sm:$0xf]
    %v1247 = vld [vmem:[%s3 + $0x39c] sm:$0xf]
    %v1248 = vld [vmem:[%s3 + $0x3a0] sm:$0xf]
    %v1249 = vld [vmem:[%s3 + $0x3a4] sm:$0xf]
    %v1250 = vld [vmem:[%s3 + $0x3a8] sm:$0xf]
    %v1251 = vld [vmem:[%s3 + $0x3ac] sm:$0xf]
    %v1252 = vld [vmem:[%s3 + $0x3b0] sm:$0xf]
    %v1253 = vld [vmem:[%s3 + $0x3b4] sm:$0xf]
    %v1254 = vld [vmem:[%s3 + $0x3b8] sm:$0xf]
    %v1255 = vld [vmem:[%s3 + $0x3bc] sm:$0xf]
    %v1256 = vld [vmem:[%s3 + $0x3c0] sm:$0xf]
    %v1257 = vld [vmem:[%s3 + $0x3c4] sm:$0xf]
    %v1258 = vld [vmem:[%s3 + $0x3c8] sm:$0xf]
    %v1259 = vld [vmem:[%s3 + $0x3cc] sm:$0xf]
    %v1260 = vld [vmem:[%s3 + $0x3d0] sm:$0xf]
    %v1261 = vld [vmem:[%s3 + $0x3d4] sm:$0xf]
    %v1262 = vld [vmem:[%s3 + $0x3d8] sm:$0xf]
    %v1263 = vld [vmem:[%s3 + $0x3dc] sm:$0xf]
    %v1264 = vld [vmem:[%s3 + $0x3e0] sm:$0xf]
    %v1265 = vld [vmem:[%s3 + $0x3e4] sm:$0xf]
    %v1266 = vld [vmem:[%s3 + $0x3e8] sm:$0xf]
    %v1267 = vld [vmem:[%s3 + $0x3ec] sm:$0xf]
    %v1268 = vld [vmem:[%s3 + $0x3f0] sm:$0xf]
    %v1269 = vld [vmem:[%s3 + $0x3f4] sm:$0xf]
    %v1270 = vld [vmem:[%s3 + $0x3f8] sm:$0xf]
    %v1271 = vld [vmem:[%s3 + $0x3fc] sm:$0xf]
    %v1272 = vld [vmem:[%s4] sm:$0x1]
    %v1273 = vld [vmem:[%s4 + $0x1] sm:$0x1]
    %v1274 = vld [vmem:[%s4 + $0x2] sm:$0x1]
    %v1275 = vld [vmem:[%s4 + $0x3] sm:$0x1]
    %v1276 = vld [vmem:[%s4 + $0x4] sm:$0x1]
    %v1277 = vld [vmem:[%s4 + $0x5] sm:$0x1]
    %v1278 = vld [vmem:[%s4 + $0x6] sm:$0x1]
    %v1279 = vld [vmem:[%s4 + $0x7] sm:$0x1]
    %v1288 = vlaneseq
    %v1289 = vshrl.u32 %v1288, 7
    %v1290 = vsub.s32 0, %v1289
    %v1291 = vrot.slane %v1272, %v1290
    %v1292 = vlaneseq
    %v1293 = vshrl.u32 %v1292, 7
    %v1294 = vsub.s32 0, %v1293
    %v1295 = vrot.slane %v1273, %v1294
    %v1296 = vlaneseq
    %v1297 = vshrl.u32 %v1296, 7
    %v1298 = vsub.s32 0, %v1297
    %v1299 = vrot.slane %v1274, %v1298
    %v1300 = vlaneseq
    %v1301 = vshrl.u32 %v1300, 7
    %v1302 = vsub.s32 0, %v1301
    %v1303 = vrot.slane %v1275, %v1302
    %v1304 = vlaneseq
    %v1305 = vshrl.u32 %v1304, 7
    %v1306 = vsub.s32 0, %v1305
    %v1307 = vrot.slane %v1276, %v1306
    %v1308 = vlaneseq
    %v1309 = vshrl.u32 %v1308, 7
    %v1310 = vsub.s32 0, %v1309
    %v1311 = vrot.slane %v1277, %v1310
    %v1312 = vlaneseq
    %v1313 = vshrl.u32 %v1312, 7
    %v1314 = vsub.s32 0, %v1313
    %v1315 = vrot.slane %v1278, %v1314
    %v1316 = vlaneseq
    %v1317 = vshrl.u32 %v1316, 7
    %v1318 = vsub.s32 0, %v1317
    %v1319 = vrot.slane %v1279, %v1318
    %v1332 = vunpack.c.l.b16 %v211
    %v1333 = vunpack.c.l.b16 %v223
    %v1334 = vunpack.c.l.b16 %v235
    %v1335 = vunpack.c.l.b16 %v247
    %v1336 = vrot.slane %v1334, 7
    %vm1337 = vcmask 1041409
    %v1338 = vsel %vm1337, %v1336, %v1332
    %v1339 = vrot.slane %v1335, 7
    %v1340 = vsel %vm1337, %v1339, %v1333
    %v1341 = vpack.c.b16 %v1338, %v1338
    %v1342 = vpack.c.b16 %v1340, %v1340
    %v1377 = vunpack.c.l.b16 %v1016
    %v1378 = vunpack.c.l.b16 %v1017
    %v1379 = vunpack.c.l.b16 %v1018
    %v1380 = vunpack.c.l.b16 %v1019
    %v1381 = vunpack.c.l.b16 %v1020
    %v1382 = vunpack.c.l.b16 %v1021
    %v1383 = vunpack.c.l.b16 %v1022
    %v1384 = vunpack.c.l.b16 %v1023
    %v1385 = vunpack.c.l.b16 %v1024
    %v1386 = vunpack.c.l.b16 %v1025
    %v1387 = vunpack.c.l.b16 %v1026
    %v1388 = vunpack.c.l.b16 %v1027
    %v1389 = vunpack.c.l.b16 %v1028
    %v1390 = vunpack.c.l.b16 %v1029
    %v1391 = vunpack.c.l.b16 %v1030
    %v1392 = vunpack.c.l.b16 %v1031
    %v1393 = vunpack.c.l.b16 %v1032
    %v1394 = vunpack.c.l.b16 %v1033
    %v1395 = vunpack.c.l.b16 %v1034
    %v1396 = vunpack.c.l.b16 %v1035
    %v1397 = vunpack.c.l.b16 %v1036
    %v1398 = vunpack.c.l.b16 %v1037
    %v1399 = vunpack.c.l.b16 %v1038
    %v1400 = vunpack.c.l.b16 %v1039
    %v1401 = vunpack.c.l.b16 %v1040
    %v1402 = vunpack.c.l.b16 %v1041
    %v1403 = vunpack.c.l.b16 %v1042
    %v1404 = vunpack.c.l.b16 %v1043
    %v1405 = vunpack.c.l.b16 %v1044
    %v1406 = vunpack.c.l.b16 %v1045
    %v1407 = vunpack.c.l.b16 %v1046
    %v1408 = vunpack.c.l.b16 %v1047
    %v1409 = vpack.c.b16 %v1378, %v1377
    %v1410 = vpack.c.b16 %v1380, %v1379
    %v1411 = vpack.c.b16 %v1382, %v1381
    %v1412 = vpack.c.b16 %v1384, %v1383
    %v1413 = vpack.c.b16 %v1386, %v1385
    %v1414 = vpack.c.b16 %v1388, %v1387
    %v1415 = vpack.c.b16 %v1390, %v1389
    %v1416 = vpack.c.b16 %v1392, %v1391
    %v1417 = vpack.c.b16 %v1394, %v1393
    %v1418 = vpack.c.b16 %v1396, %v1395
    %v1419 = vpack.c.b16 %v1398, %v1397
    %v1420 = vpack.c.b16 %v1400, %v1399
    %v1421 = vpack.c.b16 %v1402, %v1401
    %v1422 = vpack.c.b16 %v1404, %v1403
    %v1423 = vpack.c.b16 %v1406, %v1405
    %v1424 = vpack.c.b16 %v1408, %v1407
    %1441 = vmatprep.subr.bf16.mxu0 0
    %1442 = vmatpush1.bf16.msra.mxu0 %v1416
    %1443 = vmatprep.subr.bf16.mxu0 0
    %1444 = vmatpush1.bf16.msra.mxu0 %v1415
    %1445 = vmatprep.subr.bf16.mxu0 0
    %1446 = vmatpush1.bf16.msra.mxu0 %v1414
    %1447 = vmatprep.subr.bf16.mxu0 0
    %1448 = vmatpush1.bf16.msra.mxu0 %v1413
    %1449 = vmatprep.subr.bf16.mxu0 0
    %1450 = vmatpush1.bf16.msra.mxu0 %v1412
    %1451 = vmatprep.subr.bf16.mxu0 0
    %1452 = vmatpush1.bf16.msra.mxu0 %v1411
    %1453 = vmatprep.subr.bf16.mxu0 0
    %1454 = vmatpush1.bf16.msra.mxu0 %v1410
    %1455 = vmatprep.subr.bf16.mxu0 0
    %1456 = vmatpush1.bf16.msra.mxu0 %v1409
    %1457 = vmatprep.subr.bf16.mxu0 0
    %1458 = vmatpush2.bf16.msra.mxu0 %v1424
    %1459 = vmatprep.subr.bf16.mxu0 0
    %1460 = vmatpush2.bf16.msra.mxu0 %v1423
    %1461 = vmatprep.subr.bf16.mxu0 0
    %1462 = vmatpush2.bf16.msra.mxu0 %v1422
    %1463 = vmatprep.subr.bf16.mxu0 0
    %1464 = vmatpush2.bf16.msra.mxu0 %v1421
    %1465 = vmatprep.subr.bf16.mxu0 0
    %1466 = vmatpush2.bf16.msra.mxu0 %v1420
    %1467 = vmatprep.subr.bf16.mxu0 0
    %1468 = vmatpush2.bf16.msra.mxu0 %v1419
    %1469 = vmatprep.subr.bf16.mxu0 0
    %1470 = vmatpush2.bf16.msra.mxu0 %v1418
    %1471 = vmatprep.subr.bf16.mxu0 0
    %1472 = vmatpush2.bf16.msra.mxu0 %v1417
    %1473 = vmatprep.mubr.bf16.mxu0 %v1342
    %1474 = vmatmul.mubr.bf16.gmra.mxu0 %v1341
    %v1475 = vpop.f32.mrf.mxu0
    %v1476 = vadd.f32 %v1291, %v1475
    %v1477 = vpop.f32.mrf.mxu0
    %v1478 = vpop.f32.mrf.mxu0
    %v1479 = vpop.f32.mrf.mxu0
    %1480 = vdwg.mxu0
    %v1485 = vunpack.c.l.b16 %v608
    %v1486 = vunpack.c.l.b16 %v609
    %v1487 = vunpack.c.l.b16 %v610
    %v1488 = vunpack.c.l.b16 %v611
    %v1489 = vrot.slane %v1487, 7
    %v1490 = vsel %vm1337, %v1489, %v1485
    %v1491 = vrot.slane %v1488, 7
    %v1492 = vsel %vm1337, %v1491, %v1486
    %v1493 = vpack.c.b16 %v1490, %v1490
    %v1494 = vpack.c.b16 %v1492, %v1492
    %v1529 = vunpack.c.l.b16 %v1048
    %v1530 = vunpack.c.l.b16 %v1049
    %v1531 = vunpack.c.l.b16 %v1050
    %v1532 = vunpack.c.l.b16 %v1051
    %v1533 = vunpack.c.l.b16 %v1052
    %v1534 = vunpack.c.l.b16 %v1053
    %v1535 = vunpack.c.l.b16 %v1054
    %v1536 = vunpack.c.l.b16 %v1055
    %v1537 = vunpack.c.l.b16 %v1056
    %v1538 = vunpack.c.l.b16 %v1057
    %v1539 = vunpack.c.l.b16 %v1058
    %v1540 = vunpack.c.l.b16 %v1059
    %v1541 = vunpack.c.l.b16 %v1060
    %v1542 = vunpack.c.l.b16 %v1061
    %v1543 = vunpack.c.l.b16 %v1062
    %v1544 = vunpack.c.l.b16 %v1063
    %v1545 = vunpack.c.l.b16 %v1064
    %v1546 = vunpack.c.l.b16 %v1065
    %v1547 = vunpack.c.l.b16 %v1066
    %v1548 = vunpack.c.l.b16 %v1067
    %v1549 = vunpack.c.l.b16 %v1068
    %v1550 = vunpack.c.l.b16 %v1069
    %v1551 = vunpack.c.l.b16 %v1070
    %v1552 = vunpack.c.l.b16 %v1071
    %v1553 = vunpack.c.l.b16 %v1072
    %v1554 = vunpack.c.l.b16 %v1073
    %v1555 = vunpack.c.l.b16 %v1074
    %v1556 = vunpack.c.l.b16 %v1075
    %v1557 = vunpack.c.l.b16 %v1076
    %v1558 = vunpack.c.l.b16 %v1077
    %v1559 = vunpack.c.l.b16 %v1078
    %v1560 = vunpack.c.l.b16 %v1079
    %v1561 = vpack.c.b16 %v1530, %v1529
    %v1562 = vpack.c.b16 %v1532, %v1531
    %v1563 = vpack.c.b16 %v1534, %v1533
    %v1564 = vpack.c.b16 %v1536, %v1535
    %v1565 = vpack.c.b16 %v1538, %v1537
    %v1566 = vpack.c.b16 %v1540, %v1539
    %v1567 = vpack.c.b16 %v1542, %v1541
    %v1568 = vpack.c.b16 %v1544, %v1543
    %v1569 = vpack.c.b16 %v1546, %v1545
    %v1570 = vpack.c.b16 %v1548, %v1547
    %v1571 = vpack.c.b16 %v1550, %v1549
    %v1572 = vpack.c.b16 %v1552, %v1551
    %v1573 = vpack.c.b16 %v1554, %v1553
    %v1574 = vpack.c.b16 %v1556, %v1555
    %v1575 = vpack.c.b16 %v1558, %v1557
    %v1576 = vpack.c.b16 %v1560, %v1559
    %1593 = vmatprep.subr.bf16.mxu0 0
    %1594 = vmatpush1.bf16.msra.mxu0 %v1568
    %1595 = vmatprep.subr.bf16.mxu0 0
    %1596 = vmatpush1.bf16.msra.mxu0 %v1567
    %1597 = vmatprep.subr.bf16.mxu0 0
    %1598 = vmatpush1.bf16.msra.mxu0 %v1566
    %1599 = vmatprep.subr.bf16.mxu0 0
    %1600 = vmatpush1.bf16.msra.mxu0 %v1565
    %1601 = vmatprep.subr.bf16.mxu0 0
    %1602 = vmatpush1.bf16.msra.mxu0 %v1564
    %1603 = vmatprep.subr.bf16.mxu0 0
    %1604 = vmatpush1.bf16.msra.mxu0 %v1563
    %1605 = vmatprep.subr.bf16.mxu0 0
    %1606 = vmatpush1.bf16.msra.mxu0 %v1562
    %1607 = vmatprep.subr.bf16.mxu0 0
    %1608 = vmatpush1.bf16.msra.mxu0 %v1561
    %1609 = vmatprep.subr.bf16.mxu0 0
    %1610 = vmatpush2.bf16.msra.mxu0 %v1576
    %1611 = vmatprep.subr.bf16.mxu0 0
    %1612 = vmatpush2.bf16.msra.mxu0 %v1575
    %1613 = vmatprep.subr.bf16.mxu0 0
    %1614 = vmatpush2.bf16.msra.mxu0 %v1574
    %1615 = vmatprep.subr.bf16.mxu0 0
    %1616 = vmatpush2.bf16.msra.mxu0 %v1573
    %1617 = vmatprep.subr.bf16.mxu0 0
    %1618 = vmatpush2.bf16.msra.mxu0 %v1572
    %1619 = vmatprep.subr.bf16.mxu0 0
    %1620 = vmatpush2.bf16.msra.mxu0 %v1571
    %1621 = vmatprep.subr.bf16.mxu0 0
    %1622 = vmatpush2.bf16.msra.mxu0 %v1570
    %1623 = vmatprep.subr.bf16.mxu0 0
    %1624 = vmatpush2.bf16.msra.mxu0 %v1569
    %1625 = vmatprep.mubr.bf16.mxu0 %v1494
    %1626 = vmatmul.mubr.bf16.gmra.mxu0 %v1493
    %v1627 = vpop.f32.mrf.mxu0
    %v1628 = vadd.f32 %v1295, %v1627
    %v1629 = vpop.f32.mrf.mxu0
    %v1630 = vpop.f32.mrf.mxu0
    %v1631 = vpop.f32.mrf.mxu0
    %1632 = vdwg.mxu0
    %v1637 = vunpack.c.l.b16 %v1012
    %v1638 = vunpack.c.l.b16 %v1013
    %v1639 = vunpack.c.l.b16 %v1014
    %v1640 = vunpack.c.l.b16 %v1015
    %v1641 = vrot.slane %v1639, 7
    %v1642 = vsel %vm1337, %v1641, %v1637
    %v1643 = vrot.slane %v1640, 7
    %v1644 = vsel %vm1337, %v1643, %v1638
    %v1645 = vpack.c.b16 %v1642, %v1642
    %v1646 = vpack.c.b16 %v1644, %v1644
    %v1681 = vunpack.c.l.b16 %v1080
    %v1682 = vunpack.c.l.b16 %v1081
    %v1683 = vunpack.c.l.b16 %v1082
    %v1684 = vunpack.c.l.b16 %v1083
    %v1685 = vunpack.c.l.b16 %v1084
    %v1686 = vunpack.c.l.b16 %v1085
    %v1687 = vunpack.c.l.b16 %v1086
    %v1688 = vunpack.c.l.b16 %v1087
    %v1689 = vunpack.c.l.b16 %v1088
    %v1690 = vunpack.c.l.b16 %v1089
    %v1691 = vunpack.c.l.b16 %v1090
    %v1692 = vunpack.c.l.b16 %v1091
    %v1693 = vunpack.c.l.b16 %v1092
    %v1694 = vunpack.c.l.b16 %v1093
    %v1695 = vunpack.c.l.b16 %v1094
    %v1696 = vunpack.c.l.b16 %v1095
    %v1697 = vunpack.c.l.b16 %v1096
    %v1698 = vunpack.c.l.b16 %v1097
    %v1699 = vunpack.c.l.b16 %v1098
    %v1700 = vunpack.c.l.b16 %v1099
    %v1701 = vunpack.c.l.b16 %v1100
    %v1702 = vunpack.c.l.b16 %v1101
    %v1703 = vunpack.c.l.b16 %v1102
    %v1704 = vunpack.c.l.b16 %v1103
    %v1705 = vunpack.c.l.b16 %v1104
    %v1706 = vunpack.c.l.b16 %v1105
    %v1707 = vunpack.c.l.b16 %v1106
    %v1708 = vunpack.c.l.b16 %v1107
    %v1709 = vunpack.c.l.b16 %v1108
    %v1710 = vunpack.c.l.b16 %v1109
    %v1711 = vunpack.c.l.b16 %v1110
    %v1712 = vunpack.c.l.b16 %v1111
    %v1713 = vpack.c.b16 %v1682, %v1681
    %v1714 = vpack.c.b16 %v1684, %v1683
    %v1715 = vpack.c.b16 %v1686, %v1685
    %v1716 = vpack.c.b16 %v1688, %v1687
    %v1717 = vpack.c.b16 %v1690, %v1689
    %v1718 = vpack.c.b16 %v1692, %v1691
    %v1719 = vpack.c.b16 %v1694, %v1693
    %v1720 = vpack.c.b16 %v1696, %v1695
    %v1721 = vpack.c.b16 %v1698, %v1697
    %v1722 = vpack.c.b16 %v1700, %v1699
    %v1723 = vpack.c.b16 %v1702, %v1701
    %v1724 = vpack.c.b16 %v1704, %v1703
    %v1725 = vpack.c.b16 %v1706, %v1705
    %v1726 = vpack.c.b16 %v1708, %v1707
    %v1727 = vpack.c.b16 %v1710, %v1709
    %v1728 = vpack.c.b16 %v1712, %v1711
    %1745 = vmatprep.subr.bf16.mxu0 0
    %1746 = vmatpush1.bf16.msra.mxu0 %v1720
    %1747 = vmatprep.subr.bf16.mxu0 0
    %1748 = vmatpush1.bf16.msra.mxu0 %v1719
    %1749 = vmatprep.subr.bf16.mxu0 0
    %1750 = vmatpush1.bf16.msra.mxu0 %v1718
    %1751 = vmatprep.subr.bf16.mxu0 0
    %1752 = vmatpush1.bf16.msra.mxu0 %v1717
    %1753 = vmatprep.subr.bf16.mxu0 0
    %1754 = vmatpush1.bf16.msra.mxu0 %v1716
    %1755 = vmatprep.subr.bf16.mxu0 0
    %1756 = vmatpush1.bf16.msra.mxu0 %v1715
    %1757 = vmatprep.subr.bf16.mxu0 0
    %1758 = vmatpush1.bf16.msra.mxu0 %v1714
    %1759 = vmatprep.subr.bf16.mxu0 0
    %1760 = vmatpush1.bf16.msra.mxu0 %v1713
    %1761 = vmatprep.subr.bf16.mxu0 0
    %1762 = vmatpush2.bf16.msra.mxu0 %v1728
    %1763 = vmatprep.subr.bf16.mxu0 0
    %1764 = vmatpush2.bf16.msra.mxu0 %v1727
    %1765 = vmatprep.subr.bf16.mxu0 0
    %1766 = vmatpush2.bf16.msra.mxu0 %v1726
    %1767 = vmatprep.subr.bf16.mxu0 0
    %1768 = vmatpush2.bf16.msra.mxu0 %v1725
    %1769 = vmatprep.subr.bf16.mxu0 0
    %1770 = vmatpush2.bf16.msra.mxu0 %v1724
    %1771 = vmatprep.subr.bf16.mxu0 0
    %1772 = vmatpush2.bf16.msra.mxu0 %v1723
    %1773 = vmatprep.subr.bf16.mxu0 0
    %1774 = vmatpush2.bf16.msra.mxu0 %v1722
    %1775 = vmatprep.subr.bf16.mxu0 0
    %1776 = vmatpush2.bf16.msra.mxu0 %v1721
    %1777 = vmatprep.mubr.bf16.mxu0 %v1646
    %1778 = vmatmul.mubr.bf16.gmra.mxu0 %v1645
    %v1779 = vpop.f32.mrf.mxu0
    %v1780 = vadd.f32 %v1299, %v1779
    %v1781 = vpop.f32.mrf.mxu0
    %v1782 = vpop.f32.mrf.mxu0
    %v1783 = vpop.f32.mrf.mxu0
    %1784 = vdwg.mxu0
    %v1789 = vunpack.c.l.b16 %v382
    %v1790 = vunpack.c.l.b16 %v397
    %v1791 = vunpack.c.l.b16 %v412
    %v1792 = vunpack.c.l.b16 %v427
    %v1793 = vrot.slane %v1791, 7
    %v1794 = vsel %vm1337, %v1793, %v1789
    %v1795 = vrot.slane %v1792, 7
    %v1796 = vsel %vm1337, %v1795, %v1790
    %v1797 = vpack.c.b16 %v1794, %v1794
    %v1798 = vpack.c.b16 %v1796, %v1796
    %v1833 = vunpack.c.l.b16 %v1112
    %v1834 = vunpack.c.l.b16 %v1113
    %v1835 = vunpack.c.l.b16 %v1114
    %v1836 = vunpack.c.l.b16 %v1115
    %v1837 = vunpack.c.l.b16 %v1116
    %v1838 = vunpack.c.l.b16 %v1117
    %v1839 = vunpack.c.l.b16 %v1118
    %v1840 = vunpack.c.l.b16 %v1119
    %v1841 = vunpack.c.l.b16 %v1120
    %v1842 = vunpack.c.l.b16 %v1121
    %v1843 = vunpack.c.l.b16 %v1122
    %v1844 = vunpack.c.l.b16 %v1123
    %v1845 = vunpack.c.l.b16 %v1124
    %v1846 = vunpack.c.l.b16 %v1125
    %v1847 = vunpack.c.l.b16 %v1126
    %v1848 = vunpack.c.l.b16 %v1127
    %v1849 = vunpack.c.l.b16 %v1128
    %v1850 = vunpack.c.l.b16 %v1129
    %v1851 = vunpack.c.l.b16 %v1130
    %v1852 = vunpack.c.l.b16 %v1131
    %v1853 = vunpack.c.l.b16 %v1132
    %v1854 = vunpack.c.l.b16 %v1133
    %v1855 = vunpack.c.l.b16 %v1134
    %v1856 = vunpack.c.l.b16 %v1135
    %v1857 = vunpack.c.l.b16 %v1136
    %v1858 = vunpack.c.l.b16 %v1137
    %v1859 = vunpack.c.l.b16 %v1138
    %v1860 = vunpack.c.l.b16 %v1139
    %v1861 = vunpack.c.l.b16 %v1140
    %v1862 = vunpack.c.l.b16 %v1141
    %v1863 = vunpack.c.l.b16 %v1142
    %v1864 = vunpack.c.l.b16 %v1143
    %v1865 = vpack.c.b16 %v1834, %v1833
    %v1866 = vpack.c.b16 %v1836, %v1835
    %v1867 = vpack.c.b16 %v1838, %v1837
    %v1868 = vpack.c.b16 %v1840, %v1839
    %v1869 = vpack.c.b16 %v1842, %v1841
    %v1870 = vpack.c.b16 %v1844, %v1843
    %v1871 = vpack.c.b16 %v1846, %v1845
    %v1872 = vpack.c.b16 %v1848, %v1847
    %v1873 = vpack.c.b16 %v1850, %v1849
    %v1874 = vpack.c.b16 %v1852, %v1851
    %v1875 = vpack.c.b16 %v1854, %v1853
    %v1876 = vpack.c.b16 %v1856, %v1855
    %v1877 = vpack.c.b16 %v1858, %v1857
    %v1878 = vpack.c.b16 %v1860, %v1859
    %v1879 = vpack.c.b16 %v1862, %v1861
    %v1880 = vpack.c.b16 %v1864, %v1863
    %1897 = vmatprep.subr.bf16.mxu0 0
    %1898 = vmatpush1.bf16.msra.mxu0 %v1872
    %1899 = vmatprep.subr.bf16.mxu0 0
    %1900 = vmatpush1.bf16.msra.mxu0 %v1871
    %1901 = vmatprep.subr.bf16.mxu0 0
    %1902 = vmatpush1.bf16.msra.mxu0 %v1870
    %1903 = vmatprep.subr.bf16.mxu0 0
    %1904 = vmatpush1.bf16.msra.mxu0 %v1869
    %1905 = vmatprep.subr.bf16.mxu0 0
    %1906 = vmatpush1.bf16.msra.mxu0 %v1868
    %1907 = vmatprep.subr.bf16.mxu0 0
    %1908 = vmatpush1.bf16.msra.mxu0 %v1867
    %1909 = vmatprep.subr.bf16.mxu0 0
    %1910 = vmatpush1.bf16.msra.mxu0 %v1866
    %1911 = vmatprep.subr.bf16.mxu0 0
    %1912 = vmatpush1.bf16.msra.mxu0 %v1865
    %1913 = vmatprep.subr.bf16.mxu0 0
    %1914 = vmatpush2.bf16.msra.mxu0 %v1880
    %1915 = vmatprep.subr.bf16.mxu0 0
    %1916 = vmatpush2.bf16.msra.mxu0 %v1879
    %1917 = vmatprep.subr.bf16.mxu0 0
    %1918 = vmatpush2.bf16.msra.mxu0 %v1878
    %1919 = vmatprep.subr.bf16.mxu0 0
    %1920 = vmatpush2.bf16.msra.mxu0 %v1877
    %1921 = vmatprep.subr.bf16.mxu0 0
    %1922 = vmatpush2.bf16.msra.mxu0 %v1876
    %1923 = vmatprep.subr.bf16.mxu0 0
    %1924 = vmatpush2.bf16.msra.mxu0 %v1875
    %1925 = vmatprep.subr.bf16.mxu0 0
    %1926 = vmatpush2.bf16.msra.mxu0 %v1874
    %1927 = vmatprep.subr.bf16.mxu0 0
    %1928 = vmatpush2.bf16.msra.mxu0 %v1873
    %1929 = vmatprep.mubr.bf16.mxu0 %v1798
    %1930 = vmatmul.mubr.bf16.gmra.mxu0 %v1797
    %v1931 = vpop.f32.mrf.mxu0
    %v1932 = vadd.f32 %v1303, %v1931
    %v1933 = vpop.f32.mrf.mxu0
    %v1934 = vpop.f32.mrf.mxu0
    %v1935 = vpop.f32.mrf.mxu0
    %1936 = vdwg.mxu0
    %v1941 = vunpack.c.l.b16 %v562
    %v1942 = vunpack.c.l.b16 %v577
    %v1943 = vunpack.c.l.b16 %v592
    %v1944 = vunpack.c.l.b16 %v607
    %v1945 = vrot.slane %v1943, 7
    %v1946 = vsel %vm1337, %v1945, %v1941
    %v1947 = vrot.slane %v1944, 7
    %v1948 = vsel %vm1337, %v1947, %v1942
    %v1949 = vpack.c.b16 %v1946, %v1946
    %v1950 = vpack.c.b16 %v1948, %v1948
    %v1985 = vunpack.c.l.b16 %v1144
    %v1986 = vunpack.c.l.b16 %v1145
    %v1987 = vunpack.c.l.b16 %v1146
    %v1988 = vunpack.c.l.b16 %v1147
    %v1989 = vunpack.c.l.b16 %v1148
    %v1990 = vunpack.c.l.b16 %v1149
    %v1991 = vunpack.c.l.b16 %v1150
    %v1992 = vunpack.c.l.b16 %v1151
    %v1993 = vunpack.c.l.b16 %v1152
    %v1994 = vunpack.c.l.b16 %v1153
    %v1995 = vunpack.c.l.b16 %v1154
    %v1996 = vunpack.c.l.b16 %v1155
    %v1997 = vunpack.c.l.b16 %v1156
    %v1998 = vunpack.c.l.b16 %v1157
    %v1999 = vunpack.c.l.b16 %v1158
    %v2000 = vunpack.c.l.b16 %v1159
    %v2001 = vunpack.c.l.b16 %v1160
    %v2002 = vunpack.c.l.b16 %v1161
    %v2003 = vunpack.c.l.b16 %v1162
    %v2004 = vunpack.c.l.b16 %v1163
    %v2005 = vunpack.c.l.b16 %v1164
    %v2006 = vunpack.c.l.b16 %v1165
    %v2007 = vunpack.c.l.b16 %v1166
    %v2008 = vunpack.c.l.b16 %v1167
    %v2009 = vunpack.c.l.b16 %v1168
    %v2010 = vunpack.c.l.b16 %v1169
    %v2011 = vunpack.c.l.b16 %v1170
    %v2012 = vunpack.c.l.b16 %v1171
    %v2013 = vunpack.c.l.b16 %v1172
    %v2014 = vunpack.c.l.b16 %v1173
    %v2015 = vunpack.c.l.b16 %v1174
    %v2016 = vunpack.c.l.b16 %v1175
    %v2017 = vpack.c.b16 %v1986, %v1985
    %v2018 = vpack.c.b16 %v1988, %v1987
    %v2019 = vpack.c.b16 %v1990, %v1989
    %v2020 = vpack.c.b16 %v1992, %v1991
    %v2021 = vpack.c.b16 %v1994, %v1993
    %v2022 = vpack.c.b16 %v1996, %v1995
    %v2023 = vpack.c.b16 %v1998, %v1997
    %v2024 = vpack.c.b16 %v2000, %v1999
    %v2025 = vpack.c.b16 %v2002, %v2001
    %v2026 = vpack.c.b16 %v2004, %v2003
    %v2027 = vpack.c.b16 %v2006, %v2005
    %v2028 = vpack.c.b16 %v2008, %v2007
    %v2029 = vpack.c.b16 %v2010, %v2009
    %v2030 = vpack.c.b16 %v2012, %v2011
    %v2031 = vpack.c.b16 %v2014, %v2013
    %v2032 = vpack.c.b16 %v2016, %v2015
    %2049 = vmatprep.subr.bf16.mxu0 0
    %2050 = vmatpush1.bf16.msra.mxu0 %v2024
    %2051 = vmatprep.subr.bf16.mxu0 0
    %2052 = vmatpush1.bf16.msra.mxu0 %v2023
    %2053 = vmatprep.subr.bf16.mxu0 0
    %2054 = vmatpush1.bf16.msra.mxu0 %v2022
    %2055 = vmatprep.subr.bf16.mxu0 0
    %2056 = vmatpush1.bf16.msra.mxu0 %v2021
    %2057 = vmatprep.subr.bf16.mxu0 0
    %2058 = vmatpush1.bf16.msra.mxu0 %v2020
    %2059 = vmatprep.subr.bf16.mxu0 0
    %2060 = vmatpush1.bf16.msra.mxu0 %v2019
    %2061 = vmatprep.subr.bf16.mxu0 0
    %2062 = vmatpush1.bf16.msra.mxu0 %v2018
    %2063 = vmatprep.subr.bf16.mxu0 0
    %2064 = vmatpush1.bf16.msra.mxu0 %v2017
    %2065 = vmatprep.subr.bf16.mxu0 0
    %2066 = vmatpush2.bf16.msra.mxu0 %v2032
    %2067 = vmatprep.subr.bf16.mxu0 0
    %2068 = vmatpush2.bf16.msra.mxu0 %v2031
    %2069 = vmatprep.subr.bf16.mxu0 0
    %2070 = vmatpush2.bf16.msra.mxu0 %v2030
    %2071 = vmatprep.subr.bf16.mxu0 0
    %2072 = vmatpush2.bf16.msra.mxu0 %v2029
    %2073 = vmatprep.subr.bf16.mxu0 0
    %2074 = vmatpush2.bf16.msra.mxu0 %v2028
    %2075 = vmatprep.subr.bf16.mxu0 0
    %2076 = vmatpush2.bf16.msra.mxu0 %v2027
    %2077 = vmatprep.subr.bf16.mxu0 0
    %2078 = vmatpush2.bf16.msra.mxu0 %v2026
    %2079 = vmatprep.subr.bf16.mxu0 0
    %2080 = vmatpush2.bf16.msra.mxu0 %v2025
    %2081 = vmatprep.mubr.bf16.mxu0 %v1950
    %2082 = vmatmul.mubr.bf16.gmra.mxu0 %v1949
    %v2083 = vpop.f32.mrf.mxu0
    %v2084 = vadd.f32 %v1307, %v2083
    %v2085 = vpop.f32.mrf.mxu0
    %v2086 = vpop.f32.mrf.mxu0
    %v2087 = vpop.f32.mrf.mxu0
    %2088 = vdwg.mxu0
    %v2093 = vunpack.c.l.b16 %v704
    %v2094 = vunpack.c.l.b16 %v717
    %v2095 = vunpack.c.l.b16 %v730
    %v2096 = vunpack.c.l.b16 %v743
    %v2097 = vrot.slane %v2095, 7
    %v2098 = vsel %vm1337, %v2097, %v2093
    %v2099 = vrot.slane %v2096, 7
    %v2100 = vsel %vm1337, %v2099, %v2094
    %v2101 = vpack.c.b16 %v2098, %v2098
    %v2102 = vpack.c.b16 %v2100, %v2100
    %v2137 = vunpack.c.l.b16 %v1176
    %v2138 = vunpack.c.l.b16 %v1177
    %v2139 = vunpack.c.l.b16 %v1178
    %v2140 = vunpack.c.l.b16 %v1179
    %v2141 = vunpack.c.l.b16 %v1180
    %v2142 = vunpack.c.l.b16 %v1181
    %v2143 = vunpack.c.l.b16 %v1182
    %v2144 = vunpack.c.l.b16 %v1183
    %v2145 = vunpack.c.l.b16 %v1184
    %v2146 = vunpack.c.l.b16 %v1185
    %v2147 = vunpack.c.l.b16 %v1186
    %v2148 = vunpack.c.l.b16 %v1187
    %v2149 = vunpack.c.l.b16 %v1188
    %v2150 = vunpack.c.l.b16 %v1189
    %v2151 = vunpack.c.l.b16 %v1190
    %v2152 = vunpack.c.l.b16 %v1191
    %v2153 = vunpack.c.l.b16 %v1192
    %v2154 = vunpack.c.l.b16 %v1193
    %v2155 = vunpack.c.l.b16 %v1194
    %v2156 = vunpack.c.l.b16 %v1195
    %v2157 = vunpack.c.l.b16 %v1196
    %v2158 = vunpack.c.l.b16 %v1197
    %v2159 = vunpack.c.l.b16 %v1198
    %v2160 = vunpack.c.l.b16 %v1199
    %v2161 = vunpack.c.l.b16 %v1200
    %v2162 = vunpack.c.l.b16 %v1201
    %v2163 = vunpack.c.l.b16 %v1202
    %v2164 = vunpack.c.l.b16 %v1203
    %v2165 = vunpack.c.l.b16 %v1204
    %v2166 = vunpack.c.l.b16 %v1205
    %v2167 = vunpack.c.l.b16 %v1206
    %v2168 = vunpack.c.l.b16 %v1207
    %v2169 = vpack.c.b16 %v2138, %v2137
    %v2170 = vpack.c.b16 %v2140, %v2139
    %v2171 = vpack.c.b16 %v2142, %v2141
    %v2172 = vpack.c.b16 %v2144, %v2143
    %v2173 = vpack.c.b16 %v2146, %v2145
    %v2174 = vpack.c.b16 %v2148, %v2147
    %v2175 = vpack.c.b16 %v2150, %v2149
    %v2176 = vpack.c.b16 %v2152, %v2151
    %v2177 = vpack.c.b16 %v2154, %v2153
    %v2178 = vpack.c.b16 %v2156, %v2155
    %v2179 = vpack.c.b16 %v2158, %v2157
    %v2180 = vpack.c.b16 %v2160, %v2159
    %v2181 = vpack.c.b16 %v2162, %v2161
    %v2182 = vpack.c.b16 %v2164, %v2163
    %v2183 = vpack.c.b16 %v2166, %v2165
    %v2184 = vpack.c.b16 %v2168, %v2167
    %2201 = vmatprep.subr.bf16.mxu0 0
    %2202 = vmatpush1.bf16.msra.mxu0 %v2176
    %2203 = vmatprep.subr.bf16.mxu0 0
    %2204 = vmatpush1.bf16.msra.mxu0 %v2175
    %2205 = vmatprep.subr.bf16.mxu0 0
    %2206 = vmatpush1.bf16.msra.mxu0 %v2174
    %2207 = vmatprep.subr.bf16.mxu0 0
    %2208 = vmatpush1.bf16.msra.mxu0 %v2173
    %2209 = vmatprep.subr.bf16.mxu0 0
    %2210 = vmatpush1.bf16.msra.mxu0 %v2172
    %2211 = vmatprep.subr.bf16.mxu0 0
    %2212 = vmatpush1.bf16.msra.mxu0 %v2171
    %2213 = vmatprep.subr.bf16.mxu0 0
    %2214 = vmatpush1.bf16.msra.mxu0 %v2170
    %2215 = vmatprep.subr.bf16.mxu0 0
    %2216 = vmatpush1.bf16.msra.mxu0 %v2169
    %2217 = vmatprep.subr.bf16.mxu0 0
    %2218 = vmatpush2.bf16.msra.mxu0 %v2184
    %2219 = vmatprep.subr.bf16.mxu0 0
    %2220 = vmatpush2.bf16.msra.mxu0 %v2183
    %2221 = vmatprep.subr.bf16.mxu0 0
    %2222 = vmatpush2.bf16.msra.mxu0 %v2182
    %2223 = vmatprep.subr.bf16.mxu0 0
    %2224 = vmatpush2.bf16.msra.mxu0 %v2181
    %2225 = vmatprep.subr.bf16.mxu0 0
    %2226 = vmatpush2.bf16.msra.mxu0 %v2180
    %2227 = vmatprep.subr.bf16.mxu0 0
    %2228 = vmatpush2.bf16.msra.mxu0 %v2179
    %2229 = vmatprep.subr.bf16.mxu0 0
    %2230 = vmatpush2.bf16.msra.mxu0 %v2178
    %2231 = vmatprep.subr.bf16.mxu0 0
    %2232 = vmatpush2.bf16.msra.mxu0 %v2177
    %2233 = vmatprep.mubr.bf16.mxu0 %v2102
    %2234 = vmatmul.mubr.bf16.gmra.mxu0 %v2101
    %v2235 = vpop.f32.mrf.mxu0
    %v2236 = vadd.f32 %v1311, %v2235
    %v2237 = vpop.f32.mrf.mxu0
    %v2238 = vpop.f32.mrf.mxu0
    %v2239 = vpop.f32.mrf.mxu0
    %2240 = vdwg.mxu0
    %v2245 = vunpack.c.l.b16 %v836
    %v2246 = vunpack.c.l.b16 %v849
    %v2247 = vunpack.c.l.b16 %v862
    %v2248 = vunpack.c.l.b16 %v875
    %v2249 = vrot.slane %v2247, 7
    %v2250 = vsel %vm1337, %v2249, %v2245
    %v2251 = vrot.slane %v2248, 7
    %v2252 = vsel %vm1337, %v2251, %v2246
    %v2253 = vpack.c.b16 %v2250, %v2250
    %v2254 = vpack.c.b16 %v2252, %v2252
    %v2289 = vunpack.c.l.b16 %v1208
    %v2290 = vunpack.c.l.b16 %v1209
    %v2291 = vunpack.c.l.b16 %v1210
    %v2292 = vunpack.c.l.b16 %v1211
    %v2293 = vunpack.c.l.b16 %v1212
    %v2294 = vunpack.c.l.b16 %v1213
    %v2295 = vunpack.c.l.b16 %v1214
    %v2296 = vunpack.c.l.b16 %v1215
    %v2297 = vunpack.c.l.b16 %v1216
    %v2298 = vunpack.c.l.b16 %v1217
    %v2299 = vunpack.c.l.b16 %v1218
    %v2300 = vunpack.c.l.b16 %v1219
    %v2301 = vunpack.c.l.b16 %v1220
    %v2302 = vunpack.c.l.b16 %v1221
    %v2303 = vunpack.c.l.b16 %v1222
    %v2304 = vunpack.c.l.b16 %v1223
    %v2305 = vunpack.c.l.b16 %v1224
    %v2306 = vunpack.c.l.b16 %v1225
    %v2307 = vunpack.c.l.b16 %v1226
    %v2308 = vunpack.c.l.b16 %v1227
    %v2309 = vunpack.c.l.b16 %v1228
    %v2310 = vunpack.c.l.b16 %v1229
    %v2311 = vunpack.c.l.b16 %v1230
    %v2312 = vunpack.c.l.b16 %v1231
    %v2313 = vunpack.c.l.b16 %v1232
    %v2314 = vunpack.c.l.b16 %v1233
    %v2315 = vunpack.c.l.b16 %v1234
    %v2316 = vunpack.c.l.b16 %v1235
    %v2317 = vunpack.c.l.b16 %v1236
    %v2318 = vunpack.c.l.b16 %v1237
    %v2319 = vunpack.c.l.b16 %v1238
    %v2320 = vunpack.c.l.b16 %v1239
    %v2321 = vpack.c.b16 %v2290, %v2289
    %v2322 = vpack.c.b16 %v2292, %v2291
    %v2323 = vpack.c.b16 %v2294, %v2293
    %v2324 = vpack.c.b16 %v2296, %v2295
    %v2325 = vpack.c.b16 %v2298, %v2297
    %v2326 = vpack.c.b16 %v2300, %v2299
    %v2327 = vpack.c.b16 %v2302, %v2301
    %v2328 = vpack.c.b16 %v2304, %v2303
    %v2329 = vpack.c.b16 %v2306, %v2305
    %v2330 = vpack.c.b16 %v2308, %v2307
    %v2331 = vpack.c.b16 %v2310, %v2309
    %v2332 = vpack.c.b16 %v2312, %v2311
    %v2333 = vpack.c.b16 %v2314, %v2313
    %v2334 = vpack.c.b16 %v2316, %v2315
    %v2335 = vpack.c.b16 %v2318, %v2317
    %v2336 = vpack.c.b16 %v2320, %v2319
    %2353 = vmatprep.subr.bf16.mxu0 0
    %2354 = vmatpush1.bf16.msra.mxu0 %v2328
    %2355 = vmatprep.subr.bf16.mxu0 0
    %2356 = vmatpush1.bf16.msra.mxu0 %v2327
    %2357 = vmatprep.subr.bf16.mxu0 0
    %2358 = vmatpush1.bf16.msra.mxu0 %v2326
    %2359 = vmatprep.subr.bf16.mxu0 0
    %2360 = vmatpush1.bf16.msra.mxu0 %v2325
    %2361 = vmatprep.subr.bf16.mxu0 0
    %2362 = vmatpush1.bf16.msra.mxu0 %v2324
    %2363 = vmatprep.subr.bf16.mxu0 0
    %2364 = vmatpush1.bf16.msra.mxu0 %v2323
    %2365 = vmatprep.subr.bf16.mxu0 0
    %2366 = vmatpush1.bf16.msra.mxu0 %v2322
    %2367 = vmatprep.subr.bf16.mxu0 0
    %2368 = vmatpush1.bf16.msra.mxu0 %v2321
    %2369 = vmatprep.subr.bf16.mxu0 0
    %2370 = vmatpush2.bf16.msra.mxu0 %v2336
    %2371 = vmatprep.subr.bf16.mxu0 0
    %2372 = vmatpush2.bf16.msra.mxu0 %v2335
    %2373 = vmatprep.subr.bf16.mxu0 0
    %2374 = vmatpush2.bf16.msra.mxu0 %v2334
    %2375 = vmatprep.subr.bf16.mxu0 0
    %2376 = vmatpush2.bf16.msra.mxu0 %v2333
    %2377 = vmatprep.subr.bf16.mxu0 0
    %2378 = vmatpush2.bf16.msra.mxu0 %v2332
    %2379 = vmatprep.subr.bf16.mxu0 0
    %2380 = vmatpush2.bf16.msra.mxu0 %v2331
    %2381 = vmatprep.subr.bf16.mxu0 0
    %2382 = vmatpush2.bf16.msra.mxu0 %v2330
    %2383 = vmatprep.subr.bf16.mxu0 0
    %2384 = vmatpush2.bf16.msra.mxu0 %v2329
    %2385 = vmatprep.mubr.bf16.mxu0 %v2254
    %2386 = vmatmul.mubr.bf16.gmra.mxu0 %v2253
    %v2387 = vpop.f32.mrf.mxu0
    %v2388 = vadd.f32 %v1315, %v2387
    %v2389 = vpop.f32.mrf.mxu0
    %v2390 = vpop.f32.mrf.mxu0
    %v2391 = vpop.f32.mrf.mxu0
    %2392 = vdwg.mxu0
    %v2397 = vunpack.c.l.b16 %v968
    %v2398 = vunpack.c.l.b16 %v981
    %v2399 = vunpack.c.l.b16 %v994
    %v2400 = vunpack.c.l.b16 %v1007
    %v2401 = vrot.slane %v2399, 7
    %v2402 = vsel %vm1337, %v2401, %v2397
    %v2403 = vrot.slane %v2400, 7
    %v2404 = vsel %vm1337, %v2403, %v2398
    %v2405 = vpack.c.b16 %v2402, %v2402
    %v2406 = vpack.c.b16 %v2404, %v2404
    %v2441 = vunpack.c.l.b16 %v1240
    %v2442 = vunpack.c.l.b16 %v1241
    %v2443 = vunpack.c.l.b16 %v1242
    %v2444 = vunpack.c.l.b16 %v1243
    %v2445 = vunpack.c.l.b16 %v1244
    %v2446 = vunpack.c.l.b16 %v1245
    %v2447 = vunpack.c.l.b16 %v1246
    %v2448 = vunpack.c.l.b16 %v1247
    %v2449 = vunpack.c.l.b16 %v1248
    %v2450 = vunpack.c.l.b16 %v1249
    %v2451 = vunpack.c.l.b16 %v1250
    %v2452 = vunpack.c.l.b16 %v1251
    %v2453 = vunpack.c.l.b16 %v1252
    %v2454 = vunpack.c.l.b16 %v1253
    %v2455 = vunpack.c.l.b16 %v1254
    %v2456 = vunpack.c.l.b16 %v1255
    %v2457 = vunpack.c.l.b16 %v1256
    %v2458 = vunpack.c.l.b16 %v1257
    %v2459 = vunpack.c.l.b16 %v1258
    %v2460 = vunpack.c.l.b16 %v1259
    %v2461 = vunpack.c.l.b16 %v1260
    %v2462 = vunpack.c.l.b16 %v1261
    %v2463 = vunpack.c.l.b16 %v1262
    %v2464 = vunpack.c.l.b16 %v1263
    %v2465 = vunpack.c.l.b16 %v1264
    %v2466 = vunpack.c.l.b16 %v1265
    %v2467 = vunpack.c.l.b16 %v1266
    %v2468 = vunpack.c.l.b16 %v1267
    %v2469 = vunpack.c.l.b16 %v1268
    %v2470 = vunpack.c.l.b16 %v1269
    %v2471 = vunpack.c.l.b16 %v1270
    %v2472 = vunpack.c.l.b16 %v1271
    %v2473 = vpack.c.b16 %v2442, %v2441
    %v2474 = vpack.c.b16 %v2444, %v2443
    %v2475 = vpack.c.b16 %v2446, %v2445
    %v2476 = vpack.c.b16 %v2448, %v2447
    %v2477 = vpack.c.b16 %v2450, %v2449
    %v2478 = vpack.c.b16 %v2452, %v2451
    %v2479 = vpack.c.b16 %v2454, %v2453
    %v2480 = vpack.c.b16 %v2456, %v2455
    %v2481 = vpack.c.b16 %v2458, %v2457
    %v2482 = vpack.c.b16 %v2460, %v2459
    %v2483 = vpack.c.b16 %v2462, %v2461
    %v2484 = vpack.c.b16 %v2464, %v2463
    %v2485 = vpack.c.b16 %v2466, %v2465
    %v2486 = vpack.c.b16 %v2468, %v2467
    %v2487 = vpack.c.b16 %v2470, %v2469
    %v2488 = vpack.c.b16 %v2472, %v2471
    %2505 = vmatprep.subr.bf16.mxu0 0
    %2506 = vmatpush1.bf16.msra.mxu0 %v2480
    %2507 = vmatprep.subr.bf16.mxu0 0
    %2508 = vmatpush1.bf16.msra.mxu0 %v2479
    %2509 = vmatprep.subr.bf16.mxu0 0
    %2510 = vmatpush1.bf16.msra.mxu0 %v2478
    %2511 = vmatprep.subr.bf16.mxu0 0
    %2512 = vmatpush1.bf16.msra.mxu0 %v2477
    %2513 = vmatprep.subr.bf16.mxu0 0
    %2514 = vmatpush1.bf16.msra.mxu0 %v2476
    %2515 = vmatprep.subr.bf16.mxu0 0
    %2516 = vmatpush1.bf16.msra.mxu0 %v2475
    %2517 = vmatprep.subr.bf16.mxu0 0
    %2518 = vmatpush1.bf16.msra.mxu0 %v2474
    %2519 = vmatprep.subr.bf16.mxu0 0
    %2520 = vmatpush1.bf16.msra.mxu0 %v2473
    %2521 = vmatprep.subr.bf16.mxu0 0
    %2522 = vmatpush2.bf16.msra.mxu0 %v2488
    %2523 = vmatprep.subr.bf16.mxu0 0
    %2524 = vmatpush2.bf16.msra.mxu0 %v2487
    %2525 = vmatprep.subr.bf16.mxu0 0
    %2526 = vmatpush2.bf16.msra.mxu0 %v2486
    %2527 = vmatprep.subr.bf16.mxu0 0
    %2528 = vmatpush2.bf16.msra.mxu0 %v2485
    %2529 = vmatprep.subr.bf16.mxu0 0
    %2530 = vmatpush2.bf16.msra.mxu0 %v2484
    %2531 = vmatprep.subr.bf16.mxu0 0
    %2532 = vmatpush2.bf16.msra.mxu0 %v2483
    %2533 = vmatprep.subr.bf16.mxu0 0
    %2534 = vmatpush2.bf16.msra.mxu0 %v2482
    %2535 = vmatprep.subr.bf16.mxu0 0
    %2536 = vmatpush2.bf16.msra.mxu0 %v2481
    %2537 = vmatprep.mubr.bf16.mxu0 %v2406
    %2538 = vmatmul.mubr.bf16.gmra.mxu0 %v2405
    %v2539 = vpop.f32.mrf.mxu0
    %v2540 = vadd.f32 %v1319, %v2539
    %v2541 = vpop.f32.mrf.mxu0
    %v2542 = vpop.f32.mrf.mxu0
    %v2543 = vpop.f32.mrf.mxu0
    %2544 = vdwg.mxu0
    %v2545 = vmax.f32 %v1476, 0.0
    %v2546 = vmax.f32 %v1628, 0.0
    %v2547 = vmax.f32 %v1780, 0.0
    %v2548 = vmax.f32 %v1932, 0.0
    %v2549 = vmax.f32 %v2084, 0.0
    %v2550 = vmax.f32 %v2236, 0.0
    %v2551 = vmax.f32 %v2388, 0.0
    %v2552 = vmax.f32 %v2540, 0.0
    %v2553 = vpack.c.bf16 %v2548, %v2548
    %v2554 = vpack.c.bf16 %v2549, %v2549
    %v2555 = vpack.c.bf16 %v2550, %v2550
    %v2556 = vpack.c.bf16 %v2551, %v2551
    %v2557 = vpack.c.bf16 %v2552, %v2552
    %v2558 = vsel %vm1337, %v1334, %v1332
    %v2559 = vsel %vm1337, %v1335, %v1333
    %v2560 = vpack.c.b16 %v2558, %v2558
    %v2561 = vpack.c.b16 %v2559, %v2559
    %v2564 = vsel %vm1337, %v1487, %v1485
    %v2565 = vsel %vm1337, %v1488, %v1486
    %v2566 = vpack.c.b16 %v2564, %v2564
    %v2567 = vpack.c.b16 %v2565, %v2565
    %v2570 = vsel %vm1337, %v1639, %v1637
    %v2571 = vsel %vm1337, %v1640, %v1638
    %v2572 = vpack.c.b16 %v2570, %v2570
    %v2573 = vpack.c.b16 %v2571, %v2571
    %v2576 = vld [vmem:[%s5] sm:$0xf]
    %v2577 = vld [vmem:[%s5 + $0x4] sm:$0xf]
    %v2578 = vld [vmem:[%s5 + $0x8] sm:$0xf]
    %v2579 = vld [vmem:[%s5 + $0xc] sm:$0xf]
    %v2580 = vld [vmem:[%s5 + $0x10] sm:$0xf]
    %v2581 = vld [vmem:[%s5 + $0x14] sm:$0xf]
    %v2582 = vld [vmem:[%s5 + $0x18] sm:$0xf]
    %v2583 = vld [vmem:[%s5 + $0x1c] sm:$0xf]
    %v2584 = vld [vmem:[%s5 + $0x20] sm:$0xf]
    %v2585 = vld [vmem:[%s5 + $0x24] sm:$0xf]
    %v2586 = vld [vmem:[%s5 + $0x28] sm:$0xf]
    %v2587 = vld [vmem:[%s5 + $0x2c] sm:$0xf]
    %v2588 = vld [vmem:[%s5 + $0x30] sm:$0xf]
    %v2589 = vld [vmem:[%s5 + $0x34] sm:$0xf]
    %v2590 = vld [vmem:[%s5 + $0x38] sm:$0xf]
    %v2591 = vld [vmem:[%s5 + $0x3c] sm:$0xf]
    %v2592 = vld [vmem:[%s5 + $0x40] sm:$0xf]
    %v2593 = vld [vmem:[%s5 + $0x44] sm:$0xf]
    %v2594 = vld [vmem:[%s5 + $0x48] sm:$0xf]
    %v2595 = vld [vmem:[%s5 + $0x4c] sm:$0xf]
    %v2596 = vld [vmem:[%s5 + $0x50] sm:$0xf]
    %v2597 = vld [vmem:[%s5 + $0x54] sm:$0xf]
    %v2598 = vld [vmem:[%s5 + $0x58] sm:$0xf]
    %v2599 = vld [vmem:[%s5 + $0x5c] sm:$0xf]
    %v2600 = vld [vmem:[%s5 + $0x60] sm:$0xf]
    %v2601 = vld [vmem:[%s5 + $0x64] sm:$0xf]
    %v2602 = vld [vmem:[%s5 + $0x68] sm:$0xf]
    %v2603 = vld [vmem:[%s5 + $0x6c] sm:$0xf]
    %v2604 = vld [vmem:[%s5 + $0x70] sm:$0xf]
    %v2605 = vld [vmem:[%s5 + $0x74] sm:$0xf]
    %v2606 = vld [vmem:[%s5 + $0x78] sm:$0xf]
    %v2607 = vld [vmem:[%s5 + $0x7c] sm:$0xf]
    %v2608 = vld [vmem:[%s5 + $0x80] sm:$0xf]
    %v2609 = vld [vmem:[%s5 + $0x84] sm:$0xf]
    %v2610 = vld [vmem:[%s5 + $0x88] sm:$0xf]
    %v2611 = vld [vmem:[%s5 + $0x8c] sm:$0xf]
    %v2612 = vld [vmem:[%s5 + $0x90] sm:$0xf]
    %v2613 = vld [vmem:[%s5 + $0x94] sm:$0xf]
    %v2614 = vld [vmem:[%s5 + $0x98] sm:$0xf]
    %v2615 = vld [vmem:[%s5 + $0x9c] sm:$0xf]
    %v2616 = vld [vmem:[%s5 + $0xa0] sm:$0xf]
    %v2617 = vld [vmem:[%s5 + $0xa4] sm:$0xf]
    %v2618 = vld [vmem:[%s5 + $0xa8] sm:$0xf]
    %v2619 = vld [vmem:[%s5 + $0xac] sm:$0xf]
    %v2620 = vld [vmem:[%s5 + $0xb0] sm:$0xf]
    %v2621 = vld [vmem:[%s5 + $0xb4] sm:$0xf]
    %v2622 = vld [vmem:[%s5 + $0xb8] sm:$0xf]
    %v2623 = vld [vmem:[%s5 + $0xbc] sm:$0xf]
    %v2624 = vld [vmem:[%s5 + $0xc0] sm:$0xf]
    %v2625 = vld [vmem:[%s5 + $0xc4] sm:$0xf]
    %v2626 = vld [vmem:[%s5 + $0xc8] sm:$0xf]
    %v2627 = vld [vmem:[%s5 + $0xcc] sm:$0xf]
    %v2628 = vld [vmem:[%s5 + $0xd0] sm:$0xf]
    %v2629 = vld [vmem:[%s5 + $0xd4] sm:$0xf]
    %v2630 = vld [vmem:[%s5 + $0xd8] sm:$0xf]
    %v2631 = vld [vmem:[%s5 + $0xdc] sm:$0xf]
    %v2632 = vld [vmem:[%s5 + $0xe0] sm:$0xf]
    %v2633 = vld [vmem:[%s5 + $0xe4] sm:$0xf]
    %v2634 = vld [vmem:[%s5 + $0xe8] sm:$0xf]
    %v2635 = vld [vmem:[%s5 + $0xec] sm:$0xf]
    %v2636 = vld [vmem:[%s5 + $0xf0] sm:$0xf]
    %v2637 = vld [vmem:[%s5 + $0xf4] sm:$0xf]
    %v2638 = vld [vmem:[%s5 + $0xf8] sm:$0xf]
    %v2639 = vld [vmem:[%s5 + $0xfc] sm:$0xf]
    %v2640 = vld [vmem:[%s5 + $0x100] sm:$0xf]
    %v2641 = vld [vmem:[%s5 + $0x104] sm:$0xf]
    %v2642 = vld [vmem:[%s5 + $0x108] sm:$0xf]
    %v2643 = vld [vmem:[%s5 + $0x10c] sm:$0xf]
    %v2644 = vld [vmem:[%s5 + $0x110] sm:$0xf]
    %v2645 = vld [vmem:[%s5 + $0x114] sm:$0xf]
    %v2646 = vld [vmem:[%s5 + $0x118] sm:$0xf]
    %v2647 = vld [vmem:[%s5 + $0x11c] sm:$0xf]
    %v2648 = vld [vmem:[%s5 + $0x120] sm:$0xf]
    %v2649 = vld [vmem:[%s5 + $0x124] sm:$0xf]
    %v2650 = vld [vmem:[%s5 + $0x128] sm:$0xf]
    %v2651 = vld [vmem:[%s5 + $0x12c] sm:$0xf]
    %v2652 = vld [vmem:[%s5 + $0x130] sm:$0xf]
    %v2653 = vld [vmem:[%s5 + $0x134] sm:$0xf]
    %v2654 = vld [vmem:[%s5 + $0x138] sm:$0xf]
    %v2655 = vld [vmem:[%s5 + $0x13c] sm:$0xf]
    %v2656 = vld [vmem:[%s5 + $0x140] sm:$0xf]
    %v2657 = vld [vmem:[%s5 + $0x144] sm:$0xf]
    %v2658 = vld [vmem:[%s5 + $0x148] sm:$0xf]
    %v2659 = vld [vmem:[%s5 + $0x14c] sm:$0xf]
    %v2660 = vld [vmem:[%s5 + $0x150] sm:$0xf]
    %v2661 = vld [vmem:[%s5 + $0x154] sm:$0xf]
    %v2662 = vld [vmem:[%s5 + $0x158] sm:$0xf]
    %v2663 = vld [vmem:[%s5 + $0x15c] sm:$0xf]
    %v2664 = vld [vmem:[%s5 + $0x160] sm:$0xf]
    %v2665 = vld [vmem:[%s5 + $0x164] sm:$0xf]
    %v2666 = vld [vmem:[%s5 + $0x168] sm:$0xf]
    %v2667 = vld [vmem:[%s5 + $0x16c] sm:$0xf]
    %v2668 = vld [vmem:[%s5 + $0x170] sm:$0xf]
    %v2669 = vld [vmem:[%s5 + $0x174] sm:$0xf]
    %v2670 = vld [vmem:[%s5 + $0x178] sm:$0xf]
    %v2671 = vld [vmem:[%s5 + $0x17c] sm:$0xf]
    %v2672 = vld [vmem:[%s5 + $0x180] sm:$0xf]
    %v2673 = vld [vmem:[%s5 + $0x184] sm:$0xf]
    %v2674 = vld [vmem:[%s5 + $0x188] sm:$0xf]
    %v2675 = vld [vmem:[%s5 + $0x18c] sm:$0xf]
    %v2676 = vld [vmem:[%s5 + $0x190] sm:$0xf]
    %v2677 = vld [vmem:[%s5 + $0x194] sm:$0xf]
    %v2678 = vld [vmem:[%s5 + $0x198] sm:$0xf]
    %v2679 = vld [vmem:[%s5 + $0x19c] sm:$0xf]
    %v2680 = vld [vmem:[%s5 + $0x1a0] sm:$0xf]
    %v2681 = vld [vmem:[%s5 + $0x1a4] sm:$0xf]
    %v2682 = vld [vmem:[%s5 + $0x1a8] sm:$0xf]
    %v2683 = vld [vmem:[%s5 + $0x1ac] sm:$0xf]
    %v2684 = vld [vmem:[%s5 + $0x1b0] sm:$0xf]
    %v2685 = vld [vmem:[%s5 + $0x1b4] sm:$0xf]
    %v2686 = vld [vmem:[%s5 + $0x1b8] sm:$0xf]
    %v2687 = vld [vmem:[%s5 + $0x1bc] sm:$0xf]
    %v2688 = vld [vmem:[%s5 + $0x1c0] sm:$0xf]
    %v2689 = vld [vmem:[%s5 + $0x1c4] sm:$0xf]
    %v2690 = vld [vmem:[%s5 + $0x1c8] sm:$0xf]
    %v2691 = vld [vmem:[%s5 + $0x1cc] sm:$0xf]
    %v2692 = vld [vmem:[%s5 + $0x1d0] sm:$0xf]
    %v2693 = vld [vmem:[%s5 + $0x1d4] sm:$0xf]
    %v2694 = vld [vmem:[%s5 + $0x1d8] sm:$0xf]
    %v2695 = vld [vmem:[%s5 + $0x1dc] sm:$0xf]
    %v2696 = vld [vmem:[%s5 + $0x1e0] sm:$0xf]
    %v2697 = vld [vmem:[%s5 + $0x1e4] sm:$0xf]
    %v2698 = vld [vmem:[%s5 + $0x1e8] sm:$0xf]
    %v2699 = vld [vmem:[%s5 + $0x1ec] sm:$0xf]
    %v2700 = vld [vmem:[%s5 + $0x1f0] sm:$0xf]
    %v2701 = vld [vmem:[%s5 + $0x1f4] sm:$0xf]
    %v2702 = vld [vmem:[%s5 + $0x1f8] sm:$0xf]
    %v2703 = vld [vmem:[%s5 + $0x1fc] sm:$0xf]
    %v2704 = vld [vmem:[%s5 + $0x200] sm:$0xf]
    %v2705 = vld [vmem:[%s5 + $0x204] sm:$0xf]
    %v2706 = vld [vmem:[%s5 + $0x208] sm:$0xf]
    %v2707 = vld [vmem:[%s5 + $0x20c] sm:$0xf]
    %v2708 = vld [vmem:[%s5 + $0x210] sm:$0xf]
    %v2709 = vld [vmem:[%s5 + $0x214] sm:$0xf]
    %v2710 = vld [vmem:[%s5 + $0x218] sm:$0xf]
    %v2711 = vld [vmem:[%s5 + $0x21c] sm:$0xf]
    %v2712 = vld [vmem:[%s5 + $0x220] sm:$0xf]
    %v2713 = vld [vmem:[%s5 + $0x224] sm:$0xf]
    %v2714 = vld [vmem:[%s5 + $0x228] sm:$0xf]
    %v2715 = vld [vmem:[%s5 + $0x22c] sm:$0xf]
    %v2716 = vld [vmem:[%s5 + $0x230] sm:$0xf]
    %v2717 = vld [vmem:[%s5 + $0x234] sm:$0xf]
    %v2718 = vld [vmem:[%s5 + $0x238] sm:$0xf]
    %v2719 = vld [vmem:[%s5 + $0x23c] sm:$0xf]
    %v2720 = vld [vmem:[%s5 + $0x240] sm:$0xf]
    %v2721 = vld [vmem:[%s5 + $0x244] sm:$0xf]
    %v2722 = vld [vmem:[%s5 + $0x248] sm:$0xf]
    %v2723 = vld [vmem:[%s5 + $0x24c] sm:$0xf]
    %v2724 = vld [vmem:[%s5 + $0x250] sm:$0xf]
    %v2725 = vld [vmem:[%s5 + $0x254] sm:$0xf]
    %v2726 = vld [vmem:[%s5 + $0x258] sm:$0xf]
    %v2727 = vld [vmem:[%s5 + $0x25c] sm:$0xf]
    %v2728 = vld [vmem:[%s5 + $0x260] sm:$0xf]
    %v2729 = vld [vmem:[%s5 + $0x264] sm:$0xf]
    %v2730 = vld [vmem:[%s5 + $0x268] sm:$0xf]
    %v2731 = vld [vmem:[%s5 + $0x26c] sm:$0xf]
    %v2732 = vld [vmem:[%s5 + $0x270] sm:$0xf]
    %v2733 = vld [vmem:[%s5 + $0x274] sm:$0xf]
    %v2734 = vld [vmem:[%s5 + $0x278] sm:$0xf]
    %v2735 = vld [vmem:[%s5 + $0x27c] sm:$0xf]
    %v2736 = vld [vmem:[%s5 + $0x280] sm:$0xf]
    %v2737 = vld [vmem:[%s5 + $0x284] sm:$0xf]
    %v2738 = vld [vmem:[%s5 + $0x288] sm:$0xf]
    %v2739 = vld [vmem:[%s5 + $0x28c] sm:$0xf]
    %v2740 = vld [vmem:[%s5 + $0x290] sm:$0xf]
    %v2741 = vld [vmem:[%s5 + $0x294] sm:$0xf]
    %v2742 = vld [vmem:[%s5 + $0x298] sm:$0xf]
    %v2743 = vld [vmem:[%s5 + $0x29c] sm:$0xf]
    %v2744 = vld [vmem:[%s5 + $0x2a0] sm:$0xf]
    %v2745 = vld [vmem:[%s5 + $0x2a4] sm:$0xf]
    %v2746 = vld [vmem:[%s5 + $0x2a8] sm:$0xf]
    %v2747 = vld [vmem:[%s5 + $0x2ac] sm:$0xf]
    %v2748 = vld [vmem:[%s5 + $0x2b0] sm:$0xf]
    %v2749 = vld [vmem:[%s5 + $0x2b4] sm:$0xf]
    %v2750 = vld [vmem:[%s5 + $0x2b8] sm:$0xf]
    %v2751 = vld [vmem:[%s5 + $0x2bc] sm:$0xf]
    %v2752 = vld [vmem:[%s6] sm:$0x1]
    %v2754 = vlaneseq
    %v2755 = vshrl.u32 %v2754, 7
    %v2756 = vsub.s32 0, %v2755
    %v2757 = vrot.slane %v2752, %v2756
    %v2935 = vunpack.c.l.b16 %v2576
    %v2936 = vunpack.c.l.b16 %v2577
    %v2937 = vunpack.c.l.b16 %v2578
    %v2938 = vunpack.c.l.b16 %v2579
    %v2939 = vunpack.c.l.b16 %v2580
    %v2940 = vunpack.c.l.b16 %v2581
    %v2941 = vunpack.c.l.b16 %v2582
    %v2942 = vunpack.c.l.b16 %v2583
    %v2943 = vunpack.c.l.b16 %v2584
    %v2944 = vunpack.c.l.b16 %v2585
    %v2945 = vunpack.c.l.b16 %v2586
    %v2946 = vunpack.c.l.b16 %v2587
    %v2947 = vunpack.c.l.b16 %v2588
    %v2948 = vunpack.c.l.b16 %v2589
    %v2949 = vunpack.c.l.b16 %v2590
    %v2950 = vunpack.c.l.b16 %v2591
    %v2951 = vunpack.c.l.b16 %v2592
    %v2952 = vunpack.c.l.b16 %v2593
    %v2953 = vunpack.c.l.b16 %v2594
    %v2954 = vunpack.c.l.b16 %v2595
    %v2955 = vunpack.c.l.b16 %v2596
    %v2956 = vunpack.c.l.b16 %v2597
    %v2957 = vunpack.c.l.b16 %v2598
    %v2958 = vunpack.c.l.b16 %v2599
    %v2959 = vunpack.c.l.b16 %v2600
    %v2960 = vunpack.c.l.b16 %v2601
    %v2961 = vunpack.c.l.b16 %v2602
    %v2962 = vunpack.c.l.b16 %v2603
    %v2963 = vunpack.c.l.b16 %v2604
    %v2964 = vunpack.c.l.b16 %v2605
    %v2965 = vunpack.c.l.b16 %v2606
    %v2966 = vunpack.c.l.b16 %v2607
    %v2967 = vunpack.c.l.b16 %v2608
    %v2968 = vunpack.c.l.b16 %v2609
    %v2969 = vunpack.c.l.b16 %v2610
    %v2970 = vunpack.c.l.b16 %v2611
    %v2971 = vunpack.c.l.b16 %v2612
    %v2972 = vunpack.c.l.b16 %v2613
    %v2973 = vunpack.c.l.b16 %v2614
    %v2974 = vunpack.c.l.b16 %v2615
    %v2975 = vunpack.c.l.b16 %v2616
    %v2976 = vunpack.c.l.b16 %v2617
    %v2977 = vunpack.c.l.b16 %v2618
    %v2978 = vunpack.c.l.b16 %v2619
    %v2979 = vunpack.c.l.b16 %v2620
    %v2980 = vunpack.c.l.b16 %v2621
    %v2981 = vunpack.c.l.b16 %v2622
    %v2982 = vunpack.c.l.b16 %v2623
    %v2983 = vunpack.c.l.b16 %v2624
    %v2984 = vunpack.c.l.b16 %v2625
    %v2985 = vunpack.c.l.b16 %v2626
    %v2986 = vunpack.c.l.b16 %v2627
    %v2987 = vunpack.c.l.b16 %v2628
    %v2988 = vunpack.c.l.b16 %v2629
    %v2989 = vunpack.c.l.b16 %v2630
    %v2990 = vunpack.c.l.b16 %v2631
    %v2991 = vunpack.c.l.b16 %v2632
    %v2992 = vunpack.c.l.b16 %v2633
    %v2993 = vunpack.c.l.b16 %v2634
    %v2994 = vunpack.c.l.b16 %v2635
    %v2995 = vunpack.c.l.b16 %v2636
    %v2996 = vunpack.c.l.b16 %v2637
    %v2997 = vunpack.c.l.b16 %v2638
    %v2998 = vunpack.c.l.b16 %v2639
    %v2999 = vunpack.c.l.b16 %v2640
    %v3000 = vunpack.c.l.b16 %v2641
    %v3001 = vunpack.c.l.b16 %v2642
    %v3002 = vunpack.c.l.b16 %v2643
    %v3003 = vunpack.c.l.b16 %v2644
    %v3004 = vunpack.c.l.b16 %v2645
    %v3005 = vunpack.c.l.b16 %v2646
    %v3006 = vunpack.c.l.b16 %v2647
    %v3007 = vunpack.c.l.b16 %v2648
    %v3008 = vunpack.c.l.b16 %v2649
    %v3009 = vunpack.c.l.b16 %v2650
    %v3010 = vunpack.c.l.b16 %v2651
    %v3011 = vunpack.c.l.b16 %v2652
    %v3012 = vunpack.c.l.b16 %v2653
    %v3013 = vunpack.c.l.b16 %v2654
    %v3014 = vunpack.c.l.b16 %v2655
    %v3015 = vunpack.c.l.b16 %v2656
    %v3016 = vunpack.c.l.b16 %v2657
    %v3017 = vunpack.c.l.b16 %v2658
    %v3018 = vunpack.c.l.b16 %v2659
    %v3019 = vunpack.c.l.b16 %v2660
    %v3020 = vunpack.c.l.b16 %v2661
    %v3021 = vunpack.c.l.b16 %v2662
    %v3022 = vunpack.c.l.b16 %v2663
    %v3023 = vunpack.c.l.b16 %v2664
    %v3024 = vunpack.c.l.b16 %v2665
    %v3025 = vunpack.c.l.b16 %v2666
    %v3026 = vunpack.c.l.b16 %v2667
    %v3027 = vunpack.c.l.b16 %v2668
    %v3028 = vunpack.c.l.b16 %v2669
    %v3029 = vunpack.c.l.b16 %v2670
    %v3030 = vunpack.c.l.b16 %v2671
    %v3031 = vunpack.c.l.b16 %v2672
    %v3032 = vunpack.c.l.b16 %v2673
    %v3033 = vunpack.c.l.b16 %v2674
    %v3034 = vunpack.c.l.b16 %v2675
    %v3035 = vunpack.c.l.b16 %v2676
    %v3036 = vunpack.c.l.b16 %v2677
    %v3037 = vunpack.c.l.b16 %v2678
    %v3038 = vunpack.c.l.b16 %v2679
    %v3039 = vunpack.c.l.b16 %v2680
    %v3040 = vunpack.c.l.b16 %v2681
    %v3041 = vunpack.c.l.b16 %v2682
    %v3042 = vunpack.c.l.b16 %v2683
    %v3043 = vunpack.c.l.b16 %v2684
    %v3044 = vunpack.c.l.b16 %v2685
    %v3045 = vunpack.c.l.b16 %v2686
    %v3046 = vunpack.c.l.b16 %v2687
    %v3047 = vunpack.c.l.b16 %v2688
    %v3048 = vunpack.c.l.b16 %v2689
    %v3049 = vunpack.c.l.b16 %v2690
    %v3050 = vunpack.c.l.b16 %v2691
    %v3051 = vunpack.c.l.b16 %v2692
    %v3052 = vunpack.c.l.b16 %v2693
    %v3053 = vunpack.c.l.b16 %v2694
    %v3054 = vunpack.c.l.b16 %v2695
    %v3055 = vunpack.c.l.b16 %v2696
    %v3056 = vunpack.c.l.b16 %v2697
    %v3057 = vunpack.c.l.b16 %v2698
    %v3058 = vunpack.c.l.b16 %v2699
    %v3059 = vunpack.c.l.b16 %v2700
    %v3060 = vunpack.c.l.b16 %v2701
    %v3061 = vunpack.c.l.b16 %v2702
    %v3062 = vunpack.c.l.b16 %v2703
    %v3063 = vunpack.c.l.b16 %v2704
    %v3064 = vunpack.c.l.b16 %v2705
    %v3065 = vunpack.c.l.b16 %v2706
    %v3066 = vunpack.c.l.b16 %v2707
    %v3067 = vunpack.c.l.b16 %v2708
    %v3068 = vunpack.c.l.b16 %v2709
    %v3069 = vunpack.c.l.b16 %v2710
    %v3070 = vunpack.c.l.b16 %v2711
    %v3071 = vunpack.c.l.b16 %v2712
    %v3072 = vunpack.c.l.b16 %v2713
    %v3073 = vunpack.c.l.b16 %v2714
    %v3074 = vunpack.c.l.b16 %v2715
    %v3075 = vunpack.c.l.b16 %v2716
    %v3076 = vunpack.c.l.b16 %v2717
    %v3077 = vunpack.c.l.b16 %v2718
    %v3078 = vunpack.c.l.b16 %v2719
    %v3079 = vunpack.c.l.b16 %v2720
    %v3080 = vunpack.c.l.b16 %v2721
    %v3081 = vunpack.c.l.b16 %v2722
    %v3082 = vunpack.c.l.b16 %v2723
    %v3083 = vunpack.c.l.b16 %v2724
    %v3084 = vunpack.c.l.b16 %v2725
    %v3085 = vunpack.c.l.b16 %v2726
    %v3086 = vunpack.c.l.b16 %v2727
    %v3087 = vunpack.c.l.b16 %v2728
    %v3088 = vunpack.c.l.b16 %v2729
    %v3089 = vunpack.c.l.b16 %v2730
    %v3090 = vunpack.c.l.b16 %v2731
    %v3091 = vunpack.c.l.b16 %v2732
    %v3092 = vunpack.c.l.b16 %v2733
    %v3093 = vunpack.c.l.b16 %v2734
    %v3094 = vunpack.c.l.b16 %v2735
    %v3095 = vunpack.c.l.b16 %v2736
    %v3096 = vunpack.c.l.b16 %v2737
    %v3097 = vunpack.c.l.b16 %v2738
    %v3098 = vunpack.c.l.b16 %v2739
    %v3099 = vunpack.c.l.b16 %v2740
    %v3100 = vunpack.c.l.b16 %v2741
    %v3101 = vunpack.c.l.b16 %v2742
    %v3102 = vunpack.c.l.b16 %v2743
    %v3103 = vunpack.c.l.b16 %v2744
    %v3104 = vunpack.c.l.b16 %v2745
    %v3105 = vunpack.c.l.b16 %v2746
    %v3106 = vunpack.c.l.b16 %v2747
    %v3107 = vunpack.c.l.b16 %v2748
    %v3108 = vunpack.c.l.b16 %v2749
    %v3109 = vunpack.c.l.b16 %v2750
    %v3110 = vunpack.c.l.b16 %v2751
    %v3111 = vpack.c.b16 %v2936, %v2935
    %v3112 = vpack.c.b16 %v2938, %v2937
    %v3113 = vpack.c.b16 %v2940, %v2939
    %v3114 = vpack.c.b16 %v2942, %v2941
    %v3115 = vpack.c.b16 %v2944, %v2943
    %v3116 = vpack.c.b16 %v2946, %v2945
    %v3117 = vpack.c.b16 %v2948, %v2947
    %v3118 = vpack.c.b16 %v2950, %v2949
    %v3119 = vpack.c.b16 %v2952, %v2951
    %v3120 = vpack.c.b16 %v2954, %v2953
    %v3121 = vpack.c.b16 %v2956, %v2955
    %v3122 = vpack.c.b16 %v2958, %v2957
    %v3123 = vpack.c.b16 %v2960, %v2959
    %v3124 = vpack.c.b16 %v2962, %v2961
    %v3125 = vpack.c.b16 %v2964, %v2963
    %v3126 = vpack.c.b16 %v2966, %v2965
    %v3127 = vpack.c.b16 %v2968, %v2967
    %v3128 = vpack.c.b16 %v2970, %v2969
    %v3129 = vpack.c.b16 %v2972, %v2971
    %v3130 = vpack.c.b16 %v2974, %v2973
    %v3131 = vpack.c.b16 %v2976, %v2975
    %v3132 = vpack.c.b16 %v2978, %v2977
    %v3133 = vpack.c.b16 %v2980, %v2979
    %v3134 = vpack.c.b16 %v2982, %v2981
    %v3135 = vpack.c.b16 %v2984, %v2983
    %v3136 = vpack.c.b16 %v2986, %v2985
    %v3137 = vpack.c.b16 %v2988, %v2987
    %v3138 = vpack.c.b16 %v2990, %v2989
    %v3139 = vpack.c.b16 %v2992, %v2991
    %v3140 = vpack.c.b16 %v2994, %v2993
    %v3141 = vpack.c.b16 %v2996, %v2995
    %v3142 = vpack.c.b16 %v2998, %v2997
    %v3143 = vpack.c.b16 %v3000, %v2999
    %v3144 = vpack.c.b16 %v3002, %v3001
    %v3145 = vpack.c.b16 %v3004, %v3003
    %v3146 = vpack.c.b16 %v3006, %v3005
    %v3147 = vpack.c.b16 %v3008, %v3007
    %v3148 = vpack.c.b16 %v3010, %v3009
    %v3149 = vpack.c.b16 %v3012, %v3011
    %v3150 = vpack.c.b16 %v3014, %v3013
    %v3151 = vpack.c.b16 %v3016, %v3015
    %v3152 = vpack.c.b16 %v3018, %v3017
    %v3153 = vpack.c.b16 %v3020, %v3019
    %v3154 = vpack.c.b16 %v3022, %v3021
    %v3155 = vpack.c.b16 %v3024, %v3023
    %v3156 = vpack.c.b16 %v3026, %v3025
    %v3157 = vpack.c.b16 %v3028, %v3027
    %v3158 = vpack.c.b16 %v3030, %v3029
    %v3159 = vpack.c.b16 %v3032, %v3031
    %v3160 = vpack.c.b16 %v3034, %v3033
    %v3161 = vpack.c.b16 %v3036, %v3035
    %v3162 = vpack.c.b16 %v3038, %v3037
    %v3163 = vpack.c.b16 %v3040, %v3039
    %v3164 = vpack.c.b16 %v3042, %v3041
    %v3165 = vpack.c.b16 %v3044, %v3043
    %v3166 = vpack.c.b16 %v3046, %v3045
    %v3167 = vpack.c.b16 %v3048, %v3047
    %v3168 = vpack.c.b16 %v3050, %v3049
    %v3169 = vpack.c.b16 %v3052, %v3051
    %v3170 = vpack.c.b16 %v3054, %v3053
    %v3171 = vpack.c.b16 %v3056, %v3055
    %v3172 = vpack.c.b16 %v3058, %v3057
    %v3173 = vpack.c.b16 %v3060, %v3059
    %v3174 = vpack.c.b16 %v3062, %v3061
    %v3175 = vpack.c.b16 %v3064, %v3063
    %v3176 = vpack.c.b16 %v3066, %v3065
    %v3177 = vpack.c.b16 %v3068, %v3067
    %v3178 = vpack.c.b16 %v3070, %v3069
    %v3179 = vpack.c.b16 %v3072, %v3071
    %v3180 = vpack.c.b16 %v3074, %v3073
    %v3181 = vpack.c.b16 %v3076, %v3075
    %v3182 = vpack.c.b16 %v3078, %v3077
    %v3183 = vpack.c.b16 %v3080, %v3079
    %v3184 = vpack.c.b16 %v3082, %v3081
    %v3185 = vpack.c.b16 %v3084, %v3083
    %v3186 = vpack.c.b16 %v3086, %v3085
    %v3187 = vpack.c.b16 %v3088, %v3087
    %v3188 = vpack.c.b16 %v3090, %v3089
    %v3189 = vpack.c.b16 %v3092, %v3091
    %v3190 = vpack.c.b16 %v3094, %v3093
    %v3191 = vpack.c.b16 %v3096, %v3095
    %v3192 = vpack.c.b16 %v3098, %v3097
    %v3193 = vpack.c.b16 %v3100, %v3099
    %v3194 = vpack.c.b16 %v3102, %v3101
    %v3195 = vpack.c.b16 %v3104, %v3103
    %v3196 = vpack.c.b16 %v3106, %v3105
    %v3197 = vpack.c.b16 %v3108, %v3107
    %v3198 = vpack.c.b16 %v3110, %v3109
    %3287 = vmatprep.subr.bf16.mxu0 0
    %3288 = vmatpush1.bf16.msra.mxu0 %v3118
    %3289 = vmatprep.subr.bf16.mxu0 0
    %3290 = vmatpush1.bf16.msra.mxu0 %v3117
    %3291 = vmatprep.subr.bf16.mxu0 0
    %3292 = vmatpush1.bf16.msra.mxu0 %v3116
    %3293 = vmatprep.subr.bf16.mxu0 0
    %3294 = vmatpush1.bf16.msra.mxu0 %v3115
    %3295 = vmatprep.subr.bf16.mxu0 0
    %3296 = vmatpush1.bf16.msra.mxu0 %v3114
    %3297 = vmatprep.subr.bf16.mxu0 0
    %3298 = vmatpush1.bf16.msra.mxu0 %v3113
    %3299 = vmatprep.subr.bf16.mxu0 0
    %3300 = vmatpush1.bf16.msra.mxu0 %v3112
    %3301 = vmatprep.subr.bf16.mxu0 0
    %3302 = vmatpush1.bf16.msra.mxu0 %v3111
    %3303 = vmatprep.subr.bf16.mxu0 0
    %3304 = vmatpush2.bf16.msra.mxu0 %v3126
    %3305 = vmatprep.subr.bf16.mxu0 0
    %3306 = vmatpush2.bf16.msra.mxu0 %v3125
    %3307 = vmatprep.subr.bf16.mxu0 0
    %3308 = vmatpush2.bf16.msra.mxu0 %v3124
    %3309 = vmatprep.subr.bf16.mxu0 0
    %3310 = vmatpush2.bf16.msra.mxu0 %v3123
    %3311 = vmatprep.subr.bf16.mxu0 0
    %3312 = vmatpush2.bf16.msra.mxu0 %v3122
    %3313 = vmatprep.subr.bf16.mxu0 0
    %3314 = vmatpush2.bf16.msra.mxu0 %v3121
    %3315 = vmatprep.subr.bf16.mxu0 0
    %3316 = vmatpush2.bf16.msra.mxu0 %v3120
    %3317 = vmatprep.subr.bf16.mxu0 0
    %3318 = vmatpush2.bf16.msra.mxu0 %v3119
    %3319 = vmatprep.mubr.bf16.mxu0 %v2561
    %3320 = vmatmul.mubr.bf16.gmra.mxu0 %v2560
    %v3321 = vpop.f32.mrf.mxu0
    %v3322 = vadd.f32 %v2757, %v3321
    %v3323 = vpop.f32.mrf.mxu0
    %v3324 = vpop.f32.mrf.mxu0
    %v3325 = vpop.f32.mrf.mxu0
    %3326 = vdwg.mxu0
    %3327 = vmatprep.subr.bf16.mxu0 0
    %3328 = vmatpush1.bf16.msra.mxu0 %v3134
    %3329 = vmatprep.subr.bf16.mxu0 0
    %3330 = vmatpush1.bf16.msra.mxu0 %v3133
    %3331 = vmatprep.subr.bf16.mxu0 0
    %3332 = vmatpush1.bf16.msra.mxu0 %v3132
    %3333 = vmatprep.subr.bf16.mxu0 0
    %3334 = vmatpush1.bf16.msra.mxu0 %v3131
    %3335 = vmatprep.subr.bf16.mxu0 0
    %3336 = vmatpush1.bf16.msra.mxu0 %v3130
    %3337 = vmatprep.subr.bf16.mxu0 0
    %3338 = vmatpush1.bf16.msra.mxu0 %v3129
    %3339 = vmatprep.subr.bf16.mxu0 0
    %3340 = vmatpush1.bf16.msra.mxu0 %v3128
    %3341 = vmatprep.subr.bf16.mxu0 0
    %3342 = vmatpush1.bf16.msra.mxu0 %v3127
    %3343 = vmatprep.subr.bf16.mxu0 0
    %3344 = vmatpush2.bf16.msra.mxu0 %v3142
    %3345 = vmatprep.subr.bf16.mxu0 0
    %3346 = vmatpush2.bf16.msra.mxu0 %v3141
    %3347 = vmatprep.subr.bf16.mxu0 0
    %3348 = vmatpush2.bf16.msra.mxu0 %v3140
    %3349 = vmatprep.subr.bf16.mxu0 0
    %3350 = vmatpush2.bf16.msra.mxu0 %v3139
    %3351 = vmatprep.subr.bf16.mxu0 0
    %3352 = vmatpush2.bf16.msra.mxu0 %v3138
    %3353 = vmatprep.subr.bf16.mxu0 0
    %3354 = vmatpush2.bf16.msra.mxu0 %v3137
    %3355 = vmatprep.subr.bf16.mxu0 0
    %3356 = vmatpush2.bf16.msra.mxu0 %v3136
    %3357 = vmatprep.subr.bf16.mxu0 0
    %3358 = vmatpush2.bf16.msra.mxu0 %v3135
    %3359 = vmatprep.mubr.bf16.mxu0 %v2567
    %3360 = vmatmul.mubr.bf16.gmra.mxu0 %v2566
    %v3361 = vpop.f32.mrf.mxu0
    %v3362 = vadd.f32 %v3322, %v3361
    %v3363 = vpop.f32.mrf.mxu0
    %v3364 = vpop.f32.mrf.mxu0
    %v3365 = vpop.f32.mrf.mxu0
    %3366 = vdwg.mxu0
    %3367 = vmatprep.subr.bf16.mxu0 0
    %3368 = vmatpush1.bf16.msra.mxu0 %v3150
    %3369 = vmatprep.subr.bf16.mxu0 0
    %3370 = vmatpush1.bf16.msra.mxu0 %v3149
    %3371 = vmatprep.subr.bf16.mxu0 0
    %3372 = vmatpush1.bf16.msra.mxu0 %v3148
    %3373 = vmatprep.subr.bf16.mxu0 0
    %3374 = vmatpush1.bf16.msra.mxu0 %v3147
    %3375 = vmatprep.subr.bf16.mxu0 0
    %3376 = vmatpush1.bf16.msra.mxu0 %v3146
    %3377 = vmatprep.subr.bf16.mxu0 0
    %3378 = vmatpush1.bf16.msra.mxu0 %v3145
    %3379 = vmatprep.subr.bf16.mxu0 0
    %3380 = vmatpush1.bf16.msra.mxu0 %v3144
    %3381 = vmatprep.subr.bf16.mxu0 0
    %3382 = vmatpush1.bf16.msra.mxu0 %v3143
    %3383 = vmatprep.subr.bf16.mxu0 0
    %3384 = vmatpush2.bf16.msra.mxu0 %v3158
    %3385 = vmatprep.subr.bf16.mxu0 0
    %3386 = vmatpush2.bf16.msra.mxu0 %v3157
    %3387 = vmatprep.subr.bf16.mxu0 0
    %3388 = vmatpush2.bf16.msra.mxu0 %v3156
    %3389 = vmatprep.subr.bf16.mxu0 0
    %3390 = vmatpush2.bf16.msra.mxu0 %v3155
    %3391 = vmatprep.subr.bf16.mxu0 0
    %3392 = vmatpush2.bf16.msra.mxu0 %v3154
    %3393 = vmatprep.subr.bf16.mxu0 0
    %3394 = vmatpush2.bf16.msra.mxu0 %v3153
    %3395 = vmatprep.subr.bf16.mxu0 0
    %3396 = vmatpush2.bf16.msra.mxu0 %v3152
    %3397 = vmatprep.subr.bf16.mxu0 0
    %3398 = vmatpush2.bf16.msra.mxu0 %v3151
    %3399 = vmatprep.mubr.bf16.mxu0 %v2573
    %3400 = vmatmul.mubr.bf16.gmra.mxu0 %v2572
    %v3401 = vpop.f32.mrf.mxu0
    %v3402 = vadd.f32 %v3362, %v3401
    %v3403 = vpop.f32.mrf.mxu0
    %v3404 = vpop.f32.mrf.mxu0
    %v3405 = vpop.f32.mrf.mxu0
    %3406 = vdwg.mxu0
    %3407 = vmatprep.subr.bf16.mxu0 0
    %3408 = vmatpush1.bf16.msra.mxu0 %v3166
    %3409 = vmatprep.subr.bf16.mxu0 0
    %3410 = vmatpush1.bf16.msra.mxu0 %v3165
    %3411 = vmatprep.subr.bf16.mxu0 0
    %3412 = vmatpush1.bf16.msra.mxu0 %v3164
    %3413 = vmatprep.subr.bf16.mxu0 0
    %3414 = vmatpush1.bf16.msra.mxu0 %v3163
    %3415 = vmatprep.subr.bf16.mxu0 0
    %3416 = vmatpush1.bf16.msra.mxu0 %v3162
    %3417 = vmatprep.subr.bf16.mxu0 0
    %3418 = vmatpush1.bf16.msra.mxu0 %v3161
    %3419 = vmatprep.subr.bf16.mxu0 0
    %3420 = vmatpush1.bf16.msra.mxu0 %v3160
    %3421 = vmatprep.subr.bf16.mxu0 0
    %3422 = vmatpush1.bf16.msra.mxu0 %v3159
    %3423 = vmatprep.subr.bf16.mxu0 0
    %3424 = vmatpush2.bf16.msra.mxu0 %v3174
    %3425 = vmatprep.subr.bf16.mxu0 0
    %3426 = vmatpush2.bf16.msra.mxu0 %v3173
    %3427 = vmatprep.subr.bf16.mxu0 0
    %3428 = vmatpush2.bf16.msra.mxu0 %v3172
    %3429 = vmatprep.subr.bf16.mxu0 0
    %3430 = vmatpush2.bf16.msra.mxu0 %v3171
    %3431 = vmatprep.subr.bf16.mxu0 0
    %3432 = vmatpush2.bf16.msra.mxu0 %v3170
    %3433 = vmatprep.subr.bf16.mxu0 0
    %3434 = vmatpush2.bf16.msra.mxu0 %v3169
    %3435 = vmatprep.subr.bf16.mxu0 0
    %3436 = vmatpush2.bf16.msra.mxu0 %v3168
    %3437 = vmatprep.subr.bf16.mxu0 0
    %3438 = vmatpush2.bf16.msra.mxu0 %v3167
    %3439 = vmatprep.mubr.bf16.mxu0 %v2554
    %3440 = vmatmul.mubr.bf16.gmra.mxu0 %v2553
    %v3441 = vpop.f32.mrf.mxu0
    %v3442 = vadd.f32 %v3402, %v3441
    %v3443 = vpop.f32.mrf.mxu0
    %v3444 = vpop.f32.mrf.mxu0
    %v3445 = vpop.f32.mrf.mxu0
    %3446 = vdwg.mxu0
    %3447 = vmatprep.subr.bf16.mxu0 0
    %3448 = vmatpush1.bf16.msra.mxu0 %v3182
    %3449 = vmatprep.subr.bf16.mxu0 0
    %3450 = vmatpush1.bf16.msra.mxu0 %v3181
    %3451 = vmatprep.subr.bf16.mxu0 0
    %3452 = vmatpush1.bf16.msra.mxu0 %v3180
    %3453 = vmatprep.subr.bf16.mxu0 0
    %3454 = vmatpush1.bf16.msra.mxu0 %v3179
    %3455 = vmatprep.subr.bf16.mxu0 0
    %3456 = vmatpush1.bf16.msra.mxu0 %v3178
    %3457 = vmatprep.subr.bf16.mxu0 0
    %3458 = vmatpush1.bf16.msra.mxu0 %v3177
    %3459 = vmatprep.subr.bf16.mxu0 0
    %3460 = vmatpush1.bf16.msra.mxu0 %v3176
    %3461 = vmatprep.subr.bf16.mxu0 0
    %3462 = vmatpush1.bf16.msra.mxu0 %v3175
    %3463 = vmatprep.subr.bf16.mxu0 0
    %3464 = vmatpush2.bf16.msra.mxu0 %v3190
    %3465 = vmatprep.subr.bf16.mxu0 0
    %3466 = vmatpush2.bf16.msra.mxu0 %v3189
    %3467 = vmatprep.subr.bf16.mxu0 0
    %3468 = vmatpush2.bf16.msra.mxu0 %v3188
    %3469 = vmatprep.subr.bf16.mxu0 0
    %3470 = vmatpush2.bf16.msra.mxu0 %v3187
    %3471 = vmatprep.subr.bf16.mxu0 0
    %3472 = vmatpush2.bf16.msra.mxu0 %v3186
    %3473 = vmatprep.subr.bf16.mxu0 0
    %3474 = vmatpush2.bf16.msra.mxu0 %v3185
    %3475 = vmatprep.subr.bf16.mxu0 0
    %3476 = vmatpush2.bf16.msra.mxu0 %v3184
    %3477 = vmatprep.subr.bf16.mxu0 0
    %3478 = vmatpush2.bf16.msra.mxu0 %v3183
    %3479 = vmatprep.mubr.bf16.mxu0 %v2556
    %3480 = vmatmul.mubr.bf16.gmra.mxu0 %v2555
    %v3481 = vpop.f32.mrf.mxu0
    %v3482 = vadd.f32 %v3442, %v3481
    %v3483 = vpop.f32.mrf.mxu0
    %v3484 = vpop.f32.mrf.mxu0
    %v3485 = vpop.f32.mrf.mxu0
    %3486 = vdwg.mxu0
    %3487 = vmatprep.subr.bf16.mxu0 0
    %3488 = vmatpush1.bf16.msra.mxu0 %v3198
    %3489 = vmatprep.subr.bf16.mxu0 0
    %3490 = vmatpush1.bf16.msra.mxu0 %v3197
    %3491 = vmatprep.subr.bf16.mxu0 0
    %3492 = vmatpush1.bf16.msra.mxu0 %v3196
    %3493 = vmatprep.subr.bf16.mxu0 0
    %3494 = vmatpush1.bf16.msra.mxu0 %v3195
    %3495 = vmatprep.subr.bf16.mxu0 0
    %3496 = vmatpush1.bf16.msra.mxu0 %v3194
    %3497 = vmatprep.subr.bf16.mxu0 0
    %3498 = vmatpush1.bf16.msra.mxu0 %v3193
    %3499 = vmatprep.subr.bf16.mxu0 0
    %3500 = vmatpush1.bf16.msra.mxu0 %v3192
    %3501 = vmatprep.subr.bf16.mxu0 0
    %3502 = vmatpush1.bf16.msra.mxu0 %v3191
    %3503 = vmatprep.subr.bf16.mxu0 0
    %3504 = vmatpush2.bf16.msra.mxu0 0
    %3505 = vmatprep.subr.bf16.mxu0 0
    %3506 = vmatpush2.bf16.msra.mxu0 0
    %3507 = vmatprep.subr.bf16.mxu0 0
    %3508 = vmatpush2.bf16.msra.mxu0 0
    %3509 = vmatprep.subr.bf16.mxu0 0
    %3510 = vmatpush2.bf16.msra.mxu0 0
    %3511 = vmatprep.subr.bf16.mxu0 0
    %3512 = vmatpush2.bf16.msra.mxu0 0
    %3513 = vmatprep.subr.bf16.mxu0 0
    %3514 = vmatpush2.bf16.msra.mxu0 0
    %3515 = vmatprep.subr.bf16.mxu0 0
    %3516 = vmatpush2.bf16.msra.mxu0 0
    %3517 = vmatprep.subr.bf16.mxu0 0
    %3518 = vmatpush2.bf16.msra.mxu0 0
    %3519 = vmatprep.mubr.bf16.mxu0 0
    %3520 = vmatmul.mubr.bf16.gmra.mxu0 %v2557
    %v3521 = vpop.f32.mrf.mxu0
    %v3522 = vadd.f32 %v3482, %v3521
    %v3523 = vpop.f32.mrf.mxu0
    %v3524 = vpop.f32.mrf.mxu0
    %v3525 = vpop.f32.mrf.mxu0
    %3526 = vdwg.mxu0
    %3527 = vst [vmem:[#allocation6] sm:$0x3] %v3522
    %v3528 = vmul.f32 %v2545, %v2545
    %v3529 = vmul.f32 %v2546, %v2546
    %v3530 = vmul.f32 %v2547, %v2547
    %v3531 = vmul.f32 %v2548, %v2548
    %v3532 = vmul.f32 %v2549, %v2549
    %v3533 = vmul.f32 %v2550, %v2550
    %v3534 = vmul.f32 %v2551, %v2551
    %v3535 = vmul.f32 %v2552, %v2552
    %vm3536 = vcmask 1041408
    %v3537 = vsel %vm3536, %v3528, 0.0
    %v3538 = vsel %vm3536, %v3529, 0.0
    %v3539 = vadd.f32 %v3537, %v3538
    %v3540 = vsel %vm3536, %v3530, 0.0
    %v3541 = vadd.f32 %v3539, %v3540
    %v3542 = vsel %vm3536, %v3531, 0.0
    %v3543 = vadd.f32 %v3541, %v3542
    %v3544 = vsel %vm3536, %v3532, 0.0
    %v3545 = vadd.f32 %v3543, %v3544
    %v3546 = vsel %vm3536, %v3533, 0.0
    %v3547 = vadd.f32 %v3545, %v3546
    %v3548 = vsel %vm3536, %v3534, 0.0
    %v3549 = vadd.f32 %v3547, %v3548
    %v3550 = vsel %vm3536, %v3535, 0.0
    %v3551 = vadd.f32 %v3549, %v3550
    %3552 = vadd.xlane.f32.xlu0 %v3551
    %v3553 = vpop.xlane.xlu0 %3552
    %3554 = vadd.xlane.f32.xlu0 %v3541
    %v3555 = vpop.xlane.xlu0 %3554
    %v3556 = vrsqrt.pop %v3553
    %v3557 = vrsqrt.pop %v3555
    %v3558 = vmul.f32 %v2545, %v3556
    %v3559 = vmul.f32 %v2546, %v3556
    %v3560 = vmul.f32 %v2547, %v3556
    %v3561 = vmul.f32 %v2548, %v3556
    %v3562 = vmul.f32 %v2549, %v3556
    %v3563 = vmul.f32 %v2550, %v3556
    %v3564 = vmul.f32 %v2551, %v3556
    %v3565 = vmul.f32 %v2552, %v3556
    %v3574 = vcombine.low %v3558, %v3559
    %v3575 = vcombine.low %v3560, %v3561
    %v3577 = vunpack.c.l.s4 1983009808
    %v3578 = vunpack.c.0.s8 %v3577
    %v3579 = vlaneseq
    %v3580 = vshrl.u32 %v3579, 7
    %v3581 = vsub.s32 %v3578, %v3580
    %v3582 = vrot.slane %v3574, %v3581
    %v3584 = vunpack.c.l.s4 1983009808
    %v3585 = vunpack.c.0.s8 %v3584
    %v3586 = vlaneseq
    %v3587 = vshrl.u32 %v3586, 7
    %v3588 = vsub.s32 %v3585, %v3587
    %v3589 = vrot.slane %v3575, %v3588
    %v3590 = vcombine.low %v3582, %v3589
    %v3591 = vcombine.low %v3562, %v3563
    %v3592 = vcombine.low %v3564, %v3565
    %v3594 = vunpack.c.l.s4 1983009808
    %v3595 = vunpack.c.0.s8 %v3594
    %v3596 = vlaneseq
    %v3597 = vshrl.u32 %v3596, 7
    %v3598 = vsub.s32 %v3595, %v3597
    %v3599 = vrot.slane %v3591, %v3598
    %v3601 = vunpack.c.l.s4 1983009808
    %v3602 = vunpack.c.0.s8 %v3601
    %v3603 = vlaneseq
    %v3604 = vshrl.u32 %v3603, 7
    %v3605 = vsub.s32 %v3602, %v3604
    %v3606 = vrot.slane %v3592, %v3605
    %v3607 = vcombine.low %v3599, %v3606
    %3610 = vst [vmem:[#allocation2] sm:$0xff] %v3590
    %3611 = vst [vmem:[#allocation2 + $0x8] sm:$0xff] %v3607
    %v3612 = vmul.f32 %v2545, %v3557
    %v3613 = vmul.f32 %v2546, %v3557
    %v3614 = vmul.f32 %v2547, %v3557
    %v3618 = vcombine.low %v3612, %v3613
    %v3620 = vunpack.c.l.s4 1983009808
    %v3621 = vunpack.c.0.s8 %v3620
    %v3622 = vlaneseq
    %v3623 = vshrl.u32 %v3622, 7
    %v3624 = vsub.s32 %v3621, %v3623
    %v3625 = vrot.slane %v3618, %v3624
    %v3627 = vunpack.c.l.s4 1983009808
    %v3628 = vunpack.c.0.s8 %v3627
    %v3629 = vlaneseq
    %v3630 = vshrl.u32 %v3629, 7
    %v3631 = vsub.s32 %v3628, %v3630
    %v3632 = vrot.slane %v3614, %v3631
    %v3633 = vcombine.low %v3625, %v3632
    %3635 = vst [vmem:[#allocation4] sm:$0x3f] %v3633
    // Predicated region
    $region30: #{forward.1} parent=1 // pred_check
      _
    $region31: #{forward.1} parent=1 // pred_check_branch
      %3637 = sbr.rel (0) target = $region33
    $region32: #{forward.1} parent=1 // pred_region
      %s3639 = ssub.s32 256, 256
      %3640 = vsyncadd [#allocation3], %s3639
      %s3642 = sshll.u32 [#allocation2], 4
      %s3643 = int_to_ptr.vmem [resolvable:$true] %s3642
      %3645 = dma.vmem_to_hbm [thread:$0]  %s3643, 256, %s7, [#allocation3]
    $region33: #{forward.1} parent=1 // pred_fallthru
      _
    // Predicated region
    $region34: #{forward.1} parent=1 // pred_check
      _
    $region35: #{forward.1} parent=1 // pred_check_branch
      %3647 = sbr.rel (0) target = $region37
    $region36: #{forward.1} parent=1 // pred_region
      %s3649 = ssub.s32 96, 96
      %3650 = vsyncadd [#allocation5], %s3649
      %s3652 = sshll.u32 [#allocation4], 4
      %s3653 = int_to_ptr.vmem [resolvable:$true] %s3652
      %3655 = dma.vmem_to_hbm [thread:$0]  %s3653, 96, %s8, [#allocation5]
    $region37: #{forward.1} parent=1 // pred_fallthru
      _
    // Predicated region
    $region38: #{forward.1} parent=1 // pred_check
      _
    $region39: #{forward.1} parent=1 // pred_check_branch
      %3657 = sbr.rel (0) target = $region41
    $region40: #{forward.1} parent=1 // pred_region
      %s3659 = ssub.s32 32, 32
      %3660 = vsyncadd [#allocation5], %s3659
      %s3662 = sshll.u32 [#allocation6], 4
      %s3663 = int_to_ptr.vmem [resolvable:$true] %s3662
      %3665 = dma.vmem_to_hbm [thread:$0]  %s3663, 32, %s9, [#allocation5]
    $region41: #{forward.1} parent=1 // pred_fallthru
      _
    // Predicated region
    $region42: #{forward.1} parent=1 // pred_check
      _
    $region43: #{forward.1} parent=1 // pred_check_branch
      %3667 = sbr.rel (0) target = $region45
    $region44: #{forward.1} parent=1 // pred_region
      %3668 = dma.done [#allocation3], 256
    $region45: #{forward.1} parent=1 // pred_fallthru
      _
    // Predicated region
    $region46: #{forward.1} parent=1 // pred_check
      _
    $region47: #{forward.1} parent=1 // pred_check_branch
      %3670 = sbr.rel (0) target = $region49
    $region48: #{forward.1} parent=1 // pred_region
      %3671 = dma.done [#allocation5], 96
    $region49: #{forward.1} parent=1 // pred_fallthru
      _
    // Predicated region
    $region50: #{forward.1} parent=1 // pred_check
      _
    $region51: #{forward.1} parent=1 // pred_check_branch
      %3673 = sbr.rel (0) target = $region53
    $region52: #{forward.1} parent=1 // pred_region
      %3674 = dma.done [#allocation5], 32
    $region53: #{forward.1} parent=1 // pred_fallthru
      _
    %3675 = vsyncpa [#allocation3], 1
    %3676 = vsyncpa [#allocation5], 1

</llo_original>
